<compile_context>
chip_gen: v7x
topology: tpu7x:2x2x1
jax: 0.10.0
libtpu: 0.0.40
codegen_flags: <defaults>
</compile_context>

<pallas_src>
import functools

import jax
import jax.numpy as jnp
from jax.experimental import pallas as pl
from jax.experimental.pallas import tpu as pltpu


def channel_mixer_kernel(x_ref, w1_ref, b1_ref, dww_ref, dwb_ref, w2_ref, b2_ref,
                         t1_ref, ca1b_ref, t2_ref, ca2b_ref, o_ref, *, H, W, k):
    N = H * W
    Chp = w1_ref.shape[1]
    p = k // 2

    x = x_ref[0]                                            # (N, Cp) bf16

    # ---- fc1: 1x1 conv == per-pixel matmul (bf16 x bf16 -> f32 acc on MXU) ----
    h0 = jnp.dot(x, w1_ref[...],
                 preferred_element_type=jnp.float32) + b1_ref[...]       # (N, Chp) f32

    # ---- depthwise k x k conv (zero padding) via XLU roll + hoisted masks ----
    taps = dww_ref[...]                                     # (k*k, Chp) f32, one read

    n_idx = jax.lax.broadcasted_iota(jnp.int32, (N, Chp), 0)  # flat H*W index
    if (W & (W - 1)) == 0:
        col_idx = n_idx & (W - 1)                           # W power of two: 1 AND
    elif W % 8 == 0:
        # layout-preserving (W is sublane-aligned): no div/mod, no relayout
        col_idx = jax.lax.broadcasted_iota(jnp.int32, (H, W, Chp), 1).reshape(N, Chp)
    else:
        col_idx = jax.lax.rem(n_idx, W)                     # single hoisted pass

    # Boundary masks, computed ONCE (row masks need no division: row>=d <=> n>=d*W).
    top = {d: n_idx >= d * W for d in range(1, p + 1)}            # tap offset oy < 0
    bottom = {d: n_idx < (H - d) * W for d in range(1, p + 1)}    # tap offset oy > 0
    left = {d: col_idx >= d for d in range(1, p + 1)}             # tap offset ox < 0
    right = {d: col_idx < W - d for d in range(1, p + 1)}         # tap offset ox > 0

    dw = jnp.zeros((N, Chp), jnp.float32)
    for dy in range(k):                                     # static, unrolled taps
        for dx in range(k):
            oy, ox = dy - p, dx - p
            off = oy * W + ox
            src = h0 if off == 0 else pltpu.roll(h0, shift=(-off) % N, axis=0)
            valid = None
            if oy > 0:
                valid = bottom[oy]
            if oy < 0:
                valid = top[-oy]
            if ox > 0:
                valid = right[ox] if valid is None else valid & right[ox]
            if ox < 0:
                valid = left[-ox] if valid is None else valid & left[-ox]
            if valid is not None:
                src = jnp.where(valid, src, 0.0)
            dw = dw + src * taps[dy * k + dx]
    dw = dw + dwb_ref[...]                                  # depthwise bias

    # ---- SiLU (sigmoid on EUP) ----
    h1 = dw * jax.nn.sigmoid(dw)

    # ---- fc2: 1x1 conv (activations cast to bf16, f32 accumulate) ----
    y = jnp.dot(h1.astype(jnp.bfloat16), w2_ref[...],
                preferred_element_type=jnp.float32) + b2_ref[...]        # (N, Cp) f32

    # ---- ChannelAtt: MXU global mean pool, two Toeplitz-folded 1-D convs ----
    a = y * jax.nn.sigmoid(y)
    ones_row = jnp.ones((1, N), jnp.float32)
    pooled = jnp.dot(ones_row, a,
                     preferred_element_type=jnp.float32) * (1.0 / N)     # (1, Cp)
    g = jnp.dot(pooled, t1_ref[...],
                preferred_element_type=jnp.float32) + ca1b_ref[0, 0]
    g = g * jax.nn.sigmoid(g)
    g = jnp.dot(g, t2_ref[...],
                preferred_element_type=jnp.float32) + ca2b_ref[0, 0]     # (1, Cp)

    o_ref[0] = (y + g).astype(o_ref.dtype)


def _round_up(v, m):
    return (v + m - 1) // m * m


def _conv1d_toeplitz(w, length):
    """Banded (Toeplitz) matrix T with (v @ T)[c] == Conv1d(1,1,k,pad=k//2)(v)[c]."""
    k = w.shape[0]
    p = k // 2
    j = jnp.arange(length)[:, None]
    c = jnp.arange(length)[None, :]
    t = j - c + p
    valid = (t >= 0) & (t < k)
    return jnp.where(valid, w[jnp.clip(t, 0, k - 1)], 0.0).astype(jnp.float32)


def channel_mixer(x, w1, b1, dw_w, dw_b, w2, b2, ca1_w, ca1_b, ca2_w, ca2_b):
    """x: (B,H,W,C) NHWC.  w1: (C,Ch).  dw_w: (k,k,Ch).  w2: (Ch,C).
    ca1_w: (k1,), ca1_b: (), ca2_w: (k2,), ca2_b: ()."""
    B, H, W, C = x.shape
    Ch = w1.shape[1]
    k = dw_w.shape[0]
    N = H * W
    LANE = 128
    Cp = _round_up(C, LANE)
    Chp = _round_up(Ch, LANE)

    # Host-side re-layouts (cheap / XLA-fused):
    #  * flatten spatial dims so the kernel keeps one (H*W, C) layout,
    #  * bf16-cast the big matmul operands (halves HBM traffic for x too),
    #  * zero-pad channel dims to a multiple of 128 (lane-dense stores, full MXU
    #    tiles).  Zero pads are mathematically inert through fc1/dwconv/fc2.
    #  * fold the Conv1d channel-attention kernels into (Cp,Cp) Toeplitz bands;
    #    rows >= C of the second band are zeroed so the (garbage) conv1 outputs
    #    at padded channel positions never feed back into real channels --
    #    exactly matching the zero-padded length-C Conv1d semantics.
    x2 = jnp.pad(x.reshape(B, N, C).astype(jnp.bfloat16),
                 ((0, 0), (0, 0), (0, Cp - C)))
    w1p = jnp.pad(w1, ((0, Cp - C), (0, Chp - Ch))).astype(jnp.bfloat16)
    b1p = jnp.pad(b1.astype(jnp.float32), ((0, 0), (0, Chp - Ch)))
    tapsp = jnp.pad(dw_w.reshape(k * k, Ch).astype(jnp.float32),
                    ((0, 0), (0, Chp - Ch)))
    dwbp = jnp.pad(dw_b.astype(jnp.float32), ((0, 0), (0, Chp - Ch)))
    w2p = jnp.pad(w2, ((0, Chp - Ch), (0, Cp - C))).astype(jnp.bfloat16)
    b2p = jnp.pad(b2.astype(jnp.float32), ((0, 0), (0, Cp - C)))
    t1 = _conv1d_toeplitz(ca1_w, Cp)
    t2 = _conv1d_toeplitz(ca2_w, Cp)
    t2 = jnp.where(jnp.arange(Cp)[:, None] < C, t2, 0.0)
    ca1b = jnp.asarray(ca1_b, jnp.float32).reshape(1, 1)
    ca2b = jnp.asarray(ca2_b, jnp.float32).reshape(1, 1)

    # Scoped-VMEM limit sized from physical capacity (defaults are 16/32 MiB,
    # too tight for whole-image blocks at realistic FCVit sizes).
    try:
        vmem_cap = int(pltpu.get_tpu_info().vmem_capacity_bytes)
    except Exception:
        vmem_cap = 64 * 1024 * 1024          # conservative (v7x per-core)
    vmem_limit = int(min(max(vmem_cap - 8 * 1024 * 1024, 32 * 1024 * 1024),
                         100 * 1024 * 1024))

    flops = B * (2 * N * Cp * Chp + 2 * k * k * N * Chp + 2 * N * Chp * Cp
                 + 2 * N * Cp + 4 * Cp * Cp + 8 * N * Cp)
    transcendentals = B * (N * Chp + N * Cp + Cp)
    bytes_accessed = (2 * B * N * Cp                       # x (bf16)
                      + 4 * B * N * Cp                     # out (f32)
                      + 2 * (Cp * Chp + Chp * Cp)          # fc1/fc2 weights (bf16)
                      + 4 * (2 * Cp * Cp + k * k * Chp + 2 * Chp + 2 * Cp + 2))

    def _const_spec(shape):
        # Constant-index weight/bias blocks: single-buffer to reclaim VMEM.
        return pl.BlockSpec(shape, lambda b: (0, 0), pipeline_mode=pl.Buffered(1))

    kernel = functools.partial(channel_mixer_kernel, H=H, W=W, k=k)

    out2 = pl.pallas_call(
        kernel,
        out_shape=jax.ShapeDtypeStruct((B, N, Cp), x.dtype),
        grid=(B,),
        in_specs=[
            pl.BlockSpec((1, N, Cp), lambda b: (b, 0, 0)),      # x (bf16)
            _const_spec((Cp, Chp)),                             # fc1 weight (bf16)
            _const_spec((1, Chp)),                              # fc1 bias
            _const_spec((k * k, Chp)),                          # depthwise taps
            _const_spec((1, Chp)),                              # depthwise bias
            _const_spec((Chp, Cp)),                             # fc2 weight (bf16)
            _const_spec((1, Cp)),                               # fc2 bias
            _const_spec((Cp, Cp)),                              # channel-att conv1 band
            pl.BlockSpec(memory_space=pltpu.MemorySpace.SMEM),  # channel-att conv1 bias
            _const_spec((Cp, Cp)),                              # channel-att conv2 band
            pl.BlockSpec(memory_space=pltpu.MemorySpace.SMEM),  # channel-att conv2 bias
        ],
        out_specs=pl.BlockSpec((1, N, Cp), lambda b: (b, 0, 0)),
        compiler_params=pltpu.CompilerParams(
            dimension_semantics=("parallel",),
            vmem_limit_bytes=vmem_limit),
        cost_estimate=pl.CostEstimate(flops=flops,
                                      transcendentals=transcendentals,
                                      bytes_accessed=bytes_accessed),
    )(x2, w1p, b1p, tapsp, dwbp, w2p, b2p, t1, ca1b, t2, ca2b)

    return out2[..., :C].reshape(B, H, W, C)


def channel_mixer_reference(x, w1, b1, dw_w, dw_b, w2, b2, ca1_w, ca1_b, ca2_w, ca2_b):
    """Pure-JAX f32 reference with identical semantics (NHWC)."""
    B, H, W, C = x.shape
    k = dw_w.shape[0]
    p = k // 2

    h0 = jnp.einsum("bhwc,cd->bhwd", x, w1) + b1
    hp = jnp.pad(h0, ((0, 0), (p, p), (p, p), (0, 0)))
    dw = jnp.zeros_like(h0)
    for dy in range(k):
        for dx in range(k):
            dw = dw + hp[:, dy:dy + H, dx:dx + W, :] * dw_w[dy, dx]
    dw = dw + dw_b
    h1 = dw * jax.nn.sigmoid(dw)
    y = jnp.einsum("bhwd,dc->bhwc", h1, w2) + b2

    def conv1d_same(v, w):
        kk = w.shape[0]
        pp = kk // 2
        vp = jnp.pad(v, ((0, 0), (pp, pp)))
        o = jnp.zeros_like(v)
        for t in range(kk):
            o = o + w[t] * vp[:, t:t + v.shape[1]]
        return o

    a = y * jax.nn.sigmoid(y)
    pooled = a.mean(axis=(1, 2))                         # (B, C)
    g = conv1d_same(pooled, ca1_w) + ca1_b
    g = g * jax.nn.sigmoid(g)
    g = conv1d_same(g, ca2_w) + ca2_b
    return y + g[:, None, None, :]


if __name__ == "__main__":
    # dim=32, hidden_dim defaults to dim; depthwise k=3; channel-att sizes 3 & 5.
    B, H, W, C = 2, 16, 16, 32
    Ch = C
    K = 3      # params['channel_mixer']['DWconv_size']
    K1 = 3     # params['channel_att']['size_1']
    K2 = 5     # params['channel_att']['size_2']

    key = jax.random.PRNGKey(0)
    ks = jax.random.split(key, 11)

    x = jax.random.normal(ks[0], (B, H, W, C), dtype=jnp.float32)

    # Parameters, re-laid-out from the PyTorch shapes for NHWC / matmul use.
    w1 = 0.1 * jax.random.normal(ks[1], (C, Ch), dtype=jnp.float32)      # torch (Ch,C,1,1) -> (C,Ch)
    b1 = 0.1 * jax.random.normal(ks[2], (1, Ch), dtype=jnp.float32)
    dw_w = 0.1 * jax.random.normal(ks[3], (K, K, Ch), dtype=jnp.float32) # torch (Ch,1,K,K) -> (K,K,Ch)
    dw_b = 0.1 * jax.random.normal(ks[4], (1, Ch), dtype=jnp.float32)
    w2 = 0.1 * jax.random.normal(ks[5], (Ch, C), dtype=jnp.float32)      # torch (C,Ch,1,1) -> (Ch,C)
    b2 = 0.1 * jax.random.normal(ks[6], (1, C), dtype=jnp.float32)
    ca1_w = 0.1 * jax.random.normal(ks[7], (K1,), dtype=jnp.float32)     # torch Conv1d (1,1,K1) -> (K1,)
    ca1_b = 0.1 * jax.random.normal(ks[8], (), dtype=jnp.float32)
    ca2_w = 0.1 * jax.random.normal(ks[9], (K2,), dtype=jnp.float32)     # torch Conv1d (1,1,K2) -> (K2,)
    ca2_b = 0.1 * jax.random.normal(ks[10], (), dtype=jnp.float32)

    out = channel_mixer(x, w1, b1, dw_w, dw_b, w2, b2, ca1_w, ca1_b, ca2_w, ca2_b)
    out = jax.block_until_ready(out)

    ref = channel_mixer_reference(x, w1, b1, dw_w, dw_b, w2, b2,
                                  ca1_w, ca1_b, ca2_w, ca2_b)
    ref = jax.block_until_ready(ref)

    assert out.shape == (B, H, W, C)
    # Tolerance covers the bf16 matmul operands (x, fc1/fc2 weights, fc2
    # activations) vs the f32 reference; structural bugs would be >>0.1.
    assert jnp.allclose(out, ref, atol=2e-2, rtol=2e-2), (
        f"mismatch vs reference: max abs err = {jnp.max(jnp.abs(out - ref))}")

    print("KERNEL_OK")
</pallas_src>

<mosaic_0001>
module attributes {stable_mosaic.version = 11 : i64} {
  func.func @channel_mixer_kernel(%arg0: i32, %arg1: memref<1x256x128xbf16, #tpu.memory_space<vmem>>, %arg2: memref<128x128xbf16, #tpu.memory_space<vmem>>, %arg3: memref<1x128xf32, #tpu.memory_space<vmem>>, %arg4: memref<9x128xf32, #tpu.memory_space<vmem>>, %arg5: memref<1x128xf32, #tpu.memory_space<vmem>>, %arg6: memref<128x128xbf16, #tpu.memory_space<vmem>>, %arg7: memref<1x128xf32, #tpu.memory_space<vmem>>, %arg8: memref<128x128xf32, #tpu.memory_space<vmem>>, %arg9: memref<1x1xf32, #tpu.memory_space<smem>>, %arg10: memref<128x128xf32, #tpu.memory_space<vmem>>, %arg11: memref<1x1xf32, #tpu.memory_space<smem>>, %arg12: memref<1x256x128xf32, #tpu.memory_space<vmem>>) attributes {dimension_semantics = [#tpu.dimension_semantics<parallel>], iteration_bounds = array<i64: 2>, scalar_prefetch = 0 : i64, scratch_operands = 0 : i64, tpu.core_type = #tpu.core_type<tc>, window_params = [{transform_indices = @transform_0, window_bounds = array<i64: 1, 256, 128>}, {pipeline_mode = #tpu.pipeline_mode<synchronous>, transform_indices = @transform_1, window_bounds = array<i64: 128, 128>}, {pipeline_mode = #tpu.pipeline_mode<synchronous>, transform_indices = @transform_2, window_bounds = array<i64: 1, 128>}, {pipeline_mode = #tpu.pipeline_mode<synchronous>, transform_indices = @transform_3, window_bounds = array<i64: 9, 128>}, {pipeline_mode = #tpu.pipeline_mode<synchronous>, transform_indices = @transform_4, window_bounds = array<i64: 1, 128>}, {pipeline_mode = #tpu.pipeline_mode<synchronous>, transform_indices = @transform_5, window_bounds = array<i64: 128, 128>}, {pipeline_mode = #tpu.pipeline_mode<synchronous>, transform_indices = @transform_6, window_bounds = array<i64: 1, 128>}, {pipeline_mode = #tpu.pipeline_mode<synchronous>, transform_indices = @transform_7, window_bounds = array<i64: 128, 128>}, {transform_indices = @transform_8, window_bounds = array<i64: 1, 1>}, {pipeline_mode = #tpu.pipeline_mode<synchronous>, transform_indices = @transform_9, window_bounds = array<i64: 128, 128>}, {transform_indices = @transform_10, window_bounds = array<i64: 1, 1>}, {transform_indices = @transform_11, window_bounds = array<i64: 1, 256, 128>}]} {
    %c0 = arith.constant 0 : index
    %c0_0 = arith.constant 0 : index
    %c0_1 = arith.constant 0 : index
    %0 = vector.load %arg1[%c0, %c0_0, %c0_1] : memref<1x256x128xbf16, #tpu.memory_space<vmem>>, vector<1x256x128xbf16>
    %1 = vector.shape_cast %0 : vector<1x256x128xbf16> to vector<256x128xbf16>
    %c0_2 = arith.constant 0 : index
    %c0_3 = arith.constant 0 : index
    %2 = vector.load %arg2[%c0_2, %c0_3] : memref<128x128xbf16, #tpu.memory_space<vmem>>, vector<128x128xbf16>
    %cst = arith.constant dense<0.000000e+00> : vector<256x128xf32>
    %3 = tpu.matmul %1, %2, %cst {dimension_numbers = #tpu.dot_dimension_numbers<[1], [0], [0], [1], [0, 0, 1, 1], [], []>} : vector<256x128xbf16>, vector<128x128xbf16>, vector<256x128xf32> -> vector<256x128xf32>
    %c0_4 = arith.constant 0 : index
    %c0_5 = arith.constant 0 : index
    %4 = vector.load %arg3[%c0_4, %c0_5] : memref<1x128xf32, #tpu.memory_space<vmem>>, vector<1x128xf32>
    %5 = vector.broadcast %4 : vector<1x128xf32> to vector<256x128xf32>
    %6 = arith.addf %3, %5 : vector<256x128xf32>
    %c0_6 = arith.constant 0 : index
    %c0_7 = arith.constant 0 : index
    %7 = vector.load %arg4[%c0_6, %c0_7] : memref<9x128xf32, #tpu.memory_space<vmem>>, vector<9x128xf32>
    %8 = tpu.iota {dimensions = array<i32: 0>} : vector<256x128xi32>
    %c15_i32 = arith.constant 15 : i32
    %9 = vector.broadcast %c15_i32 : i32 to vector<256x128xi32>
    %10 = arith.andi %8, %9 : vector<256x128xi32>
    %c16_i32 = arith.constant 16 : i32
    %11 = vector.broadcast %c16_i32 : i32 to vector<256x128xi32>
    %12 = arith.cmpi sge, %8, %11 : vector<256x128xi32>
    %c240_i32 = arith.constant 240 : i32
    %13 = vector.broadcast %c240_i32 : i32 to vector<256x128xi32>
    %14 = arith.cmpi slt, %8, %13 : vector<256x128xi32>
    %c1_i32 = arith.constant 1 : i32
    %15 = vector.broadcast %c1_i32 : i32 to vector<256x128xi32>
    %16 = arith.cmpi sge, %10, %15 : vector<256x128xi32>
    %c15_i32_8 = arith.constant 15 : i32
    %17 = vector.broadcast %c15_i32_8 : i32 to vector<256x128xi32>
    %18 = arith.cmpi slt, %10, %17 : vector<256x128xi32>
    %cst_9 = arith.constant 0.000000e+00 : f32
    %19 = vector.broadcast %cst_9 : f32 to vector<256x128xf32>
    %c17_i32 = arith.constant 17 : i32
    %20 = tpu.dynamic_rotate %6 by %c17_i32 dim 0 : vector<256x128xf32>, i32 -> vector<256x128xf32>
    %21 = arith.andi %12, %16 : vector<256x128xi1>
    %cst_10 = arith.constant 0.000000e+00 : f32
    %22 = vector.broadcast %cst_10 : f32 to vector<256x128xf32>
    %23 = arith.select %21, %20, %22 : vector<256x128xi1>, vector<256x128xf32>
    %24 = vector.extract_strided_slice %7 {offsets = [0, 0], sizes = [1, 128], strides = [1, 1]} : vector<9x128xf32> to vector<1x128xf32>
    %25 = vector.shape_cast %24 : vector<1x128xf32> to vector<128xf32>
    %26 = vector.shape_cast %25 : vector<128xf32> to vector<1x128xf32>
    %27 = vector.broadcast %26 : vector<1x128xf32> to vector<256x128xf32>
    %28 = arith.mulf %23, %27 : vector<256x128xf32>
    %29 = arith.addf %19, %28 : vector<256x128xf32>
    %c16_i32_11 = arith.constant 16 : i32
    %30 = tpu.dynamic_rotate %6 by %c16_i32_11 dim 0 : vector<256x128xf32>, i32 -> vector<256x128xf32>
    %cst_12 = arith.constant 0.000000e+00 : f32
    %31 = vector.broadcast %cst_12 : f32 to vector<256x128xf32>
    %32 = arith.select %12, %30, %31 : vector<256x128xi1>, vector<256x128xf32>
    %33 = vector.extract_strided_slice %7 {offsets = [1, 0], sizes = [1, 128], strides = [1, 1]} : vector<9x128xf32> to vector<1x128xf32>
    %34 = vector.shape_cast %33 : vector<1x128xf32> to vector<128xf32>
    %35 = vector.shape_cast %34 : vector<128xf32> to vector<1x128xf32>
    %36 = vector.broadcast %35 : vector<1x128xf32> to vector<256x128xf32>
    %37 = arith.mulf %32, %36 : vector<256x128xf32>
    %38 = arith.addf %29, %37 : vector<256x128xf32>
    %c15_i32_13 = arith.constant 15 : i32
    %39 = tpu.dynamic_rotate %6 by %c15_i32_13 dim 0 : vector<256x128xf32>, i32 -> vector<256x128xf32>
    %40 = arith.andi %12, %18 : vector<256x128xi1>
    %cst_14 = arith.constant 0.000000e+00 : f32
    %41 = vector.broadcast %cst_14 : f32 to vector<256x128xf32>
    %42 = arith.select %40, %39, %41 : vector<256x128xi1>, vector<256x128xf32>
    %43 = vector.extract_strided_slice %7 {offsets = [2, 0], sizes = [1, 128], strides = [1, 1]} : vector<9x128xf32> to vector<1x128xf32>
    %44 = vector.shape_cast %43 : vector<1x128xf32> to vector<128xf32>
    %45 = vector.shape_cast %44 : vector<128xf32> to vector<1x128xf32>
    %46 = vector.broadcast %45 : vector<1x128xf32> to vector<256x128xf32>
    %47 = arith.mulf %42, %46 : vector<256x128xf32>
    %48 = arith.addf %38, %47 : vector<256x128xf32>
    %c1_i32_15 = arith.constant 1 : i32
    %49 = tpu.dynamic_rotate %6 by %c1_i32_15 dim 0 : vector<256x128xf32>, i32 -> vector<256x128xf32>
    %cst_16 = arith.constant 0.000000e+00 : f32
    %50 = vector.broadcast %cst_16 : f32 to vector<256x128xf32>
    %51 = arith.select %16, %49, %50 : vector<256x128xi1>, vector<256x128xf32>
    %52 = vector.extract_strided_slice %7 {offsets = [3, 0], sizes = [1, 128], strides = [1, 1]} : vector<9x128xf32> to vector<1x128xf32>
    %53 = vector.shape_cast %52 : vector<1x128xf32> to vector<128xf32>
    %54 = vector.shape_cast %53 : vector<128xf32> to vector<1x128xf32>
    %55 = vector.broadcast %54 : vector<1x128xf32> to vector<256x128xf32>
    %56 = arith.mulf %51, %55 : vector<256x128xf32>
    %57 = arith.addf %48, %56 : vector<256x128xf32>
    %58 = vector.extract_strided_slice %7 {offsets = [4, 0], sizes = [1, 128], strides = [1, 1]} : vector<9x128xf32> to vector<1x128xf32>
    %59 = vector.shape_cast %58 : vector<1x128xf32> to vector<128xf32>
    %60 = vector.shape_cast %59 : vector<128xf32> to vector<1x128xf32>
    %61 = vector.broadcast %60 : vector<1x128xf32> to vector<256x128xf32>
    %62 = arith.mulf %6, %61 : vector<256x128xf32>
    %63 = arith.addf %57, %62 : vector<256x128xf32>
    %c255_i32 = arith.constant 255 : i32
    %64 = tpu.dynamic_rotate %6 by %c255_i32 dim 0 : vector<256x128xf32>, i32 -> vector<256x128xf32>
    %cst_17 = arith.constant 0.000000e+00 : f32
    %65 = vector.broadcast %cst_17 : f32 to vector<256x128xf32>
    %66 = arith.select %18, %64, %65 : vector<256x128xi1>, vector<256x128xf32>
    %67 = vector.extract_strided_slice %7 {offsets = [5, 0], sizes = [1, 128], strides = [1, 1]} : vector<9x128xf32> to vector<1x128xf32>
    %68 = vector.shape_cast %67 : vector<1x128xf32> to vector<128xf32>
    %69 = vector.shape_cast %68 : vector<128xf32> to vector<1x128xf32>
    %70 = vector.broadcast %69 : vector<1x128xf32> to vector<256x128xf32>
    %71 = arith.mulf %66, %70 : vector<256x128xf32>
    %72 = arith.addf %63, %71 : vector<256x128xf32>
    %c241_i32 = arith.constant 241 : i32
    %73 = tpu.dynamic_rotate %6 by %c241_i32 dim 0 : vector<256x128xf32>, i32 -> vector<256x128xf32>
    %74 = arith.andi %14, %16 : vector<256x128xi1>
    %cst_18 = arith.constant 0.000000e+00 : f32
    %75 = vector.broadcast %cst_18 : f32 to vector<256x128xf32>
    %76 = arith.select %74, %73, %75 : vector<256x128xi1>, vector<256x128xf32>
    %77 = vector.extract_strided_slice %7 {offsets = [6, 0], sizes = [1, 128], strides = [1, 1]} : vector<9x128xf32> to vector<1x128xf32>
    %78 = vector.shape_cast %77 : vector<1x128xf32> to vector<128xf32>
    %79 = vector.shape_cast %78 : vector<128xf32> to vector<1x128xf32>
    %80 = vector.broadcast %79 : vector<1x128xf32> to vector<256x128xf32>
    %81 = arith.mulf %76, %80 : vector<256x128xf32>
    %82 = arith.addf %72, %81 : vector<256x128xf32>
    %c240_i32_19 = arith.constant 240 : i32
    %83 = tpu.dynamic_rotate %6 by %c240_i32_19 dim 0 : vector<256x128xf32>, i32 -> vector<256x128xf32>
    %cst_20 = arith.constant 0.000000e+00 : f32
    %84 = vector.broadcast %cst_20 : f32 to vector<256x128xf32>
    %85 = arith.select %14, %83, %84 : vector<256x128xi1>, vector<256x128xf32>
    %86 = vector.extract_strided_slice %7 {offsets = [7, 0], sizes = [1, 128], strides = [1, 1]} : vector<9x128xf32> to vector<1x128xf32>
    %87 = vector.shape_cast %86 : vector<1x128xf32> to vector<128xf32>
    %88 = vector.shape_cast %87 : vector<128xf32> to vector<1x128xf32>
    %89 = vector.broadcast %88 : vector<1x128xf32> to vector<256x128xf32>
    %90 = arith.mulf %85, %89 : vector<256x128xf32>
    %91 = arith.addf %82, %90 : vector<256x128xf32>
    %c239_i32 = arith.constant 239 : i32
    %92 = tpu.dynamic_rotate %6 by %c239_i32 dim 0 : vector<256x128xf32>, i32 -> vector<256x128xf32>
    %93 = arith.andi %14, %18 : vector<256x128xi1>
    %cst_21 = arith.constant 0.000000e+00 : f32
    %94 = vector.broadcast %cst_21 : f32 to vector<256x128xf32>
    %95 = arith.select %93, %92, %94 : vector<256x128xi1>, vector<256x128xf32>
    %96 = vector.extract_strided_slice %7 {offsets = [8, 0], sizes = [1, 128], strides = [1, 1]} : vector<9x128xf32> to vector<1x128xf32>
    %97 = vector.shape_cast %96 : vector<1x128xf32> to vector<128xf32>
    %98 = vector.shape_cast %97 : vector<128xf32> to vector<1x128xf32>
    %99 = vector.broadcast %98 : vector<1x128xf32> to vector<256x128xf32>
    %100 = arith.mulf %95, %99 : vector<256x128xf32>
    %101 = arith.addf %91, %100 : vector<256x128xf32>
    %c0_22 = arith.constant 0 : index
    %c0_23 = arith.constant 0 : index
    %102 = vector.load %arg5[%c0_22, %c0_23] : memref<1x128xf32, #tpu.memory_space<vmem>>, vector<1x128xf32>
    %103 = vector.broadcast %102 : vector<1x128xf32> to vector<256x128xf32>
    %104 = arith.addf %101, %103 : vector<256x128xf32>
    %105 = arith.negf %104 : vector<256x128xf32>
    %106 = math.exp %105 : vector<256x128xf32>
    %cst_24 = arith.constant 1.000000e+00 : f32
    %107 = vector.broadcast %cst_24 : f32 to vector<256x128xf32>
    %108 = arith.addf %107, %106 : vector<256x128xf32>
    %109 = arith.divf %107, %108 : vector<256x128xf32>
    %110 = arith.mulf %104, %109 : vector<256x128xf32>
    %111 = arith.truncf %110 : vector<256x128xf32> to vector<256x128xbf16>
    %c0_25 = arith.constant 0 : index
    %c0_26 = arith.constant 0 : index
    %112 = vector.load %arg6[%c0_25, %c0_26] : memref<128x128xbf16, #tpu.memory_space<vmem>>, vector<128x128xbf16>
    %cst_27 = arith.constant dense<0.000000e+00> : vector<256x128xf32>
    %113 = tpu.matmul %111, %112, %cst_27 {dimension_numbers = #tpu.dot_dimension_numbers<[1], [0], [0], [1], [0, 0, 1, 1], [], []>} : vector<256x128xbf16>, vector<128x128xbf16>, vector<256x128xf32> -> vector<256x128xf32>
    %c0_28 = arith.constant 0 : index
    %c0_29 = arith.constant 0 : index
    %114 = vector.load %arg7[%c0_28, %c0_29] : memref<1x128xf32, #tpu.memory_space<vmem>>, vector<1x128xf32>
    %115 = vector.broadcast %114 : vector<1x128xf32> to vector<256x128xf32>
    %116 = arith.addf %113, %115 : vector<256x128xf32>
    %117 = arith.negf %116 : vector<256x128xf32>
    %118 = math.exp %117 : vector<256x128xf32>
    %cst_30 = arith.constant 1.000000e+00 : f32
    %119 = vector.broadcast %cst_30 : f32 to vector<256x128xf32>
    %120 = arith.addf %119, %118 : vector<256x128xf32>
    %121 = arith.divf %119, %120 : vector<256x128xf32>
    %122 = arith.mulf %116, %121 : vector<256x128xf32>
    %cst_31 = arith.constant 1.000000e+00 : f32
    %123 = vector.broadcast %cst_31 : f32 to vector<1x256xf32>
    %cst_32 = arith.constant dense<0.000000e+00> : vector<1x128xf32>
    %124 = tpu.matmul %123, %122, %cst_32 {dimension_numbers = #tpu.dot_dimension_numbers<[1], [0], [0], [1], [0, 0, 1, 1], [], []>} : vector<1x256xf32>, vector<256x128xf32>, vector<1x128xf32> -> vector<1x128xf32>
    %cst_33 = arith.constant 3.906250e-03 : f32
    %125 = vector.broadcast %cst_33 : f32 to vector<1x128xf32>
    %126 = arith.mulf %124, %125 : vector<1x128xf32>
    %c0_34 = arith.constant 0 : index
    %c0_35 = arith.constant 0 : index
    %127 = vector.load %arg8[%c0_34, %c0_35] : memref<128x128xf32, #tpu.memory_space<vmem>>, vector<128x128xf32>
    %cst_36 = arith.constant dense<0.000000e+00> : vector<1x128xf32>
    %128 = tpu.matmul %126, %127, %cst_36 {dimension_numbers = #tpu.dot_dimension_numbers<[1], [0], [0], [1], [0, 0, 1, 1], [], []>} : vector<1x128xf32>, vector<128x128xf32>, vector<1x128xf32> -> vector<1x128xf32>
    %c0_37 = arith.constant 0 : index
    %c0_38 = arith.constant 0 : index
    %129 = memref.load %arg9[%c0_37, %c0_38] : memref<1x1xf32, #tpu.memory_space<smem>>
    %130 = vector.broadcast %129 : f32 to vector<1x128xf32>
    %131 = arith.addf %128, %130 : vector<1x128xf32>
    %132 = arith.negf %131 : vector<1x128xf32>
    %133 = math.exp %132 : vector<1x128xf32>
    %cst_39 = arith.constant 1.000000e+00 : f32
    %134 = vector.broadcast %cst_39 : f32 to vector<1x128xf32>
    %135 = arith.addf %134, %133 : vector<1x128xf32>
    %136 = arith.divf %134, %135 : vector<1x128xf32>
    %137 = arith.mulf %131, %136 : vector<1x128xf32>
    %c0_40 = arith.constant 0 : index
    %c0_41 = arith.constant 0 : index
    %138 = vector.load %arg10[%c0_40, %c0_41] : memref<128x128xf32, #tpu.memory_space<vmem>>, vector<128x128xf32>
    %cst_42 = arith.constant dense<0.000000e+00> : vector<1x128xf32>
    %139 = tpu.matmul %137, %138, %cst_42 {dimension_numbers = #tpu.dot_dimension_numbers<[1], [0], [0], [1], [0, 0, 1, 1], [], []>} : vector<1x128xf32>, vector<128x128xf32>, vector<1x128xf32> -> vector<1x128xf32>
    %c0_43 = arith.constant 0 : index
    %c0_44 = arith.constant 0 : index
    %140 = memref.load %arg11[%c0_43, %c0_44] : memref<1x1xf32, #tpu.memory_space<smem>>
    %141 = vector.broadcast %140 : f32 to vector<1x128xf32>
    %142 = arith.addf %139, %141 : vector<1x128xf32>
    %143 = vector.broadcast %142 : vector<1x128xf32> to vector<256x128xf32>
    %144 = arith.addf %116, %143 : vector<256x128xf32>
    %c0_45 = arith.constant 0 : index
    %c0_46 = arith.constant 0 : index
    %c0_47 = arith.constant 0 : index
    %145 = vector.load %arg12[%c0_45, %c0_46, %c0_47] : memref<1x256x128xf32, #tpu.memory_space<vmem>>, vector<1x256x128xf32>
    %146 = vector.shape_cast %145 : vector<1x256x128xf32> to vector<256x128xf32>
    %147 = vector.shape_cast %144 : vector<256x128xf32> to vector<1x256x128xf32>
    tpu.vector_store %arg12[%c0_45, %c0_46, %c0_47], %147 {strides = array<i32>} : memref<1x256x128xf32, #tpu.memory_space<vmem>>, vector<1x256x128xf32>,
    return
  }
  func.func @transform_0(%arg0: i32) -> (i32, i32, i32) {
    %c0_i32 = arith.constant 0 : i32
    %c0_i32_0 = arith.constant 0 : i32
    %c0_i32_1 = arith.constant 0 : i32
    return %arg0, %c0_i32, %c0_i32_0 : i32, i32, i32
  }
  func.func @transform_1(%arg0: i32) -> (i32, i32) {
    %c0_i32 = arith.constant 0 : i32
    %c0_i32_0 = arith.constant 0 : i32
    %c0_i32_1 = arith.constant 0 : i32
    return %c0_i32, %c0_i32_0 : i32, i32
  }
  func.func @transform_2(%arg0: i32) -> (i32, i32) {
    %c0_i32 = arith.constant 0 : i32
    %c0_i32_0 = arith.constant 0 : i32
    %c0_i32_1 = arith.constant 0 : i32
    return %c0_i32, %c0_i32_0 : i32, i32
  }
  func.func @transform_3(%arg0: i32) -> (i32, i32) {
    %c0_i32 = arith.constant 0 : i32
    %c0_i32_0 = arith.constant 0 : i32
    %c0_i32_1 = arith.constant 0 : i32
    return %c0_i32, %c0_i32_0 : i32, i32
  }
  func.func @transform_4(%arg0: i32) -> (i32, i32) {
    %c0_i32 = arith.constant 0 : i32
    %c0_i32_0 = arith.constant 0 : i32
    %c0_i32_1 = arith.constant 0 : i32
    return %c0_i32, %c0_i32_0 : i32, i32
  }
  func.func @transform_5(%arg0: i32) -> (i32, i32) {
    %c0_i32 = arith.constant 0 : i32
    %c0_i32_0 = arith.constant 0 : i32
    %c0_i32_1 = arith.constant 0 : i32
    return %c0_i32, %c0_i32_0 : i32, i32
  }
  func.func @transform_6(%arg0: i32) -> (i32, i32) {
    %c0_i32 = arith.constant 0 : i32
    %c0_i32_0 = arith.constant 0 : i32
    %c0_i32_1 = arith.constant 0 : i32
    return %c0_i32, %c0_i32_0 : i32, i32
  }
  func.func @transform_7(%arg0: i32) -> (i32, i32) {
    %c0_i32 = arith.constant 0 : i32
    %c0_i32_0 = arith.constant 0 : i32
    %c0_i32_1 = arith.constant 0 : i32
    return %c0_i32, %c0_i32_0 : i32, i32
  }
  func.func @transform_8(%arg0: i32) -> (i32, i32) {
    %c0_i32 = arith.constant 0 : i32
    %c0_i32_0 = arith.constant 0 : i32
    %c0_i32_1 = arith.constant 0 : i32
    return %c0_i32, %c0_i32_0 : i32, i32
  }
  func.func @transform_9(%arg0: i32) -> (i32, i32) {
    %c0_i32 = arith.constant 0 : i32
    %c0_i32_0 = arith.constant 0 : i32
    %c0_i32_1 = arith.constant 0 : i32
    return %c0_i32, %c0_i32_0 : i32, i32
  }
  func.func @transform_10(%arg0: i32) -> (i32, i32) {
    %c0_i32 = arith.constant 0 : i32
    %c0_i32_0 = arith.constant 0 : i32
    %c0_i32_1 = arith.constant 0 : i32
    return %c0_i32, %c0_i32_0 : i32, i32
  }
  func.func @transform_11(%arg0: i32) -> (i32, i32, i32) {
    %c0_i32 = arith.constant 0 : i32
    %c0_i32_0 = arith.constant 0 : i32
    %c0_i32_1 = arith.constant 0 : i32
    return %arg0, %c0_i32, %c0_i32_0 : i32, i32, i32
  }
}

</mosaic_0001>

<llo_original>
// kernel: tpu_custom_call.1
$region0: #{tpu_custom_call.1}
  #allocation0 [shape = 'u32[]', space=smem, size = 0x4, offset = 0x4, fixed_abs, tag = 'smem constant byte address 0x4 - core index']
  #allocation1 [shape = 'u32[144,128]{1,0:T(1,128)}', space=vmem, size = 0x12000, scoped, tag = 'internal scratch']
  #allocation2 [shape = 'f32[1,1]{1,0:T(1,128)S(6)}', space=smem, size = 0x200, scoped, tag = 'scoped memory for tpu_custom_call.1']
  #allocation3 [shape = 'f32[1,1]{1,0:T(1,128)S(6)}', space=smem, size = 0x200, scoped, tag = 'scoped memory for tpu_custom_call.1']
  %s0 = inlined_call_operand.hbm [shape: bf16[2,256,128], index: 0, kind: input, shape index: {}]
  %s1 = inlined_call_operand.hbm [shape: bf16[128,128], index: 1, kind: input, shape index: {}]
  %s2 = inlined_call_operand.vmem [shape: f32[1,128], index: 2, kind: input, shape index: {}]
  %s3 = inlined_call_operand.vmem [shape: f32[9,128], index: 3, kind: input, shape index: {}]
  %s4 = inlined_call_operand.vmem [shape: f32[1,128], index: 4, kind: input, shape index: {}]
  %s5 = inlined_call_operand.hbm [shape: bf16[128,128], index: 5, kind: input, shape index: {}]
  %s6 = inlined_call_operand.vmem [shape: f32[1,128], index: 6, kind: input, shape index: {}]
  %s7 = inlined_call_operand.hbm [shape: f32[128,128], index: 7, kind: input, shape index: {}]
  %s8 = inlined_call_operand.<no memory space> [shape: f32[1,1], index: 8, kind: input, shape index: {}]
  %s9 = inlined_call_operand.hbm [shape: f32[128,128], index: 9, kind: input, shape index: {}]
  %s10 = inlined_call_operand.<no memory space> [shape: f32[1,1], index: 10, kind: input, shape index: {}]
  %s11 = inlined_call_operand.hbm [shape: f32[2,256,128], index: 11, kind: output, shape index: {}]
  %s12 = sld [smem:[#allocation0]]
  $region97: #{tpu_custom_call.1} parent=0
    _
  %s14 = ssub.s32 1, %s12
  %s15 = scalar_select 0, %s14, %s12
  %16 = sst [smem:[#allocation2]] %s8
  %17 = sst [smem:[#allocation3]] %s10
  $region1: #{tpu_custom_call.1} parent=0
    #allocation4 [shape = 'u8[131072]{0}', space=vmem, size = 0x20000, scoped, tag = 'input window, operand 0']
    #allocation5 [shape = 's32[2]{0}', space=sflag, size = 0x8, scoped, tag = 'scoped memory for tpu_custom_call.1']
    #allocation6 [shape = 's32[2]{0}', space=sflag, size = 0x8, scoped, tag = 'scoped memory for tpu_custom_call.1']
    #allocation7 [shape = 'u8[32768]{0}', space=vmem, size = 0x8000, scoped, tag = 'input window, operand 1, single buffered']
    #allocation8 [shape = 's32[1]{0}', space=sflag, size = 0x4, scoped, tag = 'scoped memory for tpu_custom_call.1']
    #allocation9 [shape = 'u8[32768]{0}', space=vmem, size = 0x8000, scoped, tag = 'input window, operand 5, single buffered']
    #allocation10 [shape = 'u8[65536]{0}', space=vmem, size = 0x10000, scoped, tag = 'input window, operand 7, single buffered']
    #allocation11 [shape = 's32[1]{0}', space=sflag, size = 0x4, scoped, tag = 'scoped memory for tpu_custom_call.1']
    #allocation12 [shape = 'u8[65536]{0}', space=vmem, size = 0x10000, scoped, tag = 'input window, operand 9, single buffered']
    #allocation13 [shape = 'u8[262144]{0}', space=vmem, size = 0x40000, scoped, tag = 'output window, operand 0']
    %18 = vsyncpa [#allocation5], 0
    %s19 = scalar_lea.sflag [#allocation5], 1
    %20 = vsyncpa %s19, 0
    %21 = vsyncpa [#allocation8], 0
    %22 = vsyncpa [#allocation11], 0
    %23 = vsyncpa [#allocation6], 0
    %s24 = scalar_lea.sflag [#allocation6], 1
    %25 = vsyncpa %s24, 0
    loop: start=0, step=1, limit=4
    $region2: #{tpu_custom_call.1} parent=1 // loop_pre_header
      _
    $region3: #{tpu_custom_call.1} parent=1 // loop_header
      %s27 = sphi 0, %s31
      %p28 = scmp.ge.s32.totalorder %s27, 4
      %s37 = sphi 0, %s39
      %s40 = sphi 0, %s37
      %s41 = sphi 0, %s40
      %s57 = sphi 0, %s41
      %s61 = sphi 0, %s61
      %s63 = sphi 0, %s61
      %s64 = sphi 0, %s63
      %s78 = sphi 0, %s64
      %s82 = sphi 0, %s82
      %s84 = sphi 0, %s82
      %s85 = sphi 0, %s84
      %s99 = sphi 0, %s85
      %s103 = sphi 0, %s103
      %s105 = sphi 0, %s103
      %s106 = sphi 0, %s105
      %s120 = sphi 0, %s106
      %s124 = sphi 0, %s124
      %s126 = sphi 0, %s124
      %s127 = sphi 0, %s126
      %s141 = sphi 0, %s127
      %s145 = sphi 0, %s145
      %s147 = sphi 0, %s145
      %s148 = sphi 0, %s147
      %s162 = sphi 0, %s148
      %s166 = sphi 0, %s166
      %s168 = sphi 0, %s166
      %s169 = sphi 0, %s168
      %s183 = sphi 0, %s169
      %s187 = sphi 0, %s187
      %s189 = sphi 0, %s187
      %s190 = sphi 0, %s189
      %s204 = sphi 0, %s190
      %s208 = sphi 0, %s208
      %s210 = sphi 0, %s208
      %s211 = sphi 0, %s210
      %s225 = sphi 0, %s211
      %s229 = sphi 0, %s229
      %s231 = sphi 0, %s229
      %s232 = sphi 0, %s231
      %s246 = sphi 0, %s232
      %s250 = sphi 0, %s250
      %s252 = sphi 0, %s250
      %s253 = sphi 0, %s252
      %s267 = sphi 0, %s253
      %s273 = sphi 0, %s275
      %s276 = sphi 0, %s273
      %s277 = sphi 0, %s276
      %s293 = sphi 0, %s277
    $region4: #{tpu_custom_call.1} parent=1 // loop_header_branch
      %30 = sbr.rel (%p28) target = $region8
    $region5: #{tpu_custom_call.1} parent=1 // loop_body
      %s32 = ssub.s32 %s27, 1
      %s33 = ssub.s32 %s27, 2
      %s34 = sadd.s32 %s27, 1
      %s35 = ssub.s32 %s27, %s34
      %p36 = scmp.eq.s32.totalorder %s35, 0
      %s38 = sadd.s32 %s37, 1
      %s39 = scalar_select %p36, %s37, %s38
      %p42 = pneg %p36
      %p43 = scmp.eq.s32.totalorder %s27, 1
      %p44 = por %p42, %p43
      %p45 = scmp.ne.s32.totalorder %s37, %s40
      %p46 = scmp.eq.s32.totalorder %s27, 0
      %p47 = por %p45, %p46
      %p48 = scmp.ne.s32.totalorder %s37, %s40
      %p49 = scmp.eq.s32.totalorder %s32, 1
      %p50 = por %p48, %p49
      %p51 = scmp.ne.s32.totalorder %s40, %s41
      %p52 = scmp.eq.s32.totalorder %s32, 0
      %p53 = por %p51, %p52
      %p54 = scmp.ne.s32.totalorder %s40, %s41
      %p55 = scmp.eq.s32.totalorder %s33, 1
      %p56 = por %p54, %p55
      %p58 = scmp.ne.s32.totalorder %s41, %s57
      %p59 = scmp.eq.s32.totalorder %s33, 0
      %p60 = por %p58, %p59
      %s62 = sadd.s32 %s61, 1
      %p65 = scmp.eq.s32.totalorder %s27, 1
      %p66 = scmp.ne.s32.totalorder %s61, %s63
      %p67 = scmp.eq.s32.totalorder %s27, 0
      %p68 = por %p66, %p67
      %p69 = scmp.ne.s32.totalorder %s61, %s63
      %p70 = scmp.eq.s32.totalorder %s32, 1
      %p71 = por %p69, %p70
      %p72 = scmp.ne.s32.totalorder %s63, %s64
      %p73 = scmp.eq.s32.totalorder %s32, 0
      %p74 = por %p72, %p73
      %p75 = scmp.ne.s32.totalorder %s63, %s64
      %p76 = scmp.eq.s32.totalorder %s33, 1
      %p77 = por %p75, %p76
      %p79 = scmp.ne.s32.totalorder %s64, %s78
      %p80 = scmp.eq.s32.totalorder %s33, 0
      %p81 = por %p79, %p80
      %s83 = sadd.s32 %s82, 1
      %p86 = scmp.eq.s32.totalorder %s27, 1
      %p87 = scmp.ne.s32.totalorder %s82, %s84
      %p88 = scmp.eq.s32.totalorder %s27, 0
      %p89 = por %p87, %p88
      %p90 = scmp.ne.s32.totalorder %s82, %s84
      %p91 = scmp.eq.s32.totalorder %s32, 1
      %p92 = por %p90, %p91
      %p93 = scmp.ne.s32.totalorder %s84, %s85
      %p94 = scmp.eq.s32.totalorder %s32, 0
      %p95 = por %p93, %p94
      %p96 = scmp.ne.s32.totalorder %s84, %s85
      %p97 = scmp.eq.s32.totalorder %s33, 1
      %p98 = por %p96, %p97
      %p100 = scmp.ne.s32.totalorder %s85, %s99
      %p101 = scmp.eq.s32.totalorder %s33, 0
      %p102 = por %p100, %p101
      %s104 = sadd.s32 %s103, 1
      %p107 = scmp.eq.s32.totalorder %s27, 1
      %p108 = scmp.ne.s32.totalorder %s103, %s105
      %p109 = scmp.eq.s32.totalorder %s27, 0
      %p110 = por %p108, %p109
      %p111 = scmp.ne.s32.totalorder %s103, %s105
      %p112 = scmp.eq.s32.totalorder %s32, 1
      %p113 = por %p111, %p112
      %p114 = scmp.ne.s32.totalorder %s105, %s106
      %p115 = scmp.eq.s32.totalorder %s32, 0
      %p116 = por %p114, %p115
      %p117 = scmp.ne.s32.totalorder %s105, %s106
      %p118 = scmp.eq.s32.totalorder %s33, 1
      %p119 = por %p117, %p118
      %p121 = scmp.ne.s32.totalorder %s106, %s120
      %p122 = scmp.eq.s32.totalorder %s33, 0
      %p123 = por %p121, %p122
      %s125 = sadd.s32 %s124, 1
      %p128 = scmp.eq.s32.totalorder %s27, 1
      %p129 = scmp.ne.s32.totalorder %s124, %s126
      %p130 = scmp.eq.s32.totalorder %s27, 0
      %p131 = por %p129, %p130
      %p132 = scmp.ne.s32.totalorder %s124, %s126
      %p133 = scmp.eq.s32.totalorder %s32, 1
      %p134 = por %p132, %p133
      %p135 = scmp.ne.s32.totalorder %s126, %s127
      %p136 = scmp.eq.s32.totalorder %s32, 0
      %p137 = por %p135, %p136
      %p138 = scmp.ne.s32.totalorder %s126, %s127
      %p139 = scmp.eq.s32.totalorder %s33, 1
      %p140 = por %p138, %p139
      %p142 = scmp.ne.s32.totalorder %s127, %s141
      %p143 = scmp.eq.s32.totalorder %s33, 0
      %p144 = por %p142, %p143
      %s146 = sadd.s32 %s145, 1
      %p149 = scmp.eq.s32.totalorder %s27, 1
      %p150 = scmp.ne.s32.totalorder %s145, %s147
      %p151 = scmp.eq.s32.totalorder %s27, 0
      %p152 = por %p150, %p151
      %p153 = scmp.ne.s32.totalorder %s145, %s147
      %p154 = scmp.eq.s32.totalorder %s32, 1
      %p155 = por %p153, %p154
      %p156 = scmp.ne.s32.totalorder %s147, %s148
      %p157 = scmp.eq.s32.totalorder %s32, 0
      %p158 = por %p156, %p157
      %p159 = scmp.ne.s32.totalorder %s147, %s148
      %p160 = scmp.eq.s32.totalorder %s33, 1
      %p161 = por %p159, %p160
      %p163 = scmp.ne.s32.totalorder %s148, %s162
      %p164 = scmp.eq.s32.totalorder %s33, 0
      %p165 = por %p163, %p164
      %s167 = sadd.s32 %s166, 1
      %p170 = scmp.eq.s32.totalorder %s27, 1
      %p171 = scmp.ne.s32.totalorder %s166, %s168
      %p172 = scmp.eq.s32.totalorder %s27, 0
      %p173 = por %p171, %p172
      %p174 = scmp.ne.s32.totalorder %s166, %s168
      %p175 = scmp.eq.s32.totalorder %s32, 1
      %p176 = por %p174, %p175
      %p177 = scmp.ne.s32.totalorder %s168, %s169
      %p178 = scmp.eq.s32.totalorder %s32, 0
      %p179 = por %p177, %p178
      %p180 = scmp.ne.s32.totalorder %s168, %s169
      %p181 = scmp.eq.s32.totalorder %s33, 1
      %p182 = por %p180, %p181
      %p184 = scmp.ne.s32.totalorder %s169, %s183
      %p185 = scmp.eq.s32.totalorder %s33, 0
      %p186 = por %p184, %p185
      %s188 = sadd.s32 %s187, 1
      %p191 = scmp.eq.s32.totalorder %s27, 1
      %p192 = scmp.ne.s32.totalorder %s187, %s189
      %p193 = scmp.eq.s32.totalorder %s27, 0
      %p194 = por %p192, %p193
      %p195 = scmp.ne.s32.totalorder %s187, %s189
      %p196 = scmp.eq.s32.totalorder %s32, 1
      %p197 = por %p195, %p196
      %p198 = scmp.ne.s32.totalorder %s189, %s190
      %p199 = scmp.eq.s32.totalorder %s32, 0
      %p200 = por %p198, %p199
      %p201 = scmp.ne.s32.totalorder %s189, %s190
      %p202 = scmp.eq.s32.totalorder %s33, 1
      %p203 = por %p201, %p202
      %p205 = scmp.ne.s32.totalorder %s190, %s204
      %p206 = scmp.eq.s32.totalorder %s33, 0
      %p207 = por %p205, %p206
      %s209 = sadd.s32 %s208, 1
      %p212 = scmp.eq.s32.totalorder %s27, 1
      %p213 = scmp.ne.s32.totalorder %s208, %s210
      %p214 = scmp.eq.s32.totalorder %s27, 0
      %p215 = por %p213, %p214
      %p216 = scmp.ne.s32.totalorder %s208, %s210
      %p217 = scmp.eq.s32.totalorder %s32, 1
      %p218 = por %p216, %p217
      %p219 = scmp.ne.s32.totalorder %s210, %s211
      %p220 = scmp.eq.s32.totalorder %s32, 0
      %p221 = por %p219, %p220
      %p222 = scmp.ne.s32.totalorder %s210, %s211
      %p223 = scmp.eq.s32.totalorder %s33, 1
      %p224 = por %p222, %p223
      %p226 = scmp.ne.s32.totalorder %s211, %s225
      %p227 = scmp.eq.s32.totalorder %s33, 0
      %p228 = por %p226, %p227
      %s230 = sadd.s32 %s229, 1
      %p233 = scmp.eq.s32.totalorder %s27, 1
      %p234 = scmp.ne.s32.totalorder %s229, %s231
      %p235 = scmp.eq.s32.totalorder %s27, 0
      %p236 = por %p234, %p235
      %p237 = scmp.ne.s32.totalorder %s229, %s231
      %p238 = scmp.eq.s32.totalorder %s32, 1
      %p239 = por %p237, %p238
      %p240 = scmp.ne.s32.totalorder %s231, %s232
      %p241 = scmp.eq.s32.totalorder %s32, 0
      %p242 = por %p240, %p241
      %p243 = scmp.ne.s32.totalorder %s231, %s232
      %p244 = scmp.eq.s32.totalorder %s33, 1
      %p245 = por %p243, %p244
      %p247 = scmp.ne.s32.totalorder %s232, %s246
      %p248 = scmp.eq.s32.totalorder %s33, 0
      %p249 = por %p247, %p248
      %s251 = sadd.s32 %s250, 1
      %p254 = scmp.eq.s32.totalorder %s27, 1
      %p255 = scmp.ne.s32.totalorder %s250, %s252
      %p256 = scmp.eq.s32.totalorder %s27, 0
      %p257 = por %p255, %p256
      %p258 = scmp.ne.s32.totalorder %s250, %s252
      %p259 = scmp.eq.s32.totalorder %s32, 1
      %p260 = por %p258, %p259
      %p261 = scmp.ne.s32.totalorder %s252, %s253
      %p262 = scmp.eq.s32.totalorder %s32, 0
      %p263 = por %p261, %p262
      %p264 = scmp.ne.s32.totalorder %s252, %s253
      %p265 = scmp.eq.s32.totalorder %s33, 1
      %p266 = por %p264, %p265
      %p268 = scmp.ne.s32.totalorder %s253, %s267
      %p269 = scmp.eq.s32.totalorder %s33, 0
      %p270 = por %p268, %p269
      %s271 = ssub.s32 %s27, %s34
      %p272 = scmp.eq.s32.totalorder %s271, 0
      %s274 = sadd.s32 %s273, 1
      %s275 = scalar_select %p272, %s273, %s274
      %p278 = pneg %p272
      %p279 = scmp.eq.s32.totalorder %s27, 1
      %p280 = por %p278, %p279
      %p281 = scmp.ne.s32.totalorder %s273, %s276
      %p282 = scmp.eq.s32.totalorder %s27, 0
      %p283 = por %p281, %p282
      %p284 = scmp.ne.s32.totalorder %s273, %s276
      %p285 = scmp.eq.s32.totalorder %s32, 1
      %p286 = por %p284, %p285
      %p287 = scmp.ne.s32.totalorder %s276, %s277
      %p288 = scmp.eq.s32.totalorder %s32, 0
      %p289 = por %p287, %p288
      %p290 = scmp.ne.s32.totalorder %s276, %s277
      %p291 = scmp.eq.s32.totalorder %s33, 1
      %p292 = por %p290, %p291
      %p294 = scmp.ne.s32.totalorder %s277, %s293
      %p295 = scmp.eq.s32.totalorder %s33, 0
      %p296 = por %p294, %p295
      %p297 = scmp.le.s32.totalorder 1, %s27
      %p298 = scmp.lt.s32.totalorder %s27, 3
      %p299 = pnand %p297, %p298
      %p300 = pneg %p299
      // Predicated region
      $region9: #{tpu_custom_call.1} parent=5 // pred_check
        _
      $region10: #{tpu_custom_call.1} parent=5 // pred_check_branch
        %302 = sbr.rel (%p299) target = $region12
      $region11: #{tpu_custom_call.1} parent=5 // pred_region
        %s303 = ssub.s32 %s27, 1
        // Predicated region
        $region13: #{tpu_custom_call.1} parent=11 // pred_check
          %p304 = pneg %p74
        $region14: #{tpu_custom_call.1} parent=11 // pred_check_branch
          %306 = sbr.rel (%p304) target = $region16
        $region15: #{tpu_custom_call.1} parent=11 // pred_region
          %s308 = ssub.s32 1024, 1024
          %309 = vsyncadd [#allocation8], %s308
          %s310 = sshll.u32 [#allocation7], 4
          %s311 = int_to_ptr.vmem [resolvable:$true] %s310
          %316 = dma.hbm_to_vmem [thread:$0]  %s1, 1024, %s311, [#allocation8], 64, 64, 4
        $region16: #{tpu_custom_call.1} parent=11 // pred_fallthru
          _
        // Predicated region
        $region17: #{tpu_custom_call.1} parent=11 // pred_check
          %p317 = pneg %p95
        $region18: #{tpu_custom_call.1} parent=11 // pred_check_branch
          %319 = sbr.rel (%p317) target = $region20
        $region19: #{tpu_custom_call.1} parent=11 // pred_region
          _
        $region20: #{tpu_custom_call.1} parent=11 // pred_fallthru
          _
        // Predicated region
        $region21: #{tpu_custom_call.1} parent=11 // pred_check
          %p320 = pneg %p116
        $region22: #{tpu_custom_call.1} parent=11 // pred_check_branch
          %322 = sbr.rel (%p320) target = $region24
        $region23: #{tpu_custom_call.1} parent=11 // pred_region
          _
        $region24: #{tpu_custom_call.1} parent=11 // pred_fallthru
          _
        // Predicated region
        $region25: #{tpu_custom_call.1} parent=11 // pred_check
          %p323 = pneg %p137
        $region26: #{tpu_custom_call.1} parent=11 // pred_check_branch
          %325 = sbr.rel (%p323) target = $region28
        $region27: #{tpu_custom_call.1} parent=11 // pred_region
          _
        $region28: #{tpu_custom_call.1} parent=11 // pred_fallthru
          _
        // Predicated region
        $region29: #{tpu_custom_call.1} parent=11 // pred_check
          %p326 = pneg %p158
        $region30: #{tpu_custom_call.1} parent=11 // pred_check_branch
          %328 = sbr.rel (%p326) target = $region32
        $region31: #{tpu_custom_call.1} parent=11 // pred_region
          %s330 = ssub.s32 1024, 1024
          %331 = vsyncadd [#allocation8], %s330
          %s332 = sshll.u32 [#allocation9], 4
          %s333 = int_to_ptr.vmem [resolvable:$true] %s332
          %338 = dma.hbm_to_vmem [thread:$0]  %s5, 1024, %s333, [#allocation8], 64, 64, 4
        $region32: #{tpu_custom_call.1} parent=11 // pred_fallthru
          _
        // Predicated region
        $region33: #{tpu_custom_call.1} parent=11 // pred_check
          %p339 = pneg %p179
        $region34: #{tpu_custom_call.1} parent=11 // pred_check_branch
          %341 = sbr.rel (%p339) target = $region36
        $region35: #{tpu_custom_call.1} parent=11 // pred_region
          _
        $region36: #{tpu_custom_call.1} parent=11 // pred_fallthru
          _
        // Predicated region
        $region37: #{tpu_custom_call.1} parent=11 // pred_check
          %p342 = pneg %p200
        $region38: #{tpu_custom_call.1} parent=11 // pred_check_branch
          %344 = sbr.rel (%p342) target = $region40
        $region39: #{tpu_custom_call.1} parent=11 // pred_region
          %s346 = ssub.s32 2048, 2048
          %347 = vsyncadd [#allocation11], %s346
          %s348 = sshll.u32 [#allocation10], 4
          %s349 = int_to_ptr.vmem [resolvable:$true] %s348
          %354 = dma.hbm_to_vmem [thread:$0]  %s7, 2048, %s349, [#allocation11], 128, 128, 8
        $region40: #{tpu_custom_call.1} parent=11 // pred_fallthru
          _
        // Predicated region
        $region41: #{tpu_custom_call.1} parent=11 // pred_check
          %p355 = pneg %p221
        $region42: #{tpu_custom_call.1} parent=11 // pred_check_branch
          %357 = sbr.rel (%p355) target = $region44
        $region43: #{tpu_custom_call.1} parent=11 // pred_region
          _
        $region44: #{tpu_custom_call.1} parent=11 // pred_fallthru
          _
        // Predicated region
        $region45: #{tpu_custom_call.1} parent=11 // pred_check
          %p358 = pneg %p242
        $region46: #{tpu_custom_call.1} parent=11 // pred_check_branch
          %360 = sbr.rel (%p358) target = $region48
        $region47: #{tpu_custom_call.1} parent=11 // pred_region
          %s362 = ssub.s32 2048, 2048
          %363 = vsyncadd [#allocation11], %s362
          %s364 = sshll.u32 [#allocation12], 4
          %s365 = int_to_ptr.vmem [resolvable:$true] %s364
          %370 = dma.hbm_to_vmem [thread:$0]  %s9, 2048, %s365, [#allocation11], 128, 128, 8
        $region48: #{tpu_custom_call.1} parent=11 // pred_fallthru
          _
        // Predicated region
        $region49: #{tpu_custom_call.1} parent=11 // pred_check
          %p371 = pneg %p263
        $region50: #{tpu_custom_call.1} parent=11 // pred_check_branch
          %373 = sbr.rel (%p371) target = $region52
        $region51: #{tpu_custom_call.1} parent=11 // pred_region
          _
        $region52: #{tpu_custom_call.1} parent=11 // pred_fallthru
          _
      $region12: #{tpu_custom_call.1} parent=5 // pred_fallthru
        _
      %p374 = scmp.lt.s32.totalorder %s27, 2
      // Predicated region
      $region53: #{tpu_custom_call.1} parent=5 // pred_check
        %p375 = pneg %p374
      $region54: #{tpu_custom_call.1} parent=5 // pred_check_branch
        %377 = sbr.rel (%p375) target = $region56
      $region55: #{tpu_custom_call.1} parent=5 // pred_region
        // Predicated region
        $region57: #{tpu_custom_call.1} parent=55 // pred_check
          %p378 = pneg %p47
        $region58: #{tpu_custom_call.1} parent=55 // pred_check_branch
          %380 = sbr.rel (%p378) target = $region60
        $region59: #{tpu_custom_call.1} parent=55 // pred_region
          %s381 = sand.u32 %s37, 1
          %s382 = scalar_lea.sflag [#allocation5], %s381
          %s383 = sand.u32 %s37, 1
          %s384 = smul.addr %s383, 128
          %s385 = scalar_lea.vmem [#allocation4], %s384
          %s387 = ssub.s32 2048, 2048
          %388 = vsyncadd %s382, %s387
          %s389 = smul.addr %s27, 32
          %s390 = smul.addr %s389, 64
          %s391 = scalar_lea.hbm %s0, %s390
          %s392 = sshll.u32 %s385, 4
          %s393 = int_to_ptr.vmem [resolvable:$true] %s392
          %398 = dma.hbm_to_vmem [thread:$0]  %s391, 2048, %s393, %s382, 64, 64, 4
        $region60: #{tpu_custom_call.1} parent=55 // pred_fallthru
          _
      $region56: #{tpu_custom_call.1} parent=5 // pred_fallthru
        _
      %p399 = scmp.le.s32.totalorder 1, %s27
      %p400 = scmp.lt.s32.totalorder %s27, 3
      %p401 = pnand %p399, %p400
      %p402 = pneg %p401
      // Predicated region
      $region61: #{tpu_custom_call.1} parent=5 // pred_check
        _
      $region62: #{tpu_custom_call.1} parent=5 // pred_check_branch
        %404 = sbr.rel (%p401) target = $region64
      $region63: #{tpu_custom_call.1} parent=5 // pred_region
        %s405 = ssub.s32 %s27, 1
        %s406 = sand.u32 %s40, 1
        %s407 = scalar_lea.sflag [#allocation5], %s406
        %s408 = sand.u32 %s40, 1
        %s409 = smul.addr %s408, 128
        %s410 = scalar_lea.vmem [#allocation4], %s409
        // Predicated region
        $region65: #{tpu_custom_call.1} parent=63 // pred_check
          %p411 = pneg %p53
        $region66: #{tpu_custom_call.1} parent=63 // pred_check_branch
          %413 = sbr.rel (%p411) target = $region68
        $region67: #{tpu_custom_call.1} parent=63 // pred_region
          %414 = dma.done %s407, 2048
        $region68: #{tpu_custom_call.1} parent=63 // pred_fallthru
          _
        // Predicated region
        $region69: #{tpu_custom_call.1} parent=63 // pred_check
          %p415 = pneg %p74
        $region70: #{tpu_custom_call.1} parent=63 // pred_check_branch
          %417 = sbr.rel (%p415) target = $region72
        $region71: #{tpu_custom_call.1} parent=63 // pred_region
          %418 = dma.done [#allocation8], 1024
        $region72: #{tpu_custom_call.1} parent=63 // pred_fallthru
          _
        // Predicated region
        $region73: #{tpu_custom_call.1} parent=63 // pred_check
          %p419 = pneg %p158
        $region74: #{tpu_custom_call.1} parent=63 // pred_check_branch
          %421 = sbr.rel (%p419) target = $region76
        $region75: #{tpu_custom_call.1} parent=63 // pred_region
          %422 = dma.done [#allocation8], 1024
        $region76: #{tpu_custom_call.1} parent=63 // pred_fallthru
          _
        // Predicated region
        $region77: #{tpu_custom_call.1} parent=63 // pred_check
          %p423 = pneg %p200
        $region78: #{tpu_custom_call.1} parent=63 // pred_check_branch
          %425 = sbr.rel (%p423) target = $region80
        $region79: #{tpu_custom_call.1} parent=63 // pred_region
          %426 = dma.done [#allocation11], 2048
        $region80: #{tpu_custom_call.1} parent=63 // pred_fallthru
          _
        // Predicated region
        $region81: #{tpu_custom_call.1} parent=63 // pred_check
          %p427 = pneg %p242
        $region82: #{tpu_custom_call.1} parent=63 // pred_check_branch
          %429 = sbr.rel (%p427) target = $region84
        $region83: #{tpu_custom_call.1} parent=63 // pred_region
          %430 = dma.done [#allocation11], 2048
        $region84: #{tpu_custom_call.1} parent=63 // pred_fallthru
          _
        %s431 = sand.u32 %s40, 1
        %s432 = scalar_lea.sflag [#allocation5], %s431
        %s433 = sand.u32 %s40, 1
        %s434 = smul.addr %s433, 128
        %s435 = scalar_lea.vmem [#allocation4], %s434
        %p436 = pneg %p53
        %p437 = pneg %p50
        %p438 = pneg %p74
        %p439 = pneg %p71
        %p440 = pneg %p95
        %p441 = pneg %p92
        %p442 = pneg %p116
        %p443 = pneg %p113
        %p444 = pneg %p137
        %p445 = pneg %p134
        %p446 = pneg %p158
        %p447 = pneg %p155
        %p448 = pneg %p179
        %p449 = pneg %p176
        %p450 = pneg %p200
        %p451 = pneg %p197
        %p452 = pneg %p221
        %p453 = pneg %p218
        %p454 = pneg %p242
        %p455 = pneg %p239
        %p456 = pneg %p263
        %p457 = pneg %p260
        %p458 = pneg %p289
        %p459 = pneg %p286
        %s460 = sand.u32 %s276, 1
        %s461 = scalar_lea.sflag [#allocation6], %s460
        %s462 = sand.u32 %s276, 1
        %s463 = smul.addr %s462, 256
        %s464 = scalar_lea.vmem [#allocation13], %s463
        %v466 = vld [vmem:[%s410] sm:$0xf]
        %v467 = vld [vmem:[%s410 + $0x4] sm:$0xf]
        %v468 = vld [vmem:[%s410 + $0x8] sm:$0xf]
        %v469 = vld [vmem:[%s410 + $0xc] sm:$0xf]
        %v470 = vld [vmem:[%s410 + $0x10] sm:$0xf]
        %v471 = vld [vmem:[%s410 + $0x14] sm:$0xf]
        %v472 = vld [vmem:[%s410 + $0x18] sm:$0xf]
        %v473 = vld [vmem:[%s410 + $0x1c] sm:$0xf]
        %v474 = vld [vmem:[%s410 + $0x20] sm:$0xf]
        %v475 = vld [vmem:[%s410 + $0x24] sm:$0xf]
        %v476 = vld [vmem:[%s410 + $0x28] sm:$0xf]
        %v477 = vld [vmem:[%s410 + $0x2c] sm:$0xf]
        %v478 = vld [vmem:[%s410 + $0x30] sm:$0xf]
        %v479 = vld [vmem:[%s410 + $0x34] sm:$0xf]
        %v480 = vld [vmem:[%s410 + $0x38] sm:$0xf]
        %v481 = vld [vmem:[%s410 + $0x3c] sm:$0xf]
        %v482 = vld [vmem:[%s410 + $0x40] sm:$0xf]
        %v483 = vld [vmem:[%s410 + $0x44] sm:$0xf]
        %v484 = vld [vmem:[%s410 + $0x48] sm:$0xf]
        %v485 = vld [vmem:[%s410 + $0x4c] sm:$0xf]
        %v486 = vld [vmem:[%s410 + $0x50] sm:$0xf]
        %v487 = vld [vmem:[%s410 + $0x54] sm:$0xf]
        %v488 = vld [vmem:[%s410 + $0x58] sm:$0xf]
        %v489 = vld [vmem:[%s410 + $0x5c] sm:$0xf]
        %v490 = vld [vmem:[%s410 + $0x60] sm:$0xf]
        %v491 = vld [vmem:[%s410 + $0x64] sm:$0xf]
        %v492 = vld [vmem:[%s410 + $0x68] sm:$0xf]
        %v493 = vld [vmem:[%s410 + $0x6c] sm:$0xf]
        %v494 = vld [vmem:[%s410 + $0x70] sm:$0xf]
        %v495 = vld [vmem:[%s410 + $0x74] sm:$0xf]
        %v496 = vld [vmem:[%s410 + $0x78] sm:$0xf]
        %v497 = vld [vmem:[%s410 + $0x7c] sm:$0xf]
        %v498 = vld [vmem:[#allocation7] sm:$0xf]
        %v499 = vld [vmem:[#allocation7 + $0x4] sm:$0xf]
        %v500 = vld [vmem:[#allocation7 + $0x8] sm:$0xf]
        %v501 = vld [vmem:[#allocation7 + $0xc] sm:$0xf]
        %v502 = vld [vmem:[#allocation7 + $0x10] sm:$0xf]
        %v503 = vld [vmem:[#allocation7 + $0x14] sm:$0xf]
        %v504 = vld [vmem:[#allocation7 + $0x18] sm:$0xf]
        %v505 = vld [vmem:[#allocation7 + $0x1c] sm:$0xf]
        %v506 = vld [vmem:[#allocation7 + $0x20] sm:$0xf]
        %v507 = vld [vmem:[#allocation7 + $0x24] sm:$0xf]
        %v508 = vld [vmem:[#allocation7 + $0x28] sm:$0xf]
        %v509 = vld [vmem:[#allocation7 + $0x2c] sm:$0xf]
        %v510 = vld [vmem:[#allocation7 + $0x30] sm:$0xf]
        %v511 = vld [vmem:[#allocation7 + $0x34] sm:$0xf]
        %v512 = vld [vmem:[#allocation7 + $0x38] sm:$0xf]
        %v513 = vld [vmem:[#allocation7 + $0x3c] sm:$0xf]
        %v514 = vld [vmem:[%s2] sm:$0x1]
        %v516 = vlaneseq
        %v517 = vshrl.u32 %v516, 7
        %v518 = vsub.s32 0, %v517
        %v519 = vrot.slane %v514, %v518
        %v553 = vunpack.c.l.b16 %v466
        %v554 = vunpack.c.l.b16 %v467
        %v555 = vunpack.c.l.b16 %v468
        %v556 = vunpack.c.l.b16 %v469
        %v557 = vunpack.c.l.b16 %v470
        %v558 = vunpack.c.l.b16 %v471
        %v559 = vunpack.c.l.b16 %v472
        %v560 = vunpack.c.l.b16 %v473
        %v561 = vunpack.c.l.b16 %v474
        %v562 = vunpack.c.l.b16 %v475
        %v563 = vunpack.c.l.b16 %v476
        %v564 = vunpack.c.l.b16 %v477
        %v565 = vunpack.c.l.b16 %v478
        %v566 = vunpack.c.l.b16 %v479
        %v567 = vunpack.c.l.b16 %v480
        %v568 = vunpack.c.l.b16 %v481
        %v569 = vunpack.c.l.b16 %v482
        %v570 = vunpack.c.l.b16 %v483
        %v571 = vunpack.c.l.b16 %v484
        %v572 = vunpack.c.l.b16 %v485
        %v573 = vunpack.c.l.b16 %v486
        %v574 = vunpack.c.l.b16 %v487
        %v575 = vunpack.c.l.b16 %v488
        %v576 = vunpack.c.l.b16 %v489
        %v577 = vunpack.c.l.b16 %v490
        %v578 = vunpack.c.l.b16 %v491
        %v579 = vunpack.c.l.b16 %v492
        %v580 = vunpack.c.l.b16 %v493
        %v581 = vunpack.c.l.b16 %v494
        %v582 = vunpack.c.l.b16 %v495
        %v583 = vunpack.c.l.b16 %v496
        %v584 = vunpack.c.l.b16 %v497
        %v585 = vpack.c.b16 %v554, %v553
        %v586 = vpack.c.b16 %v556, %v555
        %v587 = vpack.c.b16 %v558, %v557
        %v588 = vpack.c.b16 %v560, %v559
        %v589 = vpack.c.b16 %v562, %v561
        %v590 = vpack.c.b16 %v564, %v563
        %v591 = vpack.c.b16 %v566, %v565
        %v592 = vpack.c.b16 %v568, %v567
        %v593 = vpack.c.b16 %v570, %v569
        %v594 = vpack.c.b16 %v572, %v571
        %v595 = vpack.c.b16 %v574, %v573
        %v596 = vpack.c.b16 %v576, %v575
        %v597 = vpack.c.b16 %v578, %v577
        %v598 = vpack.c.b16 %v580, %v579
        %v599 = vpack.c.b16 %v582, %v581
        %v600 = vpack.c.b16 %v584, %v583
        %v633 = vunpack.c.l.b16 %v498
        %v634 = vunpack.c.l.b16 %v499
        %v635 = vunpack.c.l.b16 %v500
        %v636 = vunpack.c.l.b16 %v501
        %v637 = vunpack.c.l.b16 %v502
        %v638 = vunpack.c.l.b16 %v503
        %v639 = vunpack.c.l.b16 %v504
        %v640 = vunpack.c.l.b16 %v505
        %v641 = vunpack.c.l.b16 %v506
        %v642 = vunpack.c.l.b16 %v507
        %v643 = vunpack.c.l.b16 %v508
        %v644 = vunpack.c.l.b16 %v509
        %v645 = vunpack.c.l.b16 %v510
        %v646 = vunpack.c.l.b16 %v511
        %v647 = vunpack.c.l.b16 %v512
        %v648 = vunpack.c.l.b16 %v513
        %v649 = vpack.c.b16 %v634, %v633
        %v650 = vpack.c.b16 %v636, %v635
        %v651 = vpack.c.b16 %v638, %v637
        %v652 = vpack.c.b16 %v640, %v639
        %v653 = vpack.c.b16 %v642, %v641
        %v654 = vpack.c.b16 %v644, %v643
        %v655 = vpack.c.b16 %v646, %v645
        %v656 = vpack.c.b16 %v648, %v647
        %665 = vmatprep.subr.bf16.mxu0 0
        %666 = vmatpush1.bf16.msra.mxu0 %v649
        %667 = vmatprep.subr.bf16.mxu0 0
        %668 = vmatpush1.bf16.msra.mxu0 %v650
        %669 = vmatprep.subr.bf16.mxu0 0
        %670 = vmatpush1.bf16.msra.mxu0 %v651
        %671 = vmatprep.subr.bf16.mxu0 0
        %672 = vmatpush1.bf16.msra.mxu0 %v652
        %673 = vmatprep.subr.bf16.mxu0 0
        %674 = vmatpush1.bf16.msra.mxu0 %v653
        %675 = vmatprep.subr.bf16.mxu0 0
        %676 = vmatpush1.bf16.msra.mxu0 %v654
        %677 = vmatprep.subr.bf16.mxu0 0
        %678 = vmatpush1.bf16.msra.mxu0 %v655
        %679 = vmatprep.subr.bf16.mxu0 0
        %680 = vmatpush1.bf16.msra.mxu0 %v656
        %681 = vmatprep.subr.bf16.mxu0 0
        %682 = vmatpush1.bf16.msra.mxu0 0
        %683 = vmatprep.subr.bf16.mxu0 0
        %684 = vmatpush1.bf16.msra.mxu0 0
        %685 = vmatprep.subr.bf16.mxu0 0
        %686 = vmatpush1.bf16.msra.mxu0 0
        %687 = vmatprep.subr.bf16.mxu0 0
        %688 = vmatpush1.bf16.msra.mxu0 0
        %689 = vmatprep.subr.bf16.mxu0 0
        %690 = vmatpush1.bf16.msra.mxu0 0
        %691 = vmatprep.subr.bf16.mxu0 0
        %692 = vmatpush1.bf16.msra.mxu0 0
        %693 = vmatprep.subr.bf16.mxu0 0
        %694 = vmatpush1.bf16.msra.mxu0 0
        %695 = vmatprep.subr.bf16.mxu0 0
        %696 = vmatpush1.bf16.msra.mxu0 0
        %697 = vmatprep.mubr.bf16.mxu0 0
        %698 = vmatmul.mubr.bf16.gmra.mrb[0].mxu0 %v585
        %v699 = vpop.f32.mrb[0].mxu0
        %v700 = vadd.f32 %v519, %v699
        %v701 = vpop.f32.mrb[0].mxu0
        %v702 = vpop.f32.mrb[0].mxu0
        %v703 = vadd.f32 %v519, %v702
        %v704 = vpop.f32.mrb[0].mxu0
        %705 = vmatprep.mubr.bf16.mxu0 0
        %706 = vmatmul.mubr.bf16.gmra.mrb[0].mxu0 %v586
        %v707 = vpop.f32.mrb[0].mxu0
        %v708 = vadd.f32 %v519, %v707
        %v709 = vpop.f32.mrb[0].mxu0
        %v710 = vpop.f32.mrb[0].mxu0
        %v711 = vadd.f32 %v519, %v710
        %v712 = vpop.f32.mrb[0].mxu0
        %713 = vmatprep.mubr.bf16.mxu0 0
        %714 = vmatmul.mubr.bf16.gmra.mrb[0].mxu0 %v587
        %v715 = vpop.f32.mrb[0].mxu0
        %v716 = vadd.f32 %v519, %v715
        %v717 = vpop.f32.mrb[0].mxu0
        %v718 = vpop.f32.mrb[0].mxu0
        %v719 = vadd.f32 %v519, %v718
        %v720 = vpop.f32.mrb[0].mxu0
        %721 = vmatprep.mubr.bf16.mxu0 0
        %722 = vmatmul.mubr.bf16.gmra.mrb[0].mxu0 %v588
        %v723 = vpop.f32.mrb[0].mxu0
        %v724 = vadd.f32 %v519, %v723
        %v725 = vpop.f32.mrb[0].mxu0
        %v726 = vpop.f32.mrb[0].mxu0
        %v727 = vadd.f32 %v519, %v726
        %v728 = vpop.f32.mrb[0].mxu0
        %729 = vmatprep.mubr.bf16.mxu0 0
        %730 = vmatmul.mubr.bf16.gmra.mrb[0].mxu0 %v589
        %v731 = vpop.f32.mrb[0].mxu0
        %v732 = vadd.f32 %v519, %v731
        %v733 = vpop.f32.mrb[0].mxu0
        %v734 = vpop.f32.mrb[0].mxu0
        %v735 = vadd.f32 %v519, %v734
        %v736 = vpop.f32.mrb[0].mxu0
        %737 = vmatprep.mubr.bf16.mxu0 0
        %738 = vmatmul.mubr.bf16.gmra.mrb[0].mxu0 %v590
        %v739 = vpop.f32.mrb[0].mxu0
        %v740 = vadd.f32 %v519, %v739
        %v741 = vpop.f32.mrb[0].mxu0
        %v742 = vpop.f32.mrb[0].mxu0
        %v743 = vadd.f32 %v519, %v742
        %v744 = vpop.f32.mrb[0].mxu0
        %745 = vmatprep.mubr.bf16.mxu0 0
        %746 = vmatmul.mubr.bf16.gmra.mrb[0].mxu0 %v591
        %v747 = vpop.f32.mrb[0].mxu0
        %v748 = vadd.f32 %v519, %v747
        %v749 = vpop.f32.mrb[0].mxu0
        %v750 = vpop.f32.mrb[0].mxu0
        %v751 = vadd.f32 %v519, %v750
        %v752 = vpop.f32.mrb[0].mxu0
        %753 = vmatprep.mubr.bf16.mxu0 0
        %754 = vmatmul.mubr.bf16.gmra.mrb[0].mxu0 %v592
        %v755 = vpop.f32.mrb[0].mxu0
        %v756 = vadd.f32 %v519, %v755
        %v757 = vpop.f32.mrb[0].mxu0
        %v758 = vpop.f32.mrb[0].mxu0
        %v759 = vadd.f32 %v519, %v758
        %v760 = vpop.f32.mrb[0].mxu0
        %761 = vmatprep.mubr.bf16.mxu0 0
        %762 = vmatmul.mubr.bf16.gmra.mrb[0].mxu0 %v593
        %v763 = vpop.f32.mrb[0].mxu0
        %v764 = vadd.f32 %v519, %v763
        %v765 = vpop.f32.mrb[0].mxu0
        %v766 = vpop.f32.mrb[0].mxu0
        %v767 = vadd.f32 %v519, %v766
        %v768 = vpop.f32.mrb[0].mxu0
        %769 = vmatprep.mubr.bf16.mxu0 0
        %770 = vmatmul.mubr.bf16.gmra.mrb[0].mxu0 %v594
        %v771 = vpop.f32.mrb[0].mxu0
        %v772 = vadd.f32 %v519, %v771
        %v773 = vpop.f32.mrb[0].mxu0
        %v774 = vpop.f32.mrb[0].mxu0
        %v775 = vadd.f32 %v519, %v774
        %v776 = vpop.f32.mrb[0].mxu0
        %777 = vmatprep.mubr.bf16.mxu0 0
        %778 = vmatmul.mubr.bf16.gmra.mrb[0].mxu0 %v595
        %v779 = vpop.f32.mrb[0].mxu0
        %v780 = vadd.f32 %v519, %v779
        %v781 = vpop.f32.mrb[0].mxu0
        %v782 = vpop.f32.mrb[0].mxu0
        %v783 = vadd.f32 %v519, %v782
        %v784 = vpop.f32.mrb[0].mxu0
        %785 = vmatprep.mubr.bf16.mxu0 0
        %786 = vmatmul.mubr.bf16.gmra.mrb[0].mxu0 %v596
        %v787 = vpop.f32.mrb[0].mxu0
        %v788 = vadd.f32 %v519, %v787
        %v789 = vpop.f32.mrb[0].mxu0
        %v790 = vpop.f32.mrb[0].mxu0
        %v791 = vadd.f32 %v519, %v790
        %v792 = vpop.f32.mrb[0].mxu0
        %793 = vmatprep.mubr.bf16.mxu0 0
        %794 = vmatmul.mubr.bf16.gmra.mrb[0].mxu0 %v597
        %v795 = vpop.f32.mrb[0].mxu0
        %v796 = vadd.f32 %v519, %v795
        %v797 = vpop.f32.mrb[0].mxu0
        %v798 = vpop.f32.mrb[0].mxu0
        %v799 = vadd.f32 %v519, %v798
        %v800 = vpop.f32.mrb[0].mxu0
        %801 = vmatprep.mubr.bf16.mxu0 0
        %802 = vmatmul.mubr.bf16.gmra.mrb[0].mxu0 %v598
        %v803 = vpop.f32.mrb[0].mxu0
        %v804 = vadd.f32 %v519, %v803
        %v805 = vpop.f32.mrb[0].mxu0
        %v806 = vpop.f32.mrb[0].mxu0
        %v807 = vadd.f32 %v519, %v806
        %v808 = vpop.f32.mrb[0].mxu0
        %809 = vmatprep.mubr.bf16.mxu0 0
        %810 = vmatmul.mubr.bf16.gmra.mrb[0].mxu0 %v599
        %v811 = vpop.f32.mrb[0].mxu0
        %v812 = vadd.f32 %v519, %v811
        %v813 = vpop.f32.mrb[0].mxu0
        %v814 = vpop.f32.mrb[0].mxu0
        %v815 = vadd.f32 %v519, %v814
        %v816 = vpop.f32.mrb[0].mxu0
        %817 = vmatprep.mubr.bf16.mxu0 0
        %818 = vmatmul.mubr.bf16.gmra.mrb[0].mxu0 %v600
        %v819 = vpop.f32.mrb[0].mxu0
        %v820 = vadd.f32 %v519, %v819
        %v821 = vpop.f32.mrb[0].mxu0
        %v822 = vpop.f32.mrb[0].mxu0
        %v823 = vadd.f32 %v519, %v822
        %v824 = vpop.f32.mrb[0].mxu0
        %825 = vdwg.mxu0
        %v826 = vld [vmem:[%s3] sm:$0xff]
        %v827 = vld [vmem:[%s3 + $0x8] sm:$0x1]
        %v828 = vlaneseq
        %v829 = vshrl.u32 %v828, 7
        %v830 = vadd.s32 %v829, 8
        %v831 = vadd.s32 %v829, 16
        %v832 = vadd.s32 %v829, 24
        %v833 = vadd.s32 %v829, 32
        %v834 = vadd.s32 %v829, 40
        %v835 = vadd.s32 %v829, 48
        %v836 = vadd.s32 %v829, 56
        %v837 = vadd.s32 %v829, 64
        %v838 = vadd.s32 %v829, 72
        %v839 = vadd.s32 %v829, 80
        %v840 = vadd.s32 %v829, 88
        %v841 = vadd.s32 %v829, 96
        %v842 = vadd.s32 %v829, 104
        %v843 = vadd.s32 %v829, 112
        %v844 = vadd.s32 %v829, 120
        %v845 = vadd.s32 %v829, 128
        %v846 = vadd.s32 %v829, 136
        %v847 = vadd.s32 %v829, 144
        %v848 = vadd.s32 %v829, 152
        %v849 = vadd.s32 %v829, 160
        %v850 = vadd.s32 %v829, 168
        %v851 = vadd.s32 %v829, 176
        %v852 = vadd.s32 %v829, 184
        %v853 = vadd.s32 %v829, 192
        %v854 = vadd.s32 %v829, 200
        %v855 = vadd.s32 %v829, 208
        %v856 = vadd.s32 %v829, 216
        %v857 = vadd.s32 %v829, 224
        %v858 = vadd.s32 %v829, 232
        %v859 = vadd.s32 %v829, 240
        %v860 = vadd.s32 %v829, 248
        %v861 = vand.u32 %v829, 15
        %v862 = vand.u32 %v830, 15
        %v863 = vand.u32 %v831, 15
        %v864 = vand.u32 %v832, 15
        %v865 = vand.u32 %v833, 15
        %v866 = vand.u32 %v834, 15
        %v867 = vand.u32 %v835, 15
        %v868 = vand.u32 %v836, 15
        %v869 = vand.u32 %v837, 15
        %v870 = vand.u32 %v838, 15
        %v871 = vand.u32 %v839, 15
        %v872 = vand.u32 %v840, 15
        %v873 = vand.u32 %v841, 15
        %v874 = vand.u32 %v842, 15
        %v875 = vand.u32 %v843, 15
        %v876 = vand.u32 %v844, 15
        %v877 = vand.u32 %v845, 15
        %v878 = vand.u32 %v846, 15
        %v879 = vand.u32 %v847, 15
        %v880 = vand.u32 %v848, 15
        %v881 = vand.u32 %v849, 15
        %v882 = vand.u32 %v850, 15
        %v883 = vand.u32 %v851, 15
        %v884 = vand.u32 %v852, 15
        %v885 = vand.u32 %v853, 15
        %v886 = vand.u32 %v854, 15
        %v887 = vand.u32 %v855, 15
        %v888 = vand.u32 %v856, 15
        %v889 = vand.u32 %v857, 15
        %v890 = vand.u32 %v858, 15
        %v891 = vand.u32 %v859, 15
        %v892 = vand.u32 %v860, 15
        %vm893 = vcmp.ge.s32.totalorder %v829, 16
        %vm894 = vcmp.ge.s32.totalorder %v830, 16
        %vm895 = vcmp.ge.s32.totalorder %v831, 16
        %vm896 = vcmp.ge.s32.totalorder %v832, 16
        %vm897 = vcmp.ge.s32.totalorder %v833, 16
        %vm898 = vcmp.ge.s32.totalorder %v834, 16
        %vm899 = vcmp.ge.s32.totalorder %v835, 16
        %vm900 = vcmp.ge.s32.totalorder %v836, 16
        %vm901 = vcmp.ge.s32.totalorder %v837, 16
        %vm902 = vcmp.ge.s32.totalorder %v838, 16
        %vm903 = vcmp.ge.s32.totalorder %v839, 16
        %vm904 = vcmp.ge.s32.totalorder %v840, 16
        %vm905 = vcmp.ge.s32.totalorder %v841, 16
        %vm906 = vcmp.ge.s32.totalorder %v842, 16
        %vm907 = vcmp.ge.s32.totalorder %v843, 16
        %vm908 = vcmp.ge.s32.totalorder %v844, 16
        %vm909 = vcmp.ge.s32.totalorder %v845, 16
        %vm910 = vcmp.ge.s32.totalorder %v846, 16
        %vm911 = vcmp.ge.s32.totalorder %v847, 16
        %vm912 = vcmp.ge.s32.totalorder %v848, 16
        %vm913 = vcmp.ge.s32.totalorder %v849, 16
        %vm914 = vcmp.ge.s32.totalorder %v850, 16
        %vm915 = vcmp.ge.s32.totalorder %v851, 16
        %vm916 = vcmp.ge.s32.totalorder %v852, 16
        %vm917 = vcmp.ge.s32.totalorder %v853, 16
        %vm918 = vcmp.ge.s32.totalorder %v854, 16
        %vm919 = vcmp.ge.s32.totalorder %v855, 16
        %vm920 = vcmp.ge.s32.totalorder %v856, 16
        %vm921 = vcmp.ge.s32.totalorder %v857, 16
        %vm922 = vcmp.ge.s32.totalorder %v858, 16
        %vm923 = vcmp.ge.s32.totalorder %v859, 16
        %vm924 = vcmp.ge.s32.totalorder %v860, 16
        %vm925 = vcmp.lt.s32.totalorder %v829, 240
        %vm926 = vcmp.lt.s32.totalorder %v830, 240
        %vm927 = vcmp.lt.s32.totalorder %v831, 240
        %vm928 = vcmp.lt.s32.totalorder %v832, 240
        %vm929 = vcmp.lt.s32.totalorder %v833, 240
        %vm930 = vcmp.lt.s32.totalorder %v834, 240
        %vm931 = vcmp.lt.s32.totalorder %v835, 240
        %vm932 = vcmp.lt.s32.totalorder %v836, 240
        %vm933 = vcmp.lt.s32.totalorder %v837, 240
        %vm934 = vcmp.lt.s32.totalorder %v838, 240
        %vm935 = vcmp.lt.s32.totalorder %v839, 240
        %vm936 = vcmp.lt.s32.totalorder %v840, 240
        %vm937 = vcmp.lt.s32.totalorder %v841, 240
        %vm938 = vcmp.lt.s32.totalorder %v842, 240
        %vm939 = vcmp.lt.s32.totalorder %v843, 240
        %vm940 = vcmp.lt.s32.totalorder %v844, 240
        %vm941 = vcmp.lt.s32.totalorder %v845, 240
        %vm942 = vcmp.lt.s32.totalorder %v846, 240
        %vm943 = vcmp.lt.s32.totalorder %v847, 240
        %vm944 = vcmp.lt.s32.totalorder %v848, 240
        %vm945 = vcmp.lt.s32.totalorder %v849, 240
        %vm946 = vcmp.lt.s32.totalorder %v850, 240
        %vm947 = vcmp.lt.s32.totalorder %v851, 240
        %vm948 = vcmp.lt.s32.totalorder %v852, 240
        %vm949 = vcmp.lt.s32.totalorder %v853, 240
        %vm950 = vcmp.lt.s32.totalorder %v854, 240
        %vm951 = vcmp.lt.s32.totalorder %v855, 240
        %vm952 = vcmp.lt.s32.totalorder %v856, 240
        %vm953 = vcmp.lt.s32.totalorder %v857, 240
        %vm954 = vcmp.lt.s32.totalorder %v858, 240
        %vm955 = vcmp.lt.s32.totalorder %v859, 240
        %vm956 = vcmp.lt.s32.totalorder %v860, 240
        %vm957 = vcmp.ge.s32.totalorder %v861, 1
        %vm958 = vcmp.ge.s32.totalorder %v862, 1
        %vm959 = vcmp.ge.s32.totalorder %v863, 1
        %vm960 = vcmp.ge.s32.totalorder %v864, 1
        %vm961 = vcmp.ge.s32.totalorder %v865, 1
        %vm962 = vcmp.ge.s32.totalorder %v866, 1
        %vm963 = vcmp.ge.s32.totalorder %v867, 1
        %vm964 = vcmp.ge.s32.totalorder %v868, 1
        %vm965 = vcmp.ge.s32.totalorder %v869, 1
        %vm966 = vcmp.ge.s32.totalorder %v870, 1
        %vm967 = vcmp.ge.s32.totalorder %v871, 1
        %vm968 = vcmp.ge.s32.totalorder %v872, 1
        %vm969 = vcmp.ge.s32.totalorder %v873, 1
        %vm970 = vcmp.ge.s32.totalorder %v874, 1
        %vm971 = vcmp.ge.s32.totalorder %v875, 1
        %vm972 = vcmp.ge.s32.totalorder %v876, 1
        %vm973 = vcmp.ge.s32.totalorder %v877, 1
        %vm974 = vcmp.ge.s32.totalorder %v878, 1
        %vm975 = vcmp.ge.s32.totalorder %v879, 1
        %vm976 = vcmp.ge.s32.totalorder %v880, 1
        %vm977 = vcmp.ge.s32.totalorder %v881, 1
        %vm978 = vcmp.ge.s32.totalorder %v882, 1
        %vm979 = vcmp.ge.s32.totalorder %v883, 1
        %vm980 = vcmp.ge.s32.totalorder %v884, 1
        %vm981 = vcmp.ge.s32.totalorder %v885, 1
        %vm982 = vcmp.ge.s32.totalorder %v886, 1
        %vm983 = vcmp.ge.s32.totalorder %v887, 1
        %vm984 = vcmp.ge.s32.totalorder %v888, 1
        %vm985 = vcmp.ge.s32.totalorder %v889, 1
        %vm986 = vcmp.ge.s32.totalorder %v890, 1
        %vm987 = vcmp.ge.s32.totalorder %v891, 1
        %vm988 = vcmp.ge.s32.totalorder %v892, 1
        %vm989 = vcmp.lt.s32.totalorder %v861, 15
        %vm990 = vcmp.lt.s32.totalorder %v862, 15
        %vm991 = vcmp.lt.s32.totalorder %v863, 15
        %vm992 = vcmp.lt.s32.totalorder %v864, 15
        %vm993 = vcmp.lt.s32.totalorder %v865, 15
        %vm994 = vcmp.lt.s32.totalorder %v866, 15
        %vm995 = vcmp.lt.s32.totalorder %v867, 15
        %vm996 = vcmp.lt.s32.totalorder %v868, 15
        %vm997 = vcmp.lt.s32.totalorder %v869, 15
        %vm998 = vcmp.lt.s32.totalorder %v870, 15
        %vm999 = vcmp.lt.s32.totalorder %v871, 15
        %vm1000 = vcmp.lt.s32.totalorder %v872, 15
        %vm1001 = vcmp.lt.s32.totalorder %v873, 15
        %vm1002 = vcmp.lt.s32.totalorder %v874, 15
        %vm1003 = vcmp.lt.s32.totalorder %v875, 15
        %vm1004 = vcmp.lt.s32.totalorder %v876, 15
        %vm1005 = vcmp.lt.s32.totalorder %v877, 15
        %vm1006 = vcmp.lt.s32.totalorder %v878, 15
        %vm1007 = vcmp.lt.s32.totalorder %v879, 15
        %vm1008 = vcmp.lt.s32.totalorder %v880, 15
        %vm1009 = vcmp.lt.s32.totalorder %v881, 15
        %vm1010 = vcmp.lt.s32.totalorder %v882, 15
        %vm1011 = vcmp.lt.s32.totalorder %v883, 15
        %vm1012 = vcmp.lt.s32.totalorder %v884, 15
        %vm1013 = vcmp.lt.s32.totalorder %v885, 15
        %vm1014 = vcmp.lt.s32.totalorder %v886, 15
        %vm1015 = vcmp.lt.s32.totalorder %v887, 15
        %vm1016 = vcmp.lt.s32.totalorder %v888, 15
        %vm1017 = vcmp.lt.s32.totalorder %v889, 15
        %vm1018 = vcmp.lt.s32.totalorder %v890, 15
        %vm1019 = vcmp.lt.s32.totalorder %v891, 15
        %vm1020 = vcmp.lt.s32.totalorder %v892, 15
        %v1021 = vrot.slane %v700, 7
        %v1022 = vrot.slane %v703, 7
        %v1023 = vrot.slane %v708, 7
        %v1024 = vrot.slane %v711, 7
        %v1025 = vrot.slane %v716, 7
        %v1026 = vrot.slane %v719, 7
        %v1027 = vrot.slane %v724, 7
        %v1028 = vrot.slane %v727, 7
        %v1029 = vrot.slane %v732, 7
        %v1030 = vrot.slane %v735, 7
        %v1031 = vrot.slane %v740, 7
        %v1032 = vrot.slane %v743, 7
        %v1033 = vrot.slane %v748, 7
        %v1034 = vrot.slane %v751, 7
        %v1035 = vrot.slane %v756, 7
        %v1036 = vrot.slane %v759, 7
        %v1037 = vrot.slane %v764, 7
        %v1038 = vrot.slane %v767, 7
        %v1039 = vrot.slane %v772, 7
        %v1040 = vrot.slane %v775, 7
        %v1041 = vrot.slane %v780, 7
        %v1042 = vrot.slane %v783, 7
        %v1043 = vrot.slane %v788, 7
        %v1044 = vrot.slane %v791, 7
        %v1045 = vrot.slane %v796, 7
        %v1046 = vrot.slane %v799, 7
        %v1047 = vrot.slane %v804, 7
        %v1048 = vrot.slane %v807, 7
        %v1049 = vrot.slane %v812, 7
        %v1050 = vrot.slane %v815, 7
        %v1051 = vrot.slane %v820, 7
        %v1052 = vrot.slane %v823, 7
        %vm1053 = vcmp.lt.s32.totalorder %v829, 1
        %v1054 = vsel %vm1053, %v1051, %v1052
        %v1055 = vsel %vm1053, %v1050, %v1051
        %v1056 = vsel %vm1053, %v1049, %v1050
        %v1057 = vsel %vm1053, %v1048, %v1049
        %v1058 = vsel %vm1053, %v1047, %v1048
        %v1059 = vsel %vm1053, %v1046, %v1047
        %v1060 = vsel %vm1053, %v1045, %v1046
        %v1061 = vsel %vm1053, %v1044, %v1045
        %v1062 = vsel %vm1053, %v1043, %v1044
        %v1063 = vsel %vm1053, %v1042, %v1043
        %v1064 = vsel %vm1053, %v1041, %v1042
        %v1065 = vsel %vm1053, %v1040, %v1041
        %v1066 = vsel %vm1053, %v1039, %v1040
        %v1067 = vsel %vm1053, %v1038, %v1039
        %v1068 = vsel %vm1053, %v1037, %v1038
        %v1069 = vsel %vm1053, %v1036, %v1037
        %v1070 = vsel %vm1053, %v1035, %v1036
        %v1071 = vsel %vm1053, %v1034, %v1035
        %v1072 = vsel %vm1053, %v1033, %v1034
        %v1073 = vsel %vm1053, %v1032, %v1033
        %v1074 = vsel %vm1053, %v1031, %v1032
        %v1075 = vsel %vm1053, %v1030, %v1031
        %v1076 = vsel %vm1053, %v1029, %v1030
        %v1077 = vsel %vm1053, %v1028, %v1029
        %v1078 = vsel %vm1053, %v1027, %v1028
        %v1079 = vsel %vm1053, %v1026, %v1027
        %v1080 = vsel %vm1053, %v1025, %v1026
        %v1081 = vsel %vm1053, %v1024, %v1025
        %v1082 = vsel %vm1053, %v1023, %v1024
        %v1083 = vsel %vm1053, %v1022, %v1023
        %v1084 = vsel %vm1053, %v1021, %v1022
        %v1085 = vsel %vm1053, %v1052, %v1021
        %vm1086 = vmand %vm893, %vm957
        %vm1087 = vmand %vm894, %vm958
        %vm1088 = vmand %vm895, %vm959
        %vm1089 = vmand %vm896, %vm960
        %vm1090 = vmand %vm897, %vm961
        %vm1091 = vmand %vm898, %vm962
        %vm1092 = vmand %vm899, %vm963
        %vm1093 = vmand %vm900, %vm964
        %vm1094 = vmand %vm901, %vm965
        %vm1095 = vmand %vm902, %vm966
        %vm1096 = vmand %vm903, %vm967
        %vm1097 = vmand %vm904, %vm968
        %vm1098 = vmand %vm905, %vm969
        %vm1099 = vmand %vm906, %vm970
        %vm1100 = vmand %vm907, %vm971
        %vm1101 = vmand %vm908, %vm972
        %vm1102 = vmand %vm909, %vm973
        %vm1103 = vmand %vm910, %vm974
        %vm1104 = vmand %vm911, %vm975
        %vm1105 = vmand %vm912, %vm976
        %vm1106 = vmand %vm913, %vm977
        %vm1107 = vmand %vm914, %vm978
        %vm1108 = vmand %vm915, %vm979
        %vm1109 = vmand %vm916, %vm980
        %vm1110 = vmand %vm917, %vm981
        %vm1111 = vmand %vm918, %vm982
        %vm1112 = vmand %vm919, %vm983
        %vm1113 = vmand %vm920, %vm984
        %vm1114 = vmand %vm921, %vm985
        %vm1115 = vmand %vm922, %vm986
        %vm1116 = vmand %vm923, %vm987
        %vm1117 = vmand %vm924, %vm988
        %v1118 = vsel %vm1086, %v1055, 0.0
        %v1119 = vsel %vm1087, %v1054, 0.0
        %v1120 = vsel %vm1088, %v1085, 0.0
        %v1121 = vsel %vm1089, %v1084, 0.0
        %v1122 = vsel %vm1090, %v1083, 0.0
        %v1123 = vsel %vm1091, %v1082, 0.0
        %v1124 = vsel %vm1092, %v1081, 0.0
        %v1125 = vsel %vm1093, %v1080, 0.0
        %v1126 = vsel %vm1094, %v1079, 0.0
        %v1127 = vsel %vm1095, %v1078, 0.0
        %v1128 = vsel %vm1096, %v1077, 0.0
        %v1129 = vsel %vm1097, %v1076, 0.0
        %v1130 = vsel %vm1098, %v1075, 0.0
        %v1131 = vsel %vm1099, %v1074, 0.0
        %v1132 = vsel %vm1100, %v1073, 0.0
        %v1133 = vsel %vm1101, %v1072, 0.0
        %v1134 = vsel %vm1102, %v1071, 0.0
        %v1135 = vsel %vm1103, %v1070, 0.0
        %v1136 = vsel %vm1104, %v1069, 0.0
        %v1137 = vsel %vm1105, %v1068, 0.0
        %v1138 = vsel %vm1106, %v1067, 0.0
        %v1139 = vsel %vm1107, %v1066, 0.0
        %v1140 = vsel %vm1108, %v1065, 0.0
        %v1141 = vsel %vm1109, %v1064, 0.0
        %v1142 = vsel %vm1110, %v1063, 0.0
        %v1143 = vsel %vm1111, %v1062, 0.0
        %v1144 = vsel %vm1112, %v1061, 0.0
        %v1145 = vsel %vm1113, %v1060, 0.0
        %v1146 = vsel %vm1114, %v1059, 0.0
        %v1147 = vsel %vm1115, %v1058, 0.0
        %v1148 = vsel %vm1116, %v1057, 0.0
        %v1149 = vsel %vm1117, %v1056, 0.0
        %v1150 = vlaneseq
        %v1151 = vshrl.u32 %v1150, 7
        %v1152 = vsub.s32 0, %v1151
        %v1153 = vrot.slane %v826, %v1152
        %v1154 = vmul.f32 %v1118, %v1153
        %v1155 = vmul.f32 %v1119, %v1153
        %v1156 = vmul.f32 %v1120, %v1153
        %v1157 = vmul.f32 %v1121, %v1153
        %v1158 = vmul.f32 %v1122, %v1153
        %v1159 = vmul.f32 %v1123, %v1153
        %v1160 = vmul.f32 %v1124, %v1153
        %v1161 = vmul.f32 %v1125, %v1153
        %v1162 = vmul.f32 %v1126, %v1153
        %v1163 = vmul.f32 %v1127, %v1153
        %v1164 = vmul.f32 %v1128, %v1153
        %v1165 = vmul.f32 %v1129, %v1153
        %v1166 = vmul.f32 %v1130, %v1153
        %v1167 = vmul.f32 %v1131, %v1153
        %v1168 = vmul.f32 %v1132, %v1153
        %v1169 = vmul.f32 %v1133, %v1153
        %v1170 = vmul.f32 %v1134, %v1153
        %v1171 = vmul.f32 %v1135, %v1153
        %v1172 = vmul.f32 %v1136, %v1153
        %v1173 = vmul.f32 %v1137, %v1153
        %v1174 = vmul.f32 %v1138, %v1153
        %v1175 = vmul.f32 %v1139, %v1153
        %v1176 = vmul.f32 %v1140, %v1153
        %v1177 = vmul.f32 %v1141, %v1153
        %v1178 = vmul.f32 %v1142, %v1153
        %v1179 = vmul.f32 %v1143, %v1153
        %v1180 = vmul.f32 %v1144, %v1153
        %v1181 = vmul.f32 %v1145, %v1153
        %v1182 = vmul.f32 %v1146, %v1153
        %v1183 = vmul.f32 %v1147, %v1153
        %v1184 = vmul.f32 %v1148, %v1153
        %v1185 = vmul.f32 %v1149, %v1153
        %v1186 = vadd.f32 %v1154, 0.0
        %v1187 = vadd.f32 %v1155, 0.0
        %v1188 = vadd.f32 %v1156, 0.0
        %v1189 = vadd.f32 %v1157, 0.0
        %v1190 = vadd.f32 %v1158, 0.0
        %v1191 = vadd.f32 %v1159, 0.0
        %v1192 = vadd.f32 %v1160, 0.0
        %v1193 = vadd.f32 %v1161, 0.0
        %v1194 = vadd.f32 %v1162, 0.0
        %v1195 = vadd.f32 %v1163, 0.0
        %v1196 = vadd.f32 %v1164, 0.0
        %v1197 = vadd.f32 %v1165, 0.0
        %v1198 = vadd.f32 %v1166, 0.0
        %v1199 = vadd.f32 %v1167, 0.0
        %v1200 = vadd.f32 %v1168, 0.0
        %v1201 = vadd.f32 %v1169, 0.0
        %v1202 = vadd.f32 %v1170, 0.0
        %v1203 = vadd.f32 %v1171, 0.0
        %v1204 = vadd.f32 %v1172, 0.0
        %v1205 = vadd.f32 %v1173, 0.0
        %v1206 = vadd.f32 %v1174, 0.0
        %v1207 = vadd.f32 %v1175, 0.0
        %v1208 = vadd.f32 %v1176, 0.0
        %v1209 = vadd.f32 %v1177, 0.0
        %v1210 = vadd.f32 %v1178, 0.0
        %v1211 = vadd.f32 %v1179, 0.0
        %v1212 = vadd.f32 %v1180, 0.0
        %v1213 = vadd.f32 %v1181, 0.0
        %v1214 = vadd.f32 %v1182, 0.0
        %v1215 = vadd.f32 %v1183, 0.0
        %v1216 = vadd.f32 %v1184, 0.0
        %v1217 = vadd.f32 %v1185, 0.0
        %v1218 = vsel %vm893, %v820, 0.0
        %v1219 = vsel %vm894, %v823, 0.0
        %v1220 = vsel %vm895, %v700, 0.0
        %v1221 = vsel %vm896, %v703, 0.0
        %v1222 = vsel %vm897, %v708, 0.0
        %v1223 = vsel %vm898, %v711, 0.0
        %v1224 = vsel %vm899, %v716, 0.0
        %v1225 = vsel %vm900, %v719, 0.0
        %v1226 = vsel %vm901, %v724, 0.0
        %v1227 = vsel %vm902, %v727, 0.0
        %v1228 = vsel %vm903, %v732, 0.0
        %v1229 = vsel %vm904, %v735, 0.0
        %v1230 = vsel %vm905, %v740, 0.0
        %v1231 = vsel %vm906, %v743, 0.0
        %v1232 = vsel %vm907, %v748, 0.0
        %v1233 = vsel %vm908, %v751, 0.0
        %v1234 = vsel %vm909, %v756, 0.0
        %v1235 = vsel %vm910, %v759, 0.0
        %v1236 = vsel %vm911, %v764, 0.0
        %v1237 = vsel %vm912, %v767, 0.0
        %v1238 = vsel %vm913, %v772, 0.0
        %v1239 = vsel %vm914, %v775, 0.0
        %v1240 = vsel %vm915, %v780, 0.0
        %v1241 = vsel %vm916, %v783, 0.0
        %v1242 = vsel %vm917, %v788, 0.0
        %v1243 = vsel %vm918, %v791, 0.0
        %v1244 = vsel %vm919, %v796, 0.0
        %v1245 = vsel %vm920, %v799, 0.0
        %v1246 = vsel %vm921, %v804, 0.0
        %v1247 = vsel %vm922, %v807, 0.0
        %v1248 = vsel %vm923, %v812, 0.0
        %v1249 = vsel %vm924, %v815, 0.0
        %v1250 = vlaneseq
        %v1251 = vshrl.u32 %v1250, 7
        %v1252 = vsub.s32 1, %v1251
        %v1253 = vrot.slane %v826, %v1252
        %v1254 = vmul.f32 %v1218, %v1253
        %v1255 = vmul.f32 %v1219, %v1253
        %v1256 = vmul.f32 %v1220, %v1253
        %v1257 = vmul.f32 %v1221, %v1253
        %v1258 = vmul.f32 %v1222, %v1253
        %v1259 = vmul.f32 %v1223, %v1253
        %v1260 = vmul.f32 %v1224, %v1253
        %v1261 = vmul.f32 %v1225, %v1253
        %v1262 = vmul.f32 %v1226, %v1253
        %v1263 = vmul.f32 %v1227, %v1253
        %v1264 = vmul.f32 %v1228, %v1253
        %v1265 = vmul.f32 %v1229, %v1253
        %v1266 = vmul.f32 %v1230, %v1253
        %v1267 = vmul.f32 %v1231, %v1253
        %v1268 = vmul.f32 %v1232, %v1253
        %v1269 = vmul.f32 %v1233, %v1253
        %v1270 = vmul.f32 %v1234, %v1253
        %v1271 = vmul.f32 %v1235, %v1253
        %v1272 = vmul.f32 %v1236, %v1253
        %v1273 = vmul.f32 %v1237, %v1253
        %v1274 = vmul.f32 %v1238, %v1253
        %v1275 = vmul.f32 %v1239, %v1253
        %v1276 = vmul.f32 %v1240, %v1253
        %v1277 = vmul.f32 %v1241, %v1253
        %v1278 = vmul.f32 %v1242, %v1253
        %v1279 = vmul.f32 %v1243, %v1253
        %v1280 = vmul.f32 %v1244, %v1253
        %v1281 = vmul.f32 %v1245, %v1253
        %v1282 = vmul.f32 %v1246, %v1253
        %v1283 = vmul.f32 %v1247, %v1253
        %v1284 = vmul.f32 %v1248, %v1253
        %v1285 = vmul.f32 %v1249, %v1253
        %v1286 = vadd.f32 %v1186, %v1254
        %v1287 = vadd.f32 %v1187, %v1255
        %v1288 = vadd.f32 %v1188, %v1256
        %v1289 = vadd.f32 %v1189, %v1257
        %v1290 = vadd.f32 %v1190, %v1258
        %v1291 = vadd.f32 %v1191, %v1259
        %v1292 = vadd.f32 %v1192, %v1260
        %v1293 = vadd.f32 %v1193, %v1261
        %v1294 = vadd.f32 %v1194, %v1262
        %v1295 = vadd.f32 %v1195, %v1263
        %v1296 = vadd.f32 %v1196, %v1264
        %v1297 = vadd.f32 %v1197, %v1265
        %v1298 = vadd.f32 %v1198, %v1266
        %v1299 = vadd.f32 %v1199, %v1267
        %v1300 = vadd.f32 %v1200, %v1268
        %v1301 = vadd.f32 %v1201, %v1269
        %v1302 = vadd.f32 %v1202, %v1270
        %v1303 = vadd.f32 %v1203, %v1271
        %v1304 = vadd.f32 %v1204, %v1272
        %v1305 = vadd.f32 %v1205, %v1273
        %v1306 = vadd.f32 %v1206, %v1274
        %v1307 = vadd.f32 %v1207, %v1275
        %v1308 = vadd.f32 %v1208, %v1276
        %v1309 = vadd.f32 %v1209, %v1277
        %v1310 = vadd.f32 %v1210, %v1278
        %v1311 = vadd.f32 %v1211, %v1279
        %v1312 = vadd.f32 %v1212, %v1280
        %v1313 = vadd.f32 %v1213, %v1281
        %v1314 = vadd.f32 %v1214, %v1282
        %v1315 = vadd.f32 %v1215, %v1283
        %v1316 = vadd.f32 %v1216, %v1284
        %v1317 = vadd.f32 %v1217, %v1285
        %v1318 = vrot.slane %v700, 1
        %v1319 = vrot.slane %v703, 1
        %v1320 = vrot.slane %v708, 1
        %v1321 = vrot.slane %v711, 1
        %v1322 = vrot.slane %v716, 1
        %v1323 = vrot.slane %v719, 1
        %v1324 = vrot.slane %v724, 1
        %v1325 = vrot.slane %v727, 1
        %v1326 = vrot.slane %v732, 1
        %v1327 = vrot.slane %v735, 1
        %v1328 = vrot.slane %v740, 1
        %v1329 = vrot.slane %v743, 1
        %v1330 = vrot.slane %v748, 1
        %v1331 = vrot.slane %v751, 1
        %v1332 = vrot.slane %v756, 1
        %v1333 = vrot.slane %v759, 1
        %v1334 = vrot.slane %v764, 1
        %v1335 = vrot.slane %v767, 1
        %v1336 = vrot.slane %v772, 1
        %v1337 = vrot.slane %v775, 1
        %v1338 = vrot.slane %v780, 1
        %v1339 = vrot.slane %v783, 1
        %v1340 = vrot.slane %v788, 1
        %v1341 = vrot.slane %v791, 1
        %v1342 = vrot.slane %v796, 1
        %v1343 = vrot.slane %v799, 1
        %v1344 = vrot.slane %v804, 1
        %v1345 = vrot.slane %v807, 1
        %v1346 = vrot.slane %v812, 1
        %v1347 = vrot.slane %v815, 1
        %v1348 = vrot.slane %v820, 1
        %v1349 = vrot.slane %v823, 1
        %vm1350 = vcmp.lt.s32.totalorder %v829, 7
        %v1351 = vsel %vm1350, %v1348, %v1349
        %v1352 = vsel %vm1350, %v1347, %v1348
        %v1353 = vsel %vm1350, %v1346, %v1347
        %v1354 = vsel %vm1350, %v1345, %v1346
        %v1355 = vsel %vm1350, %v1344, %v1345
        %v1356 = vsel %vm1350, %v1343, %v1344
        %v1357 = vsel %vm1350, %v1342, %v1343
        %v1358 = vsel %vm1350, %v1341, %v1342
        %v1359 = vsel %vm1350, %v1340, %v1341
        %v1360 = vsel %vm1350, %v1339, %v1340
        %v1361 = vsel %vm1350, %v1338, %v1339
        %v1362 = vsel %vm1350, %v1337, %v1338
        %v1363 = vsel %vm1350, %v1336, %v1337
        %v1364 = vsel %vm1350, %v1335, %v1336
        %v1365 = vsel %vm1350, %v1334, %v1335
        %v1366 = vsel %vm1350, %v1333, %v1334
        %v1367 = vsel %vm1350, %v1332, %v1333
        %v1368 = vsel %vm1350, %v1331, %v1332
        %v1369 = vsel %vm1350, %v1330, %v1331
        %v1370 = vsel %vm1350, %v1329, %v1330
        %v1371 = vsel %vm1350, %v1328, %v1329
        %v1372 = vsel %vm1350, %v1327, %v1328
        %v1373 = vsel %vm1350, %v1326, %v1327
        %v1374 = vsel %vm1350, %v1325, %v1326
        %v1375 = vsel %vm1350, %v1324, %v1325
        %v1376 = vsel %vm1350, %v1323, %v1324
        %v1377 = vsel %vm1350, %v1322, %v1323
        %v1378 = vsel %vm1350, %v1321, %v1322
        %v1379 = vsel %vm1350, %v1320, %v1321
        %v1380 = vsel %vm1350, %v1319, %v1320
        %v1381 = vsel %vm1350, %v1318, %v1319
        %v1382 = vsel %vm1350, %v1349, %v1318
        %vm1383 = vmand %vm893, %vm989
        %vm1384 = vmand %vm894, %vm990
        %vm1385 = vmand %vm895, %vm991
        %vm1386 = vmand %vm896, %vm992
        %vm1387 = vmand %vm897, %vm993
        %vm1388 = vmand %vm898, %vm994
        %vm1389 = vmand %vm899, %vm995
        %vm1390 = vmand %vm900, %vm996
        %vm1391 = vmand %vm901, %vm997
        %vm1392 = vmand %vm902, %vm998
        %vm1393 = vmand %vm903, %vm999
        %vm1394 = vmand %vm904, %vm1000
        %vm1395 = vmand %vm905, %vm1001
        %vm1396 = vmand %vm906, %vm1002
        %vm1397 = vmand %vm907, %vm1003
        %vm1398 = vmand %vm908, %vm1004
        %vm1399 = vmand %vm909, %vm1005
        %vm1400 = vmand %vm910, %vm1006
        %vm1401 = vmand %vm911, %vm1007
        %vm1402 = vmand %vm912, %vm1008
        %vm1403 = vmand %vm913, %vm1009
        %vm1404 = vmand %vm914, %vm1010
        %vm1405 = vmand %vm915, %vm1011
        %vm1406 = vmand %vm916, %vm1012
        %vm1407 = vmand %vm917, %vm1013
        %vm1408 = vmand %vm918, %vm1014
        %vm1409 = vmand %vm919, %vm1015
        %vm1410 = vmand %vm920, %vm1016
        %vm1411 = vmand %vm921, %vm1017
        %vm1412 = vmand %vm922, %vm1018
        %vm1413 = vmand %vm923, %vm1019
        %vm1414 = vmand %vm924, %vm1020
        %v1415 = vsel %vm1383, %v1351, 0.0
        %v1416 = vsel %vm1384, %v1382, 0.0
        %v1417 = vsel %vm1385, %v1381, 0.0
        %v1418 = vsel %vm1386, %v1380, 0.0
        %v1419 = vsel %vm1387, %v1379, 0.0
        %v1420 = vsel %vm1388, %v1378, 0.0
        %v1421 = vsel %vm1389, %v1377, 0.0
        %v1422 = vsel %vm1390, %v1376, 0.0
        %v1423 = vsel %vm1391, %v1375, 0.0
        %v1424 = vsel %vm1392, %v1374, 0.0
        %v1425 = vsel %vm1393, %v1373, 0.0
        %v1426 = vsel %vm1394, %v1372, 0.0
        %v1427 = vsel %vm1395, %v1371, 0.0
        %v1428 = vsel %vm1396, %v1370, 0.0
        %v1429 = vsel %vm1397, %v1369, 0.0
        %v1430 = vsel %vm1398, %v1368, 0.0
        %v1431 = vsel %vm1399, %v1367, 0.0
        %v1432 = vsel %vm1400, %v1366, 0.0
        %v1433 = vsel %vm1401, %v1365, 0.0
        %v1434 = vsel %vm1402, %v1364, 0.0
        %v1435 = vsel %vm1403, %v1363, 0.0
        %v1436 = vsel %vm1404, %v1362, 0.0
        %v1437 = vsel %vm1405, %v1361, 0.0
        %v1438 = vsel %vm1406, %v1360, 0.0
        %v1439 = vsel %vm1407, %v1359, 0.0
        %v1440 = vsel %vm1408, %v1358, 0.0
        %v1441 = vsel %vm1409, %v1357, 0.0
        %v1442 = vsel %vm1410, %v1356, 0.0
        %v1443 = vsel %vm1411, %v1355, 0.0
        %v1444 = vsel %vm1412, %v1354, 0.0
        %v1445 = vsel %vm1413, %v1353, 0.0
        %v1446 = vsel %vm1414, %v1352, 0.0
        %v1447 = vlaneseq
        %v1448 = vshrl.u32 %v1447, 7
        %v1449 = vsub.s32 2, %v1448
        %v1450 = vrot.slane %v826, %v1449
        %v1451 = vmul.f32 %v1415, %v1450
        %v1452 = vmul.f32 %v1416, %v1450
        %v1453 = vmul.f32 %v1417, %v1450
        %v1454 = vmul.f32 %v1418, %v1450
        %v1455 = vmul.f32 %v1419, %v1450
        %v1456 = vmul.f32 %v1420, %v1450
        %v1457 = vmul.f32 %v1421, %v1450
        %v1458 = vmul.f32 %v1422, %v1450
        %v1459 = vmul.f32 %v1423, %v1450
        %v1460 = vmul.f32 %v1424, %v1450
        %v1461 = vmul.f32 %v1425, %v1450
        %v1462 = vmul.f32 %v1426, %v1450
        %v1463 = vmul.f32 %v1427, %v1450
        %v1464 = vmul.f32 %v1428, %v1450
        %v1465 = vmul.f32 %v1429, %v1450
        %v1466 = vmul.f32 %v1430, %v1450
        %v1467 = vmul.f32 %v1431, %v1450
        %v1468 = vmul.f32 %v1432, %v1450
        %v1469 = vmul.f32 %v1433, %v1450
        %v1470 = vmul.f32 %v1434, %v1450
        %v1471 = vmul.f32 %v1435, %v1450
        %v1472 = vmul.f32 %v1436, %v1450
        %v1473 = vmul.f32 %v1437, %v1450
        %v1474 = vmul.f32 %v1438, %v1450
        %v1475 = vmul.f32 %v1439, %v1450
        %v1476 = vmul.f32 %v1440, %v1450
        %v1477 = vmul.f32 %v1441, %v1450
        %v1478 = vmul.f32 %v1442, %v1450
        %v1479 = vmul.f32 %v1443, %v1450
        %v1480 = vmul.f32 %v1444, %v1450
        %v1481 = vmul.f32 %v1445, %v1450
        %v1482 = vmul.f32 %v1446, %v1450
        %v1483 = vadd.f32 %v1286, %v1451
        %v1484 = vadd.f32 %v1287, %v1452
        %v1485 = vadd.f32 %v1288, %v1453
        %v1486 = vadd.f32 %v1289, %v1454
        %v1487 = vadd.f32 %v1290, %v1455
        %v1488 = vadd.f32 %v1291, %v1456
        %v1489 = vadd.f32 %v1292, %v1457
        %v1490 = vadd.f32 %v1293, %v1458
        %v1491 = vadd.f32 %v1294, %v1459
        %v1492 = vadd.f32 %v1295, %v1460
        %v1493 = vadd.f32 %v1296, %v1461
        %v1494 = vadd.f32 %v1297, %v1462
        %v1495 = vadd.f32 %v1298, %v1463
        %v1496 = vadd.f32 %v1299, %v1464
        %v1497 = vadd.f32 %v1300, %v1465
        %v1498 = vadd.f32 %v1301, %v1466
        %v1499 = vadd.f32 %v1302, %v1467
        %v1500 = vadd.f32 %v1303, %v1468
        %v1501 = vadd.f32 %v1304, %v1469
        %v1502 = vadd.f32 %v1305, %v1470
        %v1503 = vadd.f32 %v1306, %v1471
        %v1504 = vadd.f32 %v1307, %v1472
        %v1505 = vadd.f32 %v1308, %v1473
        %v1506 = vadd.f32 %v1309, %v1474
        %v1507 = vadd.f32 %v1310, %v1475
        %v1508 = vadd.f32 %v1311, %v1476
        %v1509 = vadd.f32 %v1312, %v1477
        %v1510 = vadd.f32 %v1313, %v1478
        %v1511 = vadd.f32 %v1314, %v1479
        %v1512 = vadd.f32 %v1315, %v1480
        %v1513 = vadd.f32 %v1316, %v1481
        %v1514 = vadd.f32 %v1317, %v1482
        %v1515 = vsel %vm957, %v1085, 0.0
        %v1516 = vsel %vm958, %v1084, 0.0
        %v1517 = vsel %vm959, %v1083, 0.0
        %v1518 = vsel %vm960, %v1082, 0.0
        %v1519 = vsel %vm961, %v1081, 0.0
        %v1520 = vsel %vm962, %v1080, 0.0
        %v1521 = vsel %vm963, %v1079, 0.0
        %v1522 = vsel %vm964, %v1078, 0.0
        %v1523 = vsel %vm965, %v1077, 0.0
        %v1524 = vsel %vm966, %v1076, 0.0
        %v1525 = vsel %vm967, %v1075, 0.0
        %v1526 = vsel %vm968, %v1074, 0.0
        %v1527 = vsel %vm969, %v1073, 0.0
        %v1528 = vsel %vm970, %v1072, 0.0
        %v1529 = vsel %vm971, %v1071, 0.0
        %v1530 = vsel %vm972, %v1070, 0.0
        %v1531 = vsel %vm973, %v1069, 0.0
        %v1532 = vsel %vm974, %v1068, 0.0
        %v1533 = vsel %vm975, %v1067, 0.0
        %v1534 = vsel %vm976, %v1066, 0.0
        %v1535 = vsel %vm977, %v1065, 0.0
        %v1536 = vsel %vm978, %v1064, 0.0
        %v1537 = vsel %vm979, %v1063, 0.0
        %v1538 = vsel %vm980, %v1062, 0.0
        %v1539 = vsel %vm981, %v1061, 0.0
        %v1540 = vsel %vm982, %v1060, 0.0
        %v1541 = vsel %vm983, %v1059, 0.0
        %v1542 = vsel %vm984, %v1058, 0.0
        %v1543 = vsel %vm985, %v1057, 0.0
        %v1544 = vsel %vm986, %v1056, 0.0
        %v1545 = vsel %vm987, %v1055, 0.0
        %v1546 = vsel %vm988, %v1054, 0.0
        %v1547 = vlaneseq
        %v1548 = vshrl.u32 %v1547, 7
        %v1549 = vsub.s32 3, %v1548
        %v1550 = vrot.slane %v826, %v1549
        %v1551 = vmul.f32 %v1515, %v1550
        %v1552 = vmul.f32 %v1516, %v1550
        %v1553 = vmul.f32 %v1517, %v1550
        %v1554 = vmul.f32 %v1518, %v1550
        %v1555 = vmul.f32 %v1519, %v1550
        %v1556 = vmul.f32 %v1520, %v1550
        %v1557 = vmul.f32 %v1521, %v1550
        %v1558 = vmul.f32 %v1522, %v1550
        %v1559 = vmul.f32 %v1523, %v1550
        %v1560 = vmul.f32 %v1524, %v1550
        %v1561 = vmul.f32 %v1525, %v1550
        %v1562 = vmul.f32 %v1526, %v1550
        %v1563 = vmul.f32 %v1527, %v1550
        %v1564 = vmul.f32 %v1528, %v1550
        %v1565 = vmul.f32 %v1529, %v1550
        %v1566 = vmul.f32 %v1530, %v1550
        %v1567 = vmul.f32 %v1531, %v1550
        %v1568 = vmul.f32 %v1532, %v1550
        %v1569 = vmul.f32 %v1533, %v1550
        %v1570 = vmul.f32 %v1534, %v1550
        %v1571 = vmul.f32 %v1535, %v1550
        %v1572 = vmul.f32 %v1536, %v1550
        %v1573 = vmul.f32 %v1537, %v1550
        %v1574 = vmul.f32 %v1538, %v1550
        %v1575 = vmul.f32 %v1539, %v1550
        %v1576 = vmul.f32 %v1540, %v1550
        %v1577 = vmul.f32 %v1541, %v1550
        %v1578 = vmul.f32 %v1542, %v1550
        %v1579 = vmul.f32 %v1543, %v1550
        %v1580 = vmul.f32 %v1544, %v1550
        %v1581 = vmul.f32 %v1545, %v1550
        %v1582 = vmul.f32 %v1546, %v1550
        %v1583 = vadd.f32 %v1483, %v1551
        %v1584 = vadd.f32 %v1484, %v1552
        %v1585 = vadd.f32 %v1485, %v1553
        %v1586 = vadd.f32 %v1486, %v1554
        %v1587 = vadd.f32 %v1487, %v1555
        %v1588 = vadd.f32 %v1488, %v1556
        %v1589 = vadd.f32 %v1489, %v1557
        %v1590 = vadd.f32 %v1490, %v1558
        %v1591 = vadd.f32 %v1491, %v1559
        %v1592 = vadd.f32 %v1492, %v1560
        %v1593 = vadd.f32 %v1493, %v1561
        %v1594 = vadd.f32 %v1494, %v1562
        %v1595 = vadd.f32 %v1495, %v1563
        %v1596 = vadd.f32 %v1496, %v1564
        %v1597 = vadd.f32 %v1497, %v1565
        %v1598 = vadd.f32 %v1498, %v1566
        %v1599 = vadd.f32 %v1499, %v1567
        %v1600 = vadd.f32 %v1500, %v1568
        %v1601 = vadd.f32 %v1501, %v1569
        %v1602 = vadd.f32 %v1502, %v1570
        %v1603 = vadd.f32 %v1503, %v1571
        %v1604 = vadd.f32 %v1504, %v1572
        %v1605 = vadd.f32 %v1505, %v1573
        %v1606 = vadd.f32 %v1506, %v1574
        %v1607 = vadd.f32 %v1507, %v1575
        %v1608 = vadd.f32 %v1508, %v1576
        %v1609 = vadd.f32 %v1509, %v1577
        %v1610 = vadd.f32 %v1510, %v1578
        %v1611 = vadd.f32 %v1511, %v1579
        %v1612 = vadd.f32 %v1512, %v1580
        %v1613 = vadd.f32 %v1513, %v1581
        %v1614 = vadd.f32 %v1514, %v1582
        %v1615 = vlaneseq
        %v1616 = vshrl.u32 %v1615, 7
        %v1617 = vsub.s32 4, %v1616
        %v1618 = vrot.slane %v826, %v1617
        %v1619 = vmul.f32 %v700, %v1618
        %v1620 = vmul.f32 %v703, %v1618
        %v1621 = vmul.f32 %v708, %v1618
        %v1622 = vmul.f32 %v711, %v1618
        %v1623 = vmul.f32 %v716, %v1618
        %v1624 = vmul.f32 %v719, %v1618
        %v1625 = vmul.f32 %v724, %v1618
        %v1626 = vmul.f32 %v727, %v1618
        %v1627 = vmul.f32 %v732, %v1618
        %v1628 = vmul.f32 %v735, %v1618
        %v1629 = vmul.f32 %v740, %v1618
        %v1630 = vmul.f32 %v743, %v1618
        %v1631 = vmul.f32 %v748, %v1618
        %v1632 = vmul.f32 %v751, %v1618
        %v1633 = vmul.f32 %v756, %v1618
        %v1634 = vmul.f32 %v759, %v1618
        %v1635 = vmul.f32 %v764, %v1618
        %v1636 = vmul.f32 %v767, %v1618
        %v1637 = vmul.f32 %v772, %v1618
        %v1638 = vmul.f32 %v775, %v1618
        %v1639 = vmul.f32 %v780, %v1618
        %v1640 = vmul.f32 %v783, %v1618
        %v1641 = vmul.f32 %v788, %v1618
        %v1642 = vmul.f32 %v791, %v1618
        %v1643 = vmul.f32 %v796, %v1618
        %v1644 = vmul.f32 %v799, %v1618
        %v1645 = vmul.f32 %v804, %v1618
        %v1646 = vmul.f32 %v807, %v1618
        %v1647 = vmul.f32 %v812, %v1618
        %v1648 = vmul.f32 %v815, %v1618
        %v1649 = vmul.f32 %v820, %v1618
        %v1650 = vmul.f32 %v823, %v1618
        %v1651 = vadd.f32 %v1583, %v1619
        %v1652 = vadd.f32 %v1584, %v1620
        %v1653 = vadd.f32 %v1585, %v1621
        %v1654 = vadd.f32 %v1586, %v1622
        %v1655 = vadd.f32 %v1587, %v1623
        %v1656 = vadd.f32 %v1588, %v1624
        %v1657 = vadd.f32 %v1589, %v1625
        %v1658 = vadd.f32 %v1590, %v1626
        %v1659 = vadd.f32 %v1591, %v1627
        %v1660 = vadd.f32 %v1592, %v1628
        %v1661 = vadd.f32 %v1593, %v1629
        %v1662 = vadd.f32 %v1594, %v1630
        %v1663 = vadd.f32 %v1595, %v1631
        %v1664 = vadd.f32 %v1596, %v1632
        %v1665 = vadd.f32 %v1597, %v1633
        %v1666 = vadd.f32 %v1598, %v1634
        %v1667 = vadd.f32 %v1599, %v1635
        %v1668 = vadd.f32 %v1600, %v1636
        %v1669 = vadd.f32 %v1601, %v1637
        %v1670 = vadd.f32 %v1602, %v1638
        %v1671 = vadd.f32 %v1603, %v1639
        %v1672 = vadd.f32 %v1604, %v1640
        %v1673 = vadd.f32 %v1605, %v1641
        %v1674 = vadd.f32 %v1606, %v1642
        %v1675 = vadd.f32 %v1607, %v1643
        %v1676 = vadd.f32 %v1608, %v1644
        %v1677 = vadd.f32 %v1609, %v1645
        %v1678 = vadd.f32 %v1610, %v1646
        %v1679 = vadd.f32 %v1611, %v1647
        %v1680 = vadd.f32 %v1612, %v1648
        %v1681 = vadd.f32 %v1613, %v1649
        %v1682 = vadd.f32 %v1614, %v1650
        %v1683 = vsel %vm989, %v1381, 0.0
        %v1684 = vsel %vm990, %v1380, 0.0
        %v1685 = vsel %vm991, %v1379, 0.0
        %v1686 = vsel %vm992, %v1378, 0.0
        %v1687 = vsel %vm993, %v1377, 0.0
        %v1688 = vsel %vm994, %v1376, 0.0
        %v1689 = vsel %vm995, %v1375, 0.0
        %v1690 = vsel %vm996, %v1374, 0.0
        %v1691 = vsel %vm997, %v1373, 0.0
        %v1692 = vsel %vm998, %v1372, 0.0
        %v1693 = vsel %vm999, %v1371, 0.0
        %v1694 = vsel %vm1000, %v1370, 0.0
        %v1695 = vsel %vm1001, %v1369, 0.0
        %v1696 = vsel %vm1002, %v1368, 0.0
        %v1697 = vsel %vm1003, %v1367, 0.0
        %v1698 = vsel %vm1004, %v1366, 0.0
        %v1699 = vsel %vm1005, %v1365, 0.0
        %v1700 = vsel %vm1006, %v1364, 0.0
        %v1701 = vsel %vm1007, %v1363, 0.0
        %v1702 = vsel %vm1008, %v1362, 0.0
        %v1703 = vsel %vm1009, %v1361, 0.0
        %v1704 = vsel %vm1010, %v1360, 0.0
        %v1705 = vsel %vm1011, %v1359, 0.0
        %v1706 = vsel %vm1012, %v1358, 0.0
        %v1707 = vsel %vm1013, %v1357, 0.0
        %v1708 = vsel %vm1014, %v1356, 0.0
        %v1709 = vsel %vm1015, %v1355, 0.0
        %v1710 = vsel %vm1016, %v1354, 0.0
        %v1711 = vsel %vm1017, %v1353, 0.0
        %v1712 = vsel %vm1018, %v1352, 0.0
        %v1713 = vsel %vm1019, %v1351, 0.0
        %v1714 = vsel %vm1020, %v1382, 0.0
        %v1715 = vlaneseq
        %v1716 = vshrl.u32 %v1715, 7
        %v1717 = vsub.s32 5, %v1716
        %v1718 = vrot.slane %v826, %v1717
        %v1719 = vmul.f32 %v1683, %v1718
        %v1720 = vmul.f32 %v1684, %v1718
        %v1721 = vmul.f32 %v1685, %v1718
        %v1722 = vmul.f32 %v1686, %v1718
        %v1723 = vmul.f32 %v1687, %v1718
        %v1724 = vmul.f32 %v1688, %v1718
        %v1725 = vmul.f32 %v1689, %v1718
        %v1726 = vmul.f32 %v1690, %v1718
        %v1727 = vmul.f32 %v1691, %v1718
        %v1728 = vmul.f32 %v1692, %v1718
        %v1729 = vmul.f32 %v1693, %v1718
        %v1730 = vmul.f32 %v1694, %v1718
        %v1731 = vmul.f32 %v1695, %v1718
        %v1732 = vmul.f32 %v1696, %v1718
        %v1733 = vmul.f32 %v1697, %v1718
        %v1734 = vmul.f32 %v1698, %v1718
        %v1735 = vmul.f32 %v1699, %v1718
        %v1736 = vmul.f32 %v1700, %v1718
        %v1737 = vmul.f32 %v1701, %v1718
        %v1738 = vmul.f32 %v1702, %v1718
        %v1739 = vmul.f32 %v1703, %v1718
        %v1740 = vmul.f32 %v1704, %v1718
        %v1741 = vmul.f32 %v1705, %v1718
        %v1742 = vmul.f32 %v1706, %v1718
        %v1743 = vmul.f32 %v1707, %v1718
        %v1744 = vmul.f32 %v1708, %v1718
        %v1745 = vmul.f32 %v1709, %v1718
        %v1746 = vmul.f32 %v1710, %v1718
        %v1747 = vmul.f32 %v1711, %v1718
        %v1748 = vmul.f32 %v1712, %v1718
        %v1749 = vmul.f32 %v1713, %v1718
        %v1750 = vmul.f32 %v1714, %v1718
        %v1751 = vadd.f32 %v1651, %v1719
        %v1752 = vadd.f32 %v1652, %v1720
        %v1753 = vadd.f32 %v1653, %v1721
        %v1754 = vadd.f32 %v1654, %v1722
        %v1755 = vadd.f32 %v1655, %v1723
        %v1756 = vadd.f32 %v1656, %v1724
        %v1757 = vadd.f32 %v1657, %v1725
        %v1758 = vadd.f32 %v1658, %v1726
        %v1759 = vadd.f32 %v1659, %v1727
        %v1760 = vadd.f32 %v1660, %v1728
        %v1761 = vadd.f32 %v1661, %v1729
        %v1762 = vadd.f32 %v1662, %v1730
        %v1763 = vadd.f32 %v1663, %v1731
        %v1764 = vadd.f32 %v1664, %v1732
        %v1765 = vadd.f32 %v1665, %v1733
        %v1766 = vadd.f32 %v1666, %v1734
        %v1767 = vadd.f32 %v1667, %v1735
        %v1768 = vadd.f32 %v1668, %v1736
        %v1769 = vadd.f32 %v1669, %v1737
        %v1770 = vadd.f32 %v1670, %v1738
        %v1771 = vadd.f32 %v1671, %v1739
        %v1772 = vadd.f32 %v1672, %v1740
        %v1773 = vadd.f32 %v1673, %v1741
        %v1774 = vadd.f32 %v1674, %v1742
        %v1775 = vadd.f32 %v1675, %v1743
        %v1776 = vadd.f32 %v1676, %v1744
        %v1777 = vadd.f32 %v1677, %v1745
        %v1778 = vadd.f32 %v1678, %v1746
        %v1779 = vadd.f32 %v1679, %v1747
        %v1780 = vadd.f32 %v1680, %v1748
        %v1781 = vadd.f32 %v1681, %v1749
        %v1782 = vadd.f32 %v1682, %v1750
        %vm1783 = vmand %vm925, %vm957
        %vm1784 = vmand %vm926, %vm958
        %vm1785 = vmand %vm927, %vm959
        %vm1786 = vmand %vm928, %vm960
        %vm1787 = vmand %vm929, %vm961
        %vm1788 = vmand %vm930, %vm962
        %vm1789 = vmand %vm931, %vm963
        %vm1790 = vmand %vm932, %vm964
        %vm1791 = vmand %vm933, %vm965
        %vm1792 = vmand %vm934, %vm966
        %vm1793 = vmand %vm935, %vm967
        %vm1794 = vmand %vm936, %vm968
        %vm1795 = vmand %vm937, %vm969
        %vm1796 = vmand %vm938, %vm970
        %vm1797 = vmand %vm939, %vm971
        %vm1798 = vmand %vm940, %vm972
        %vm1799 = vmand %vm941, %vm973
        %vm1800 = vmand %vm942, %vm974
        %vm1801 = vmand %vm943, %vm975
        %vm1802 = vmand %vm944, %vm976
        %vm1803 = vmand %vm945, %vm977
        %vm1804 = vmand %vm946, %vm978
        %vm1805 = vmand %vm947, %vm979
        %vm1806 = vmand %vm948, %vm980
        %vm1807 = vmand %vm949, %vm981
        %vm1808 = vmand %vm950, %vm982
        %vm1809 = vmand %vm951, %vm983
        %vm1810 = vmand %vm952, %vm984
        %vm1811 = vmand %vm953, %vm985
        %vm1812 = vmand %vm954, %vm986
        %vm1813 = vmand %vm955, %vm987
        %vm1814 = vmand %vm956, %vm988
        %v1815 = vsel %vm1783, %v1083, 0.0
        %v1816 = vsel %vm1784, %v1082, 0.0
        %v1817 = vsel %vm1785, %v1081, 0.0
        %v1818 = vsel %vm1786, %v1080, 0.0
        %v1819 = vsel %vm1787, %v1079, 0.0
        %v1820 = vsel %vm1788, %v1078, 0.0
        %v1821 = vsel %vm1789, %v1077, 0.0
        %v1822 = vsel %vm1790, %v1076, 0.0
        %v1823 = vsel %vm1791, %v1075, 0.0
        %v1824 = vsel %vm1792, %v1074, 0.0
        %v1825 = vsel %vm1793, %v1073, 0.0
        %v1826 = vsel %vm1794, %v1072, 0.0
        %v1827 = vsel %vm1795, %v1071, 0.0
        %v1828 = vsel %vm1796, %v1070, 0.0
        %v1829 = vsel %vm1797, %v1069, 0.0
        %v1830 = vsel %vm1798, %v1068, 0.0
        %v1831 = vsel %vm1799, %v1067, 0.0
        %v1832 = vsel %vm1800, %v1066, 0.0
        %v1833 = vsel %vm1801, %v1065, 0.0
        %v1834 = vsel %vm1802, %v1064, 0.0
        %v1835 = vsel %vm1803, %v1063, 0.0
        %v1836 = vsel %vm1804, %v1062, 0.0
        %v1837 = vsel %vm1805, %v1061, 0.0
        %v1838 = vsel %vm1806, %v1060, 0.0
        %v1839 = vsel %vm1807, %v1059, 0.0
        %v1840 = vsel %vm1808, %v1058, 0.0
        %v1841 = vsel %vm1809, %v1057, 0.0
        %v1842 = vsel %vm1810, %v1056, 0.0
        %v1843 = vsel %vm1811, %v1055, 0.0
        %v1844 = vsel %vm1812, %v1054, 0.0
        %v1845 = vsel %vm1813, %v1085, 0.0
        %v1846 = vsel %vm1814, %v1084, 0.0
        %v1847 = vlaneseq
        %v1848 = vshrl.u32 %v1847, 7
        %v1849 = vsub.s32 6, %v1848
        %v1850 = vrot.slane %v826, %v1849
        %v1851 = vmul.f32 %v1815, %v1850
        %v1852 = vmul.f32 %v1816, %v1850
        %v1853 = vmul.f32 %v1817, %v1850
        %v1854 = vmul.f32 %v1818, %v1850
        %v1855 = vmul.f32 %v1819, %v1850
        %v1856 = vmul.f32 %v1820, %v1850
        %v1857 = vmul.f32 %v1821, %v1850
        %v1858 = vmul.f32 %v1822, %v1850
        %v1859 = vmul.f32 %v1823, %v1850
        %v1860 = vmul.f32 %v1824, %v1850
        %v1861 = vmul.f32 %v1825, %v1850
        %v1862 = vmul.f32 %v1826, %v1850
        %v1863 = vmul.f32 %v1827, %v1850
        %v1864 = vmul.f32 %v1828, %v1850
        %v1865 = vmul.f32 %v1829, %v1850
        %v1866 = vmul.f32 %v1830, %v1850
        %v1867 = vmul.f32 %v1831, %v1850
        %v1868 = vmul.f32 %v1832, %v1850
        %v1869 = vmul.f32 %v1833, %v1850
        %v1870 = vmul.f32 %v1834, %v1850
        %v1871 = vmul.f32 %v1835, %v1850
        %v1872 = vmul.f32 %v1836, %v1850
        %v1873 = vmul.f32 %v1837, %v1850
        %v1874 = vmul.f32 %v1838, %v1850
        %v1875 = vmul.f32 %v1839, %v1850
        %v1876 = vmul.f32 %v1840, %v1850
        %v1877 = vmul.f32 %v1841, %v1850
        %v1878 = vmul.f32 %v1842, %v1850
        %v1879 = vmul.f32 %v1843, %v1850
        %v1880 = vmul.f32 %v1844, %v1850
        %v1881 = vmul.f32 %v1845, %v1850
        %v1882 = vmul.f32 %v1846, %v1850
        %v1883 = vadd.f32 %v1751, %v1851
        %v1884 = vadd.f32 %v1752, %v1852
        %v1885 = vadd.f32 %v1753, %v1853
        %v1886 = vadd.f32 %v1754, %v1854
        %v1887 = vadd.f32 %v1755, %v1855
        %v1888 = vadd.f32 %v1756, %v1856
        %v1889 = vadd.f32 %v1757, %v1857
        %v1890 = vadd.f32 %v1758, %v1858
        %v1891 = vadd.f32 %v1759, %v1859
        %v1892 = vadd.f32 %v1760, %v1860
        %v1893 = vadd.f32 %v1761, %v1861
        %v1894 = vadd.f32 %v1762, %v1862
        %v1895 = vadd.f32 %v1763, %v1863
        %v1896 = vadd.f32 %v1764, %v1864
        %v1897 = vadd.f32 %v1765, %v1865
        %v1898 = vadd.f32 %v1766, %v1866
        %v1899 = vadd.f32 %v1767, %v1867
        %v1900 = vadd.f32 %v1768, %v1868
        %v1901 = vadd.f32 %v1769, %v1869
        %v1902 = vadd.f32 %v1770, %v1870
        %v1903 = vadd.f32 %v1771, %v1871
        %v1904 = vadd.f32 %v1772, %v1872
        %v1905 = vadd.f32 %v1773, %v1873
        %v1906 = vadd.f32 %v1774, %v1874
        %v1907 = vadd.f32 %v1775, %v1875
        %v1908 = vadd.f32 %v1776, %v1876
        %v1909 = vadd.f32 %v1777, %v1877
        %v1910 = vadd.f32 %v1778, %v1878
        %v1911 = vadd.f32 %v1779, %v1879
        %v1912 = vadd.f32 %v1780, %v1880
        %v1913 = vadd.f32 %v1781, %v1881
        %v1914 = vadd.f32 %v1782, %v1882
        %v1915 = vsel %vm925, %v708, 0.0
        %v1916 = vsel %vm926, %v711, 0.0
        %v1917 = vsel %vm927, %v716, 0.0
        %v1918 = vsel %vm928, %v719, 0.0
        %v1919 = vsel %vm929, %v724, 0.0
        %v1920 = vsel %vm930, %v727, 0.0
        %v1921 = vsel %vm931, %v732, 0.0
        %v1922 = vsel %vm932, %v735, 0.0
        %v1923 = vsel %vm933, %v740, 0.0
        %v1924 = vsel %vm934, %v743, 0.0
        %v1925 = vsel %vm935, %v748, 0.0
        %v1926 = vsel %vm936, %v751, 0.0
        %v1927 = vsel %vm937, %v756, 0.0
        %v1928 = vsel %vm938, %v759, 0.0
        %v1929 = vsel %vm939, %v764, 0.0
        %v1930 = vsel %vm940, %v767, 0.0
        %v1931 = vsel %vm941, %v772, 0.0
        %v1932 = vsel %vm942, %v775, 0.0
        %v1933 = vsel %vm943, %v780, 0.0
        %v1934 = vsel %vm944, %v783, 0.0
        %v1935 = vsel %vm945, %v788, 0.0
        %v1936 = vsel %vm946, %v791, 0.0
        %v1937 = vsel %vm947, %v796, 0.0
        %v1938 = vsel %vm948, %v799, 0.0
        %v1939 = vsel %vm949, %v804, 0.0
        %v1940 = vsel %vm950, %v807, 0.0
        %v1941 = vsel %vm951, %v812, 0.0
        %v1942 = vsel %vm952, %v815, 0.0
        %v1943 = vsel %vm953, %v820, 0.0
        %v1944 = vsel %vm954, %v823, 0.0
        %v1945 = vsel %vm955, %v700, 0.0
        %v1946 = vsel %vm956, %v703, 0.0
        %v1947 = vlaneseq
        %v1948 = vshrl.u32 %v1947, 7
        %v1949 = vsub.s32 7, %v1948
        %v1950 = vrot.slane %v826, %v1949
        %v1951 = vmul.f32 %v1915, %v1950
        %v1952 = vmul.f32 %v1916, %v1950
        %v1953 = vmul.f32 %v1917, %v1950
        %v1954 = vmul.f32 %v1918, %v1950
        %v1955 = vmul.f32 %v1919, %v1950
        %v1956 = vmul.f32 %v1920, %v1950
        %v1957 = vmul.f32 %v1921, %v1950
        %v1958 = vmul.f32 %v1922, %v1950
        %v1959 = vmul.f32 %v1923, %v1950
        %v1960 = vmul.f32 %v1924, %v1950
        %v1961 = vmul.f32 %v1925, %v1950
        %v1962 = vmul.f32 %v1926, %v1950
        %v1963 = vmul.f32 %v1927, %v1950
        %v1964 = vmul.f32 %v1928, %v1950
        %v1965 = vmul.f32 %v1929, %v1950
        %v1966 = vmul.f32 %v1930, %v1950
        %v1967 = vmul.f32 %v1931, %v1950
        %v1968 = vmul.f32 %v1932, %v1950
        %v1969 = vmul.f32 %v1933, %v1950
        %v1970 = vmul.f32 %v1934, %v1950
        %v1971 = vmul.f32 %v1935, %v1950
        %v1972 = vmul.f32 %v1936, %v1950
        %v1973 = vmul.f32 %v1937, %v1950
        %v1974 = vmul.f32 %v1938, %v1950
        %v1975 = vmul.f32 %v1939, %v1950
        %v1976 = vmul.f32 %v1940, %v1950
        %v1977 = vmul.f32 %v1941, %v1950
        %v1978 = vmul.f32 %v1942, %v1950
        %v1979 = vmul.f32 %v1943, %v1950
        %v1980 = vmul.f32 %v1944, %v1950
        %v1981 = vmul.f32 %v1945, %v1950
        %v1982 = vmul.f32 %v1946, %v1950
        %v1983 = vadd.f32 %v1883, %v1951
        %v1984 = vadd.f32 %v1884, %v1952
        %v1985 = vadd.f32 %v1885, %v1953
        %v1986 = vadd.f32 %v1886, %v1954
        %v1987 = vadd.f32 %v1887, %v1955
        %v1988 = vadd.f32 %v1888, %v1956
        %v1989 = vadd.f32 %v1889, %v1957
        %v1990 = vadd.f32 %v1890, %v1958
        %v1991 = vadd.f32 %v1891, %v1959
        %v1992 = vadd.f32 %v1892, %v1960
        %v1993 = vadd.f32 %v1893, %v1961
        %v1994 = vadd.f32 %v1894, %v1962
        %v1995 = vadd.f32 %v1895, %v1963
        %v1996 = vadd.f32 %v1896, %v1964
        %v1997 = vadd.f32 %v1897, %v1965
        %v1998 = vadd.f32 %v1898, %v1966
        %v1999 = vadd.f32 %v1899, %v1967
        %v2000 = vadd.f32 %v1900, %v1968
        %v2001 = vadd.f32 %v1901, %v1969
        %v2002 = vadd.f32 %v1902, %v1970
        %v2003 = vadd.f32 %v1903, %v1971
        %v2004 = vadd.f32 %v1904, %v1972
        %v2005 = vadd.f32 %v1905, %v1973
        %v2006 = vadd.f32 %v1906, %v1974
        %v2007 = vadd.f32 %v1907, %v1975
        %v2008 = vadd.f32 %v1908, %v1976
        %v2009 = vadd.f32 %v1909, %v1977
        %v2010 = vadd.f32 %v1910, %v1978
        %v2011 = vadd.f32 %v1911, %v1979
        %v2012 = vadd.f32 %v1912, %v1980
        %v2013 = vadd.f32 %v1913, %v1981
        %v2014 = vadd.f32 %v1914, %v1982
        %vm2015 = vmand %vm925, %vm989
        %vm2016 = vmand %vm926, %vm990
        %vm2017 = vmand %vm927, %vm991
        %vm2018 = vmand %vm928, %vm992
        %vm2019 = vmand %vm929, %vm993
        %vm2020 = vmand %vm930, %vm994
        %vm2021 = vmand %vm931, %vm995
        %vm2022 = vmand %vm932, %vm996
        %vm2023 = vmand %vm933, %vm997
        %vm2024 = vmand %vm934, %vm998
        %vm2025 = vmand %vm935, %vm999
        %vm2026 = vmand %vm936, %vm1000
        %vm2027 = vmand %vm937, %vm1001
        %vm2028 = vmand %vm938, %vm1002
        %vm2029 = vmand %vm939, %vm1003
        %vm2030 = vmand %vm940, %vm1004
        %vm2031 = vmand %vm941, %vm1005
        %vm2032 = vmand %vm942, %vm1006
        %vm2033 = vmand %vm943, %vm1007
        %vm2034 = vmand %vm944, %vm1008
        %vm2035 = vmand %vm945, %vm1009
        %vm2036 = vmand %vm946, %vm1010
        %vm2037 = vmand %vm947, %vm1011
        %vm2038 = vmand %vm948, %vm1012
        %vm2039 = vmand %vm949, %vm1013
        %vm2040 = vmand %vm950, %vm1014
        %vm2041 = vmand %vm951, %vm1015
        %vm2042 = vmand %vm952, %vm1016
        %vm2043 = vmand %vm953, %vm1017
        %vm2044 = vmand %vm954, %vm1018
        %vm2045 = vmand %vm955, %vm1019
        %vm2046 = vmand %vm956, %vm1020
        %v2047 = vsel %vm2015, %v1379, 0.0
        %v2048 = vsel %vm2016, %v1378, 0.0
        %v2049 = vsel %vm2017, %v1377, 0.0
        %v2050 = vsel %vm2018, %v1376, 0.0
        %v2051 = vsel %vm2019, %v1375, 0.0
        %v2052 = vsel %vm2020, %v1374, 0.0
        %v2053 = vsel %vm2021, %v1373, 0.0
        %v2054 = vsel %vm2022, %v1372, 0.0
        %v2055 = vsel %vm2023, %v1371, 0.0
        %v2056 = vsel %vm2024, %v1370, 0.0
        %v2057 = vsel %vm2025, %v1369, 0.0
        %v2058 = vsel %vm2026, %v1368, 0.0
        %v2059 = vsel %vm2027, %v1367, 0.0
        %v2060 = vsel %vm2028, %v1366, 0.0
        %v2061 = vsel %vm2029, %v1365, 0.0
        %v2062 = vsel %vm2030, %v1364, 0.0
        %v2063 = vsel %vm2031, %v1363, 0.0
        %v2064 = vsel %vm2032, %v1362, 0.0
        %v2065 = vsel %vm2033, %v1361, 0.0
        %v2066 = vsel %vm2034, %v1360, 0.0
        %v2067 = vsel %vm2035, %v1359, 0.0
        %v2068 = vsel %vm2036, %v1358, 0.0
        %v2069 = vsel %vm2037, %v1357, 0.0
        %v2070 = vsel %vm2038, %v1356, 0.0
        %v2071 = vsel %vm2039, %v1355, 0.0
        %v2072 = vsel %vm2040, %v1354, 0.0
        %v2073 = vsel %vm2041, %v1353, 0.0
        %v2074 = vsel %vm2042, %v1352, 0.0
        %v2075 = vsel %vm2043, %v1351, 0.0
        %v2076 = vsel %vm2044, %v1382, 0.0
        %v2077 = vsel %vm2045, %v1381, 0.0
        %v2078 = vsel %vm2046, %v1380, 0.0
        %v2079 = vlaneseq
        %v2080 = vshrl.u32 %v2079, 7
        %v2081 = vsub.s32 0, %v2080
        %v2082 = vrot.slane %v827, %v2081
        %v2083 = vmul.f32 %v2047, %v2082
        %v2084 = vmul.f32 %v2048, %v2082
        %v2085 = vmul.f32 %v2049, %v2082
        %v2086 = vmul.f32 %v2050, %v2082
        %v2087 = vmul.f32 %v2051, %v2082
        %v2088 = vmul.f32 %v2052, %v2082
        %v2089 = vmul.f32 %v2053, %v2082
        %v2090 = vmul.f32 %v2054, %v2082
        %v2091 = vmul.f32 %v2055, %v2082
        %v2092 = vmul.f32 %v2056, %v2082
        %v2093 = vmul.f32 %v2057, %v2082
        %v2094 = vmul.f32 %v2058, %v2082
        %v2095 = vmul.f32 %v2059, %v2082
        %v2096 = vmul.f32 %v2060, %v2082
        %v2097 = vmul.f32 %v2061, %v2082
        %v2098 = vmul.f32 %v2062, %v2082
        %v2099 = vmul.f32 %v2063, %v2082
        %v2100 = vmul.f32 %v2064, %v2082
        %v2101 = vmul.f32 %v2065, %v2082
        %v2102 = vmul.f32 %v2066, %v2082
        %v2103 = vmul.f32 %v2067, %v2082
        %v2104 = vmul.f32 %v2068, %v2082
        %v2105 = vmul.f32 %v2069, %v2082
        %v2106 = vmul.f32 %v2070, %v2082
        %v2107 = vmul.f32 %v2071, %v2082
        %v2108 = vmul.f32 %v2072, %v2082
        %v2109 = vmul.f32 %v2073, %v2082
        %v2110 = vmul.f32 %v2074, %v2082
        %v2111 = vmul.f32 %v2075, %v2082
        %v2112 = vmul.f32 %v2076, %v2082
        %v2113 = vmul.f32 %v2077, %v2082
        %v2114 = vmul.f32 %v2078, %v2082
        %v2115 = vadd.f32 %v1983, %v2083
        %v2116 = vadd.f32 %v1984, %v2084
        %v2117 = vadd.f32 %v1985, %v2085
        %v2118 = vadd.f32 %v1986, %v2086
        %v2119 = vadd.f32 %v1987, %v2087
        %v2120 = vadd.f32 %v1988, %v2088
        %v2121 = vadd.f32 %v1989, %v2089
        %v2122 = vadd.f32 %v1990, %v2090
        %v2123 = vadd.f32 %v1991, %v2091
        %v2124 = vadd.f32 %v1992, %v2092
        %v2125 = vadd.f32 %v1993, %v2093
        %v2126 = vadd.f32 %v1994, %v2094
        %v2127 = vadd.f32 %v1995, %v2095
        %v2128 = vadd.f32 %v1996, %v2096
        %v2129 = vadd.f32 %v1997, %v2097
        %v2130 = vadd.f32 %v1998, %v2098
        %v2131 = vadd.f32 %v1999, %v2099
        %v2132 = vadd.f32 %v2000, %v2100
        %v2133 = vadd.f32 %v2001, %v2101
        %v2134 = vadd.f32 %v2002, %v2102
        %v2135 = vadd.f32 %v2003, %v2103
        %v2136 = vadd.f32 %v2004, %v2104
        %v2137 = vadd.f32 %v2005, %v2105
        %v2138 = vadd.f32 %v2006, %v2106
        %v2139 = vadd.f32 %v2007, %v2107
        %v2140 = vadd.f32 %v2008, %v2108
        %v2141 = vadd.f32 %v2009, %v2109
        %v2142 = vadd.f32 %v2010, %v2110
        %v2143 = vadd.f32 %v2011, %v2111
        %v2144 = vadd.f32 %v2012, %v2112
        %v2145 = vadd.f32 %v2013, %v2113
        %v2146 = vadd.f32 %v2014, %v2114
        %v2147 = vld [vmem:[%s4] sm:$0x1]
        %v2149 = vlaneseq
        %v2150 = vshrl.u32 %v2149, 7
        %v2151 = vsub.s32 0, %v2150
        %v2152 = vrot.slane %v2147, %v2151
        %v2154 = vadd.f32 %v2115, %v2152
        %v2155 = vadd.f32 %v2116, %v2152
        %v2156 = vadd.f32 %v2117, %v2152
        %v2157 = vadd.f32 %v2118, %v2152
        %v2158 = vadd.f32 %v2119, %v2152
        %v2159 = vadd.f32 %v2120, %v2152
        %v2160 = vadd.f32 %v2121, %v2152
        %v2161 = vadd.f32 %v2122, %v2152
        %v2162 = vadd.f32 %v2123, %v2152
        %v2163 = vadd.f32 %v2124, %v2152
        %v2164 = vadd.f32 %v2125, %v2152
        %v2165 = vadd.f32 %v2126, %v2152
        %v2166 = vadd.f32 %v2127, %v2152
        %v2167 = vadd.f32 %v2128, %v2152
        %v2168 = vadd.f32 %v2129, %v2152
        %v2169 = vadd.f32 %v2130, %v2152
        %v2170 = vadd.f32 %v2131, %v2152
        %v2171 = vadd.f32 %v2132, %v2152
        %v2172 = vadd.f32 %v2133, %v2152
        %v2173 = vadd.f32 %v2134, %v2152
        %v2174 = vadd.f32 %v2135, %v2152
        %v2175 = vadd.f32 %v2136, %v2152
        %v2176 = vadd.f32 %v2137, %v2152
        %v2177 = vadd.f32 %v2138, %v2152
        %v2178 = vadd.f32 %v2139, %v2152
        %v2179 = vadd.f32 %v2140, %v2152
        %v2180 = vadd.f32 %v2141, %v2152
        %v2181 = vadd.f32 %v2142, %v2152
        %v2182 = vadd.f32 %v2143, %v2152
        %v2183 = vadd.f32 %v2144, %v2152
        %v2184 = vadd.f32 %v2145, %v2152
        %v2185 = vadd.f32 %v2146, %v2152
        %v2186 = vxor.u32 %v2154, 2147483648
        %v2187 = vxor.u32 %v2155, 2147483648
        %v2188 = vxor.u32 %v2156, 2147483648
        %v2189 = vxor.u32 %v2157, 2147483648
        %v2190 = vxor.u32 %v2158, 2147483648
        %v2191 = vxor.u32 %v2159, 2147483648
        %v2192 = vxor.u32 %v2160, 2147483648
        %v2193 = vxor.u32 %v2161, 2147483648
        %v2194 = vxor.u32 %v2162, 2147483648
        %v2195 = vxor.u32 %v2163, 2147483648
        %v2196 = vxor.u32 %v2164, 2147483648
        %v2197 = vxor.u32 %v2165, 2147483648
        %v2198 = vxor.u32 %v2166, 2147483648
        %v2199 = vxor.u32 %v2167, 2147483648
        %v2200 = vxor.u32 %v2168, 2147483648
        %v2201 = vxor.u32 %v2169, 2147483648
        %v2202 = vxor.u32 %v2170, 2147483648
        %v2203 = vxor.u32 %v2171, 2147483648
        %v2204 = vxor.u32 %v2172, 2147483648
        %v2205 = vxor.u32 %v2173, 2147483648
        %v2206 = vxor.u32 %v2174, 2147483648
        %v2207 = vxor.u32 %v2175, 2147483648
        %v2208 = vxor.u32 %v2176, 2147483648
        %v2209 = vxor.u32 %v2177, 2147483648
        %v2210 = vxor.u32 %v2178, 2147483648
        %v2211 = vxor.u32 %v2179, 2147483648
        %v2212 = vxor.u32 %v2180, 2147483648
        %v2213 = vxor.u32 %v2181, 2147483648
        %v2214 = vxor.u32 %v2182, 2147483648
        %v2215 = vxor.u32 %v2183, 2147483648
        %v2216 = vxor.u32 %v2184, 2147483648
        %v2217 = vxor.u32 %v2185, 2147483648
        %v2218 = vmul.f32 %v2186, 1.442695
        %v2219 = vpow.pop %v2218
        %v2220 = vmul.f32 %v2187, 1.442695
        %v2221 = vpow.pop %v2220
        %v2222 = vmul.f32 %v2188, 1.442695
        %v2223 = vpow.pop %v2222
        %v2224 = vmul.f32 %v2189, 1.442695
        %v2225 = vpow.pop %v2224
        %v2226 = vmul.f32 %v2190, 1.442695
        %v2227 = vpow.pop %v2226
        %v2228 = vmul.f32 %v2191, 1.442695
        %v2229 = vpow.pop %v2228
        %v2230 = vmul.f32 %v2192, 1.442695
        %v2231 = vpow.pop %v2230
        %v2232 = vmul.f32 %v2193, 1.442695
        %v2233 = vpow.pop %v2232
        %v2234 = vmul.f32 %v2194, 1.442695
        %v2235 = vpow.pop %v2234
        %v2236 = vmul.f32 %v2195, 1.442695
        %v2237 = vpow.pop %v2236
        %v2238 = vmul.f32 %v2196, 1.442695
        %v2239 = vpow.pop %v2238
        %v2240 = vmul.f32 %v2197, 1.442695
        %v2241 = vpow.pop %v2240
        %v2242 = vmul.f32 %v2198, 1.442695
        %v2243 = vpow.pop %v2242
        %v2244 = vmul.f32 %v2199, 1.442695
        %v2245 = vpow.pop %v2244
        %v2246 = vmul.f32 %v2200, 1.442695
        %v2247 = vpow.pop %v2246
        %v2248 = vmul.f32 %v2201, 1.442695
        %v2249 = vpow.pop %v2248
        %v2250 = vmul.f32 %v2202, 1.442695
        %v2251 = vpow.pop %v2250
        %v2252 = vmul.f32 %v2203, 1.442695
        %v2253 = vpow.pop %v2252
        %v2254 = vmul.f32 %v2204, 1.442695
        %v2255 = vpow.pop %v2254
        %v2256 = vmul.f32 %v2205, 1.442695
        %v2257 = vpow.pop %v2256
        %v2258 = vmul.f32 %v2206, 1.442695
        %v2259 = vpow.pop %v2258
        %v2260 = vmul.f32 %v2207, 1.442695
        %v2261 = vpow.pop %v2260
        %v2262 = vmul.f32 %v2208, 1.442695
        %v2263 = vpow.pop %v2262
        %v2264 = vmul.f32 %v2209, 1.442695
        %v2265 = vpow.pop %v2264
        %v2266 = vmul.f32 %v2210, 1.442695
        %v2267 = vpow.pop %v2266
        %v2268 = vmul.f32 %v2211, 1.442695
        %v2269 = vpow.pop %v2268
        %v2270 = vmul.f32 %v2212, 1.442695
        %v2271 = vpow.pop %v2270
        %v2272 = vmul.f32 %v2213, 1.442695
        %v2273 = vpow.pop %v2272
        %v2274 = vmul.f32 %v2214, 1.442695
        %v2275 = vpow.pop %v2274
        %v2276 = vmul.f32 %v2215, 1.442695
        %v2277 = vpow.pop %v2276
        %v2278 = vmul.f32 %v2216, 1.442695
        %v2279 = vpow.pop %v2278
        %v2280 = vmul.f32 %v2217, 1.442695
        %v2281 = vpow.pop %v2280
        %v2282 = vadd.f32 %v2219, 1.0
        %v2283 = vadd.f32 %v2221, 1.0
        %v2284 = vadd.f32 %v2223, 1.0
        %v2285 = vadd.f32 %v2225, 1.0
        %v2286 = vadd.f32 %v2227, 1.0
        %v2287 = vadd.f32 %v2229, 1.0
        %v2288 = vadd.f32 %v2231, 1.0
        %v2289 = vadd.f32 %v2233, 1.0
        %v2290 = vadd.f32 %v2235, 1.0
        %v2291 = vadd.f32 %v2237, 1.0
        %v2292 = vadd.f32 %v2239, 1.0
        %v2293 = vadd.f32 %v2241, 1.0
        %v2294 = vadd.f32 %v2243, 1.0
        %v2295 = vadd.f32 %v2245, 1.0
        %v2296 = vadd.f32 %v2247, 1.0
        %v2297 = vadd.f32 %v2249, 1.0
        %v2298 = vadd.f32 %v2251, 1.0
        %v2299 = vadd.f32 %v2253, 1.0
        %v2300 = vadd.f32 %v2255, 1.0
        %v2301 = vadd.f32 %v2257, 1.0
        %v2302 = vadd.f32 %v2259, 1.0
        %v2303 = vadd.f32 %v2261, 1.0
        %v2304 = vadd.f32 %v2263, 1.0
        %v2305 = vadd.f32 %v2265, 1.0
        %v2306 = vadd.f32 %v2267, 1.0
        %v2307 = vadd.f32 %v2269, 1.0
        %v2308 = vadd.f32 %v2271, 1.0
        %v2309 = vadd.f32 %v2273, 1.0
        %v2310 = vadd.f32 %v2275, 1.0
        %v2311 = vadd.f32 %v2277, 1.0
        %v2312 = vadd.f32 %v2279, 1.0
        %v2313 = vadd.f32 %v2281, 1.0
        %v2314 = vrcp.pop %v2282
        %v2315 = vmul.f32 1.0, %v2314
        %v2316 = vrcp.pop %v2283
        %v2317 = vmul.f32 1.0, %v2316
        %v2318 = vrcp.pop %v2284
        %v2319 = vmul.f32 1.0, %v2318
        %v2320 = vrcp.pop %v2285
        %v2321 = vmul.f32 1.0, %v2320
        %v2322 = vrcp.pop %v2286
        %v2323 = vmul.f32 1.0, %v2322
        %v2324 = vrcp.pop %v2287
        %v2325 = vmul.f32 1.0, %v2324
        %v2326 = vrcp.pop %v2288
        %v2327 = vmul.f32 1.0, %v2326
        %v2328 = vrcp.pop %v2289
        %v2329 = vmul.f32 1.0, %v2328
        %v2330 = vrcp.pop %v2290
        %v2331 = vmul.f32 1.0, %v2330
        %v2332 = vrcp.pop %v2291
        %v2333 = vmul.f32 1.0, %v2332
        %v2334 = vrcp.pop %v2292
        %v2335 = vmul.f32 1.0, %v2334
        %v2336 = vrcp.pop %v2293
        %v2337 = vmul.f32 1.0, %v2336
        %v2338 = vrcp.pop %v2294
        %v2339 = vmul.f32 1.0, %v2338
        %v2340 = vrcp.pop %v2295
        %v2341 = vmul.f32 1.0, %v2340
        %v2342 = vrcp.pop %v2296
        %v2343 = vmul.f32 1.0, %v2342
        %v2344 = vrcp.pop %v2297
        %v2345 = vmul.f32 1.0, %v2344
        %v2346 = vrcp.pop %v2298
        %v2347 = vmul.f32 1.0, %v2346
        %v2348 = vrcp.pop %v2299
        %v2349 = vmul.f32 1.0, %v2348
        %v2350 = vrcp.pop %v2300
        %v2351 = vmul.f32 1.0, %v2350
        %v2352 = vrcp.pop %v2301
        %v2353 = vmul.f32 1.0, %v2352
        %v2354 = vrcp.pop %v2302
        %v2355 = vmul.f32 1.0, %v2354
        %v2356 = vrcp.pop %v2303
        %v2357 = vmul.f32 1.0, %v2356
        %v2358 = vrcp.pop %v2304
        %v2359 = vmul.f32 1.0, %v2358
        %v2360 = vrcp.pop %v2305
        %v2361 = vmul.f32 1.0, %v2360
        %v2362 = vrcp.pop %v2306
        %v2363 = vmul.f32 1.0, %v2362
        %v2364 = vrcp.pop %v2307
        %v2365 = vmul.f32 1.0, %v2364
        %v2366 = vrcp.pop %v2308
        %v2367 = vmul.f32 1.0, %v2366
        %v2368 = vrcp.pop %v2309
        %v2369 = vmul.f32 1.0, %v2368
        %v2370 = vrcp.pop %v2310
        %v2371 = vmul.f32 1.0, %v2370
        %v2372 = vrcp.pop %v2311
        %v2373 = vmul.f32 1.0, %v2372
        %v2374 = vrcp.pop %v2312
        %v2375 = vmul.f32 1.0, %v2374
        %v2376 = vrcp.pop %v2313
        %v2377 = vmul.f32 1.0, %v2376
        %v2378 = vmul.f32 %v2154, %v2315
        %v2379 = vmul.f32 %v2155, %v2317
        %v2380 = vmul.f32 %v2156, %v2319
        %v2381 = vmul.f32 %v2157, %v2321
        %v2382 = vmul.f32 %v2158, %v2323
        %v2383 = vmul.f32 %v2159, %v2325
        %v2384 = vmul.f32 %v2160, %v2327
        %v2385 = vmul.f32 %v2161, %v2329
        %v2386 = vmul.f32 %v2162, %v2331
        %v2387 = vmul.f32 %v2163, %v2333
        %v2388 = vmul.f32 %v2164, %v2335
        %v2389 = vmul.f32 %v2165, %v2337
        %v2390 = vmul.f32 %v2166, %v2339
        %v2391 = vmul.f32 %v2167, %v2341
        %v2392 = vmul.f32 %v2168, %v2343
        %v2393 = vmul.f32 %v2169, %v2345
        %v2394 = vmul.f32 %v2170, %v2347
        %v2395 = vmul.f32 %v2171, %v2349
        %v2396 = vmul.f32 %v2172, %v2351
        %v2397 = vmul.f32 %v2173, %v2353
        %v2398 = vmul.f32 %v2174, %v2355
        %v2399 = vmul.f32 %v2175, %v2357
        %v2400 = vmul.f32 %v2176, %v2359
        %v2401 = vmul.f32 %v2177, %v2361
        %v2402 = vmul.f32 %v2178, %v2363
        %v2403 = vmul.f32 %v2179, %v2365
        %v2404 = vmul.f32 %v2180, %v2367
        %v2405 = vmul.f32 %v2181, %v2369
        %v2406 = vmul.f32 %v2182, %v2371
        %v2407 = vmul.f32 %v2183, %v2373
        %v2408 = vmul.f32 %v2184, %v2375
        %v2409 = vmul.f32 %v2185, %v2377
        %v2410 = vpack.c.bf16 %v2379, %v2378
        %v2411 = vpack.c.bf16 %v2381, %v2380
        %v2412 = vpack.c.bf16 %v2383, %v2382
        %v2413 = vpack.c.bf16 %v2385, %v2384
        %v2414 = vpack.c.bf16 %v2387, %v2386
        %v2415 = vpack.c.bf16 %v2389, %v2388
        %v2416 = vpack.c.bf16 %v2391, %v2390
        %v2417 = vpack.c.bf16 %v2393, %v2392
        %v2418 = vpack.c.bf16 %v2395, %v2394
        %v2419 = vpack.c.bf16 %v2397, %v2396
        %v2420 = vpack.c.bf16 %v2399, %v2398
        %v2421 = vpack.c.bf16 %v2401, %v2400
        %v2422 = vpack.c.bf16 %v2403, %v2402
        %v2423 = vpack.c.bf16 %v2405, %v2404
        %v2424 = vpack.c.bf16 %v2407, %v2406
        %v2425 = vpack.c.bf16 %v2409, %v2408
        %v2426 = vld [vmem:[#allocation9] sm:$0xf]
        %v2427 = vld [vmem:[#allocation9 + $0x4] sm:$0xf]
        %v2428 = vld [vmem:[#allocation9 + $0x8] sm:$0xf]
        %v2429 = vld [vmem:[#allocation9 + $0xc] sm:$0xf]
        %v2430 = vld [vmem:[#allocation9 + $0x10] sm:$0xf]
        %v2431 = vld [vmem:[#allocation9 + $0x14] sm:$0xf]
        %v2432 = vld [vmem:[#allocation9 + $0x18] sm:$0xf]
        %v2433 = vld [vmem:[#allocation9 + $0x1c] sm:$0xf]
        %v2434 = vld [vmem:[#allocation9 + $0x20] sm:$0xf]
        %v2435 = vld [vmem:[#allocation9 + $0x24] sm:$0xf]
        %v2436 = vld [vmem:[#allocation9 + $0x28] sm:$0xf]
        %v2437 = vld [vmem:[#allocation9 + $0x2c] sm:$0xf]
        %v2438 = vld [vmem:[#allocation9 + $0x30] sm:$0xf]
        %v2439 = vld [vmem:[#allocation9 + $0x34] sm:$0xf]
        %v2440 = vld [vmem:[#allocation9 + $0x38] sm:$0xf]
        %v2441 = vld [vmem:[#allocation9 + $0x3c] sm:$0xf]
        %v2442 = vld [vmem:[%s6] sm:$0x1]
        %v2444 = vlaneseq
        %v2445 = vshrl.u32 %v2444, 7
        %v2446 = vsub.s32 0, %v2445
        %v2447 = vrot.slane %v2442, %v2446
        %v2465 = vunpack.c.l.b16 %v2426
        %v2466 = vunpack.c.l.b16 %v2427
        %v2467 = vunpack.c.l.b16 %v2428
        %v2468 = vunpack.c.l.b16 %v2429
        %v2469 = vunpack.c.l.b16 %v2430
        %v2470 = vunpack.c.l.b16 %v2431
        %v2471 = vunpack.c.l.b16 %v2432
        %v2472 = vunpack.c.l.b16 %v2433
        %v2473 = vunpack.c.l.b16 %v2434
        %v2474 = vunpack.c.l.b16 %v2435
        %v2475 = vunpack.c.l.b16 %v2436
        %v2476 = vunpack.c.l.b16 %v2437
        %v2477 = vunpack.c.l.b16 %v2438
        %v2478 = vunpack.c.l.b16 %v2439
        %v2479 = vunpack.c.l.b16 %v2440
        %v2480 = vunpack.c.l.b16 %v2441
        %v2481 = vpack.c.b16 %v2466, %v2465
        %v2482 = vpack.c.b16 %v2468, %v2467
        %v2483 = vpack.c.b16 %v2470, %v2469
        %v2484 = vpack.c.b16 %v2472, %v2471
        %v2485 = vpack.c.b16 %v2474, %v2473
        %v2486 = vpack.c.b16 %v2476, %v2475
        %v2487 = vpack.c.b16 %v2478, %v2477
        %v2488 = vpack.c.b16 %v2480, %v2479
        %2497 = vmatprep.subr.bf16.mxu0 0
        %2498 = vmatpush1.bf16.msra.mxu0 %v2481
        %2499 = vmatprep.subr.bf16.mxu0 0
        %2500 = vmatpush1.bf16.msra.mxu0 %v2482
        %2501 = vmatprep.subr.bf16.mxu0 0
        %2502 = vmatpush1.bf16.msra.mxu0 %v2483
        %2503 = vmatprep.subr.bf16.mxu0 0
        %2504 = vmatpush1.bf16.msra.mxu0 %v2484
        %2505 = vmatprep.subr.bf16.mxu0 0
        %2506 = vmatpush1.bf16.msra.mxu0 %v2485
        %2507 = vmatprep.subr.bf16.mxu0 0
        %2508 = vmatpush1.bf16.msra.mxu0 %v2486
        %2509 = vmatprep.subr.bf16.mxu0 0
        %2510 = vmatpush1.bf16.msra.mxu0 %v2487
        %2511 = vmatprep.subr.bf16.mxu0 0
        %2512 = vmatpush1.bf16.msra.mxu0 %v2488
        %2513 = vmatprep.subr.bf16.mxu0 0
        %2514 = vmatpush1.bf16.msra.mxu0 0
        %2515 = vmatprep.subr.bf16.mxu0 0
        %2516 = vmatpush1.bf16.msra.mxu0 0
        %2517 = vmatprep.subr.bf16.mxu0 0
        %2518 = vmatpush1.bf16.msra.mxu0 0
        %2519 = vmatprep.subr.bf16.mxu0 0
        %2520 = vmatpush1.bf16.msra.mxu0 0
        %2521 = vmatprep.subr.bf16.mxu0 0
        %2522 = vmatpush1.bf16.msra.mxu0 0
        %2523 = vmatprep.subr.bf16.mxu0 0
        %2524 = vmatpush1.bf16.msra.mxu0 0
        %2525 = vmatprep.subr.bf16.mxu0 0
        %2526 = vmatpush1.bf16.msra.mxu0 0
        %2527 = vmatprep.subr.bf16.mxu0 0
        %2528 = vmatpush1.bf16.msra.mxu0 0
        %2529 = vmatprep.mubr.bf16.mxu0 0
        %2530 = vmatmul.mubr.bf16.gmra.mrb[0].mxu0 %v2410
        %v2531 = vpop.f32.mrb[0].mxu0
        %v2532 = vadd.f32 %v2447, %v2531
        %v2533 = vpop.f32.mrb[0].mxu0
        %v2534 = vpop.f32.mrb[0].mxu0
        %v2535 = vadd.f32 %v2447, %v2534
        %v2536 = vpop.f32.mrb[0].mxu0
        %2537 = vmatprep.mubr.bf16.mxu0 0
        %2538 = vmatmul.mubr.bf16.gmra.mrb[0].mxu0 %v2411
        %v2539 = vpop.f32.mrb[0].mxu0
        %v2540 = vadd.f32 %v2447, %v2539
        %v2541 = vpop.f32.mrb[0].mxu0
        %v2542 = vpop.f32.mrb[0].mxu0
        %v2543 = vadd.f32 %v2447, %v2542
        %v2544 = vpop.f32.mrb[0].mxu0
        %2545 = vmatprep.mubr.bf16.mxu0 0
        %2546 = vmatmul.mubr.bf16.gmra.mrb[0].mxu0 %v2412
        %v2547 = vpop.f32.mrb[0].mxu0
        %v2548 = vadd.f32 %v2447, %v2547
        %v2549 = vpop.f32.mrb[0].mxu0
        %v2550 = vpop.f32.mrb[0].mxu0
        %v2551 = vadd.f32 %v2447, %v2550
        %v2552 = vpop.f32.mrb[0].mxu0
        %2553 = vmatprep.mubr.bf16.mxu0 0
        %2554 = vmatmul.mubr.bf16.gmra.mrb[0].mxu0 %v2413
        %v2555 = vpop.f32.mrb[0].mxu0
        %v2556 = vadd.f32 %v2447, %v2555
        %v2557 = vpop.f32.mrb[0].mxu0
        %v2558 = vpop.f32.mrb[0].mxu0
        %v2559 = vadd.f32 %v2447, %v2558
        %v2560 = vpop.f32.mrb[0].mxu0
        %2561 = vmatprep.mubr.bf16.mxu0 0
        %2562 = vmatmul.mubr.bf16.gmra.mrb[0].mxu0 %v2414
        %v2563 = vpop.f32.mrb[0].mxu0
        %v2564 = vadd.f32 %v2447, %v2563
        %v2565 = vpop.f32.mrb[0].mxu0
        %v2566 = vpop.f32.mrb[0].mxu0
        %v2567 = vadd.f32 %v2447, %v2566
        %v2568 = vpop.f32.mrb[0].mxu0
        %2569 = vmatprep.mubr.bf16.mxu0 0
        %2570 = vmatmul.mubr.bf16.gmra.mrb[0].mxu0 %v2415
        %v2571 = vpop.f32.mrb[0].mxu0
        %v2572 = vadd.f32 %v2447, %v2571
        %v2573 = vpop.f32.mrb[0].mxu0
        %v2574 = vpop.f32.mrb[0].mxu0
        %v2575 = vadd.f32 %v2447, %v2574
        %v2576 = vpop.f32.mrb[0].mxu0
        %2577 = vmatprep.mubr.bf16.mxu0 0
        %2578 = vmatmul.mubr.bf16.gmra.mrb[0].mxu0 %v2416
        %v2579 = vpop.f32.mrb[0].mxu0
        %v2580 = vadd.f32 %v2447, %v2579
        %v2581 = vpop.f32.mrb[0].mxu0
        %v2582 = vpop.f32.mrb[0].mxu0
        %v2583 = vadd.f32 %v2447, %v2582
        %v2584 = vpop.f32.mrb[0].mxu0
        %2585 = vmatprep.mubr.bf16.mxu0 0
        %2586 = vmatmul.mubr.bf16.gmra.mrb[0].mxu0 %v2417
        %v2587 = vpop.f32.mrb[0].mxu0
        %v2588 = vadd.f32 %v2447, %v2587
        %v2589 = vpop.f32.mrb[0].mxu0
        %v2590 = vpop.f32.mrb[0].mxu0
        %v2591 = vadd.f32 %v2447, %v2590
        %v2592 = vpop.f32.mrb[0].mxu0
        %2593 = vmatprep.mubr.bf16.mxu0 0
        %2594 = vmatmul.mubr.bf16.gmra.mrb[0].mxu0 %v2418
        %v2595 = vpop.f32.mrb[0].mxu0
        %v2596 = vadd.f32 %v2447, %v2595
        %v2597 = vpop.f32.mrb[0].mxu0
        %v2598 = vpop.f32.mrb[0].mxu0
        %v2599 = vadd.f32 %v2447, %v2598
        %v2600 = vpop.f32.mrb[0].mxu0
        %2601 = vmatprep.mubr.bf16.mxu0 0
        %2602 = vmatmul.mubr.bf16.gmra.mrb[0].mxu0 %v2419
        %v2603 = vpop.f32.mrb[0].mxu0
        %v2604 = vadd.f32 %v2447, %v2603
        %v2605 = vpop.f32.mrb[0].mxu0
        %v2606 = vpop.f32.mrb[0].mxu0
        %v2607 = vadd.f32 %v2447, %v2606
        %v2608 = vpop.f32.mrb[0].mxu0
        %2609 = vmatprep.mubr.bf16.mxu0 0
        %2610 = vmatmul.mubr.bf16.gmra.mrb[0].mxu0 %v2420
        %v2611 = vpop.f32.mrb[0].mxu0
        %v2612 = vadd.f32 %v2447, %v2611
        %v2613 = vpop.f32.mrb[0].mxu0
        %v2614 = vpop.f32.mrb[0].mxu0
        %v2615 = vadd.f32 %v2447, %v2614
        %v2616 = vpop.f32.mrb[0].mxu0
        %2617 = vmatprep.mubr.bf16.mxu0 0
        %2618 = vmatmul.mubr.bf16.gmra.mrb[0].mxu0 %v2421
        %v2619 = vpop.f32.mrb[0].mxu0
        %v2620 = vadd.f32 %v2447, %v2619
        %v2621 = vpop.f32.mrb[0].mxu0
        %v2622 = vpop.f32.mrb[0].mxu0
        %v2623 = vadd.f32 %v2447, %v2622
        %v2624 = vpop.f32.mrb[0].mxu0
        %2625 = vmatprep.mubr.bf16.mxu0 0
        %2626 = vmatmul.mubr.bf16.gmra.mrb[0].mxu0 %v2422
        %v2627 = vpop.f32.mrb[0].mxu0
        %v2628 = vadd.f32 %v2447, %v2627
        %v2629 = vpop.f32.mrb[0].mxu0
        %v2630 = vpop.f32.mrb[0].mxu0
        %v2631 = vadd.f32 %v2447, %v2630
        %v2632 = vpop.f32.mrb[0].mxu0
        %2633 = vmatprep.mubr.bf16.mxu0 0
        %2634 = vmatmul.mubr.bf16.gmra.mrb[0].mxu0 %v2423
        %v2635 = vpop.f32.mrb[0].mxu0
        %v2636 = vadd.f32 %v2447, %v2635
        %v2637 = vpop.f32.mrb[0].mxu0
        %v2638 = vpop.f32.mrb[0].mxu0
        %v2639 = vadd.f32 %v2447, %v2638
        %v2640 = vpop.f32.mrb[0].mxu0
        %2641 = vmatprep.mubr.bf16.mxu0 0
        %2642 = vmatmul.mubr.bf16.gmra.mrb[0].mxu0 %v2424
        %v2643 = vpop.f32.mrb[0].mxu0
        %v2644 = vadd.f32 %v2447, %v2643
        %v2645 = vpop.f32.mrb[0].mxu0
        %v2646 = vpop.f32.mrb[0].mxu0
        %v2647 = vadd.f32 %v2447, %v2646
        %v2648 = vpop.f32.mrb[0].mxu0
        %2649 = vmatprep.mubr.bf16.mxu0 0
        %2650 = vmatmul.mubr.bf16.gmra.mrb[0].mxu0 %v2425
        %v2651 = vpop.f32.mrb[0].mxu0
        %v2652 = vadd.f32 %v2447, %v2651
        %v2653 = vpop.f32.mrb[0].mxu0
        %v2654 = vpop.f32.mrb[0].mxu0
        %v2655 = vadd.f32 %v2447, %v2654
        %v2656 = vpop.f32.mrb[0].mxu0
        %2657 = vdwg.mxu0
        %v2658 = vxor.u32 %v2532, 2147483648
        %v2659 = vxor.u32 %v2535, 2147483648
        %v2660 = vxor.u32 %v2540, 2147483648
        %v2661 = vxor.u32 %v2543, 2147483648
        %v2662 = vxor.u32 %v2548, 2147483648
        %v2663 = vxor.u32 %v2551, 2147483648
        %v2664 = vxor.u32 %v2556, 2147483648
        %v2665 = vxor.u32 %v2559, 2147483648
        %v2666 = vxor.u32 %v2564, 2147483648
        %v2667 = vxor.u32 %v2567, 2147483648
        %v2668 = vxor.u32 %v2572, 2147483648
        %v2669 = vxor.u32 %v2575, 2147483648
        %v2670 = vxor.u32 %v2580, 2147483648
        %v2671 = vxor.u32 %v2583, 2147483648
        %v2672 = vxor.u32 %v2588, 2147483648
        %v2673 = vxor.u32 %v2591, 2147483648
        %v2674 = vxor.u32 %v2596, 2147483648
        %v2675 = vxor.u32 %v2599, 2147483648
        %v2676 = vxor.u32 %v2604, 2147483648
        %v2677 = vxor.u32 %v2607, 2147483648
        %v2678 = vxor.u32 %v2612, 2147483648
        %v2679 = vxor.u32 %v2615, 2147483648
        %v2680 = vxor.u32 %v2620, 2147483648
        %v2681 = vxor.u32 %v2623, 2147483648
        %v2682 = vxor.u32 %v2628, 2147483648
        %v2683 = vxor.u32 %v2631, 2147483648
        %v2684 = vxor.u32 %v2636, 2147483648
        %v2685 = vxor.u32 %v2639, 2147483648
        %v2686 = vxor.u32 %v2644, 2147483648
        %v2687 = vxor.u32 %v2647, 2147483648
        %v2688 = vxor.u32 %v2652, 2147483648
        %v2689 = vxor.u32 %v2655, 2147483648
        %v2690 = vmul.f32 %v2658, 1.442695
        %v2691 = vpow.pop %v2690
        %v2692 = vmul.f32 %v2659, 1.442695
        %v2693 = vpow.pop %v2692
        %v2694 = vmul.f32 %v2660, 1.442695
        %v2695 = vpow.pop %v2694
        %v2696 = vmul.f32 %v2661, 1.442695
        %v2697 = vpow.pop %v2696
        %v2698 = vmul.f32 %v2662, 1.442695
        %v2699 = vpow.pop %v2698
        %v2700 = vmul.f32 %v2663, 1.442695
        %v2701 = vpow.pop %v2700
        %v2702 = vmul.f32 %v2664, 1.442695
        %v2703 = vpow.pop %v2702
        %v2704 = vmul.f32 %v2665, 1.442695
        %v2705 = vpow.pop %v2704
        %v2706 = vmul.f32 %v2666, 1.442695
        %v2707 = vpow.pop %v2706
        %v2708 = vmul.f32 %v2667, 1.442695
        %v2709 = vpow.pop %v2708
        %v2710 = vmul.f32 %v2668, 1.442695
        %v2711 = vpow.pop %v2710
        %v2712 = vmul.f32 %v2669, 1.442695
        %v2713 = vpow.pop %v2712
        %v2714 = vmul.f32 %v2670, 1.442695
        %v2715 = vpow.pop %v2714
        %v2716 = vmul.f32 %v2671, 1.442695
        %v2717 = vpow.pop %v2716
        %v2718 = vmul.f32 %v2672, 1.442695
        %v2719 = vpow.pop %v2718
        %v2720 = vmul.f32 %v2673, 1.442695
        %v2721 = vpow.pop %v2720
        %v2722 = vmul.f32 %v2674, 1.442695
        %v2723 = vpow.pop %v2722
        %v2724 = vmul.f32 %v2675, 1.442695
        %v2725 = vpow.pop %v2724
        %v2726 = vmul.f32 %v2676, 1.442695
        %v2727 = vpow.pop %v2726
        %v2728 = vmul.f32 %v2677, 1.442695
        %v2729 = vpow.pop %v2728
        %v2730 = vmul.f32 %v2678, 1.442695
        %v2731 = vpow.pop %v2730
        %v2732 = vmul.f32 %v2679, 1.442695
        %v2733 = vpow.pop %v2732
        %v2734 = vmul.f32 %v2680, 1.442695
        %v2735 = vpow.pop %v2734
        %v2736 = vmul.f32 %v2681, 1.442695
        %v2737 = vpow.pop %v2736
        %v2738 = vmul.f32 %v2682, 1.442695
        %v2739 = vpow.pop %v2738
        %v2740 = vmul.f32 %v2683, 1.442695
        %v2741 = vpow.pop %v2740
        %v2742 = vmul.f32 %v2684, 1.442695
        %v2743 = vpow.pop %v2742
        %v2744 = vmul.f32 %v2685, 1.442695
        %v2745 = vpow.pop %v2744
        %v2746 = vmul.f32 %v2686, 1.442695
        %v2747 = vpow.pop %v2746
        %v2748 = vmul.f32 %v2687, 1.442695
        %v2749 = vpow.pop %v2748
        %v2750 = vmul.f32 %v2688, 1.442695
        %v2751 = vpow.pop %v2750
        %v2752 = vmul.f32 %v2689, 1.442695
        %v2753 = vpow.pop %v2752
        %v2754 = vadd.f32 %v2691, 1.0
        %v2755 = vadd.f32 %v2693, 1.0
        %v2756 = vadd.f32 %v2695, 1.0
        %v2757 = vadd.f32 %v2697, 1.0
        %v2758 = vadd.f32 %v2699, 1.0
        %v2759 = vadd.f32 %v2701, 1.0
        %v2760 = vadd.f32 %v2703, 1.0
        %v2761 = vadd.f32 %v2705, 1.0
        %v2762 = vadd.f32 %v2707, 1.0
        %v2763 = vadd.f32 %v2709, 1.0
        %v2764 = vadd.f32 %v2711, 1.0
        %v2765 = vadd.f32 %v2713, 1.0
        %v2766 = vadd.f32 %v2715, 1.0
        %v2767 = vadd.f32 %v2717, 1.0
        %v2768 = vadd.f32 %v2719, 1.0
        %v2769 = vadd.f32 %v2721, 1.0
        %v2770 = vadd.f32 %v2723, 1.0
        %v2771 = vadd.f32 %v2725, 1.0
        %v2772 = vadd.f32 %v2727, 1.0
        %v2773 = vadd.f32 %v2729, 1.0
        %v2774 = vadd.f32 %v2731, 1.0
        %v2775 = vadd.f32 %v2733, 1.0
        %v2776 = vadd.f32 %v2735, 1.0
        %v2777 = vadd.f32 %v2737, 1.0
        %v2778 = vadd.f32 %v2739, 1.0
        %v2779 = vadd.f32 %v2741, 1.0
        %v2780 = vadd.f32 %v2743, 1.0
        %v2781 = vadd.f32 %v2745, 1.0
        %v2782 = vadd.f32 %v2747, 1.0
        %v2783 = vadd.f32 %v2749, 1.0
        %v2784 = vadd.f32 %v2751, 1.0
        %v2785 = vadd.f32 %v2753, 1.0
        %v2786 = vrcp.pop %v2754
        %v2787 = vmul.f32 1.0, %v2786
        %v2788 = vrcp.pop %v2755
        %v2789 = vmul.f32 1.0, %v2788
        %v2790 = vrcp.pop %v2756
        %v2791 = vmul.f32 1.0, %v2790
        %v2792 = vrcp.pop %v2757
        %v2793 = vmul.f32 1.0, %v2792
        %v2794 = vrcp.pop %v2758
        %v2795 = vmul.f32 1.0, %v2794
        %v2796 = vrcp.pop %v2759
        %v2797 = vmul.f32 1.0, %v2796
        %v2798 = vrcp.pop %v2760
        %v2799 = vmul.f32 1.0, %v2798
        %v2800 = vrcp.pop %v2761
        %v2801 = vmul.f32 1.0, %v2800
        %v2802 = vrcp.pop %v2762
        %v2803 = vmul.f32 1.0, %v2802
        %v2804 = vrcp.pop %v2763
        %v2805 = vmul.f32 1.0, %v2804
        %v2806 = vrcp.pop %v2764
        %v2807 = vmul.f32 1.0, %v2806
        %v2808 = vrcp.pop %v2765
        %v2809 = vmul.f32 1.0, %v2808
        %v2810 = vrcp.pop %v2766
        %v2811 = vmul.f32 1.0, %v2810
        %v2812 = vrcp.pop %v2767
        %v2813 = vmul.f32 1.0, %v2812
        %v2814 = vrcp.pop %v2768
        %v2815 = vmul.f32 1.0, %v2814
        %v2816 = vrcp.pop %v2769
        %v2817 = vmul.f32 1.0, %v2816
        %v2818 = vrcp.pop %v2770
        %v2819 = vmul.f32 1.0, %v2818
        %v2820 = vrcp.pop %v2771
        %v2821 = vmul.f32 1.0, %v2820
        %v2822 = vrcp.pop %v2772
        %v2823 = vmul.f32 1.0, %v2822
        %v2824 = vrcp.pop %v2773
        %v2825 = vmul.f32 1.0, %v2824
        %v2826 = vrcp.pop %v2774
        %v2827 = vmul.f32 1.0, %v2826
        %v2828 = vrcp.pop %v2775
        %v2829 = vmul.f32 1.0, %v2828
        %v2830 = vrcp.pop %v2776
        %v2831 = vmul.f32 1.0, %v2830
        %v2832 = vrcp.pop %v2777
        %v2833 = vmul.f32 1.0, %v2832
        %v2834 = vrcp.pop %v2778
        %v2835 = vmul.f32 1.0, %v2834
        %v2836 = vrcp.pop %v2779
        %v2837 = vmul.f32 1.0, %v2836
        %v2838 = vrcp.pop %v2780
        %v2839 = vmul.f32 1.0, %v2838
        %v2840 = vrcp.pop %v2781
        %v2841 = vmul.f32 1.0, %v2840
        %v2842 = vrcp.pop %v2782
        %v2843 = vmul.f32 1.0, %v2842
        %v2844 = vrcp.pop %v2783
        %v2845 = vmul.f32 1.0, %v2844
        %v2846 = vrcp.pop %v2784
        %v2847 = vmul.f32 1.0, %v2846
        %v2848 = vrcp.pop %v2785
        %v2849 = vmul.f32 1.0, %v2848
        %v2850 = vmul.f32 %v2532, %v2787
        %v2851 = vmul.f32 %v2535, %v2789
        %v2852 = vmul.f32 %v2540, %v2791
        %v2853 = vmul.f32 %v2543, %v2793
        %v2854 = vmul.f32 %v2548, %v2795
        %v2855 = vmul.f32 %v2551, %v2797
        %v2856 = vmul.f32 %v2556, %v2799
        %v2857 = vmul.f32 %v2559, %v2801
        %v2858 = vmul.f32 %v2564, %v2803
        %v2859 = vmul.f32 %v2567, %v2805
        %v2860 = vmul.f32 %v2572, %v2807
        %v2861 = vmul.f32 %v2575, %v2809
        %v2862 = vmul.f32 %v2580, %v2811
        %v2863 = vmul.f32 %v2583, %v2813
        %v2864 = vmul.f32 %v2588, %v2815
        %v2865 = vmul.f32 %v2591, %v2817
        %v2866 = vmul.f32 %v2596, %v2819
        %v2867 = vmul.f32 %v2599, %v2821
        %v2868 = vmul.f32 %v2604, %v2823
        %v2869 = vmul.f32 %v2607, %v2825
        %v2870 = vmul.f32 %v2612, %v2827
        %v2871 = vmul.f32 %v2615, %v2829
        %v2872 = vmul.f32 %v2620, %v2831
        %v2873 = vmul.f32 %v2623, %v2833
        %v2874 = vmul.f32 %v2628, %v2835
        %v2875 = vmul.f32 %v2631, %v2837
        %v2876 = vmul.f32 %v2636, %v2839
        %v2877 = vmul.f32 %v2639, %v2841
        %v2878 = vmul.f32 %v2644, %v2843
        %v2879 = vmul.f32 %v2647, %v2845
        %v2880 = vmul.f32 %v2652, %v2847
        %v2881 = vmul.f32 %v2655, %v2849
        %2882 = vmatprep.subr.mxu0 0.0
        %2883 = vmatpush1.msra.mxu0 %v2850
        %2884 = vmatprep.subr.mxu0 0.0
        %2885 = vmatpush1.msra.mxu0 %v2851
        %2886 = vmatprep.subr.mxu0 0.0
        %2887 = vmatpush1.msra.mxu0 %v2852
        %2888 = vmatprep.subr.mxu0 0.0
        %2889 = vmatpush1.msra.mxu0 %v2853
        %2890 = vmatprep.subr.mxu0 0.0
        %2891 = vmatpush1.msra.mxu0 %v2854
        %2892 = vmatprep.subr.mxu0 0.0
        %2893 = vmatpush1.msra.mxu0 %v2855
        %2894 = vmatprep.subr.mxu0 0.0
        %2895 = vmatpush1.msra.mxu0 %v2856
        %2896 = vmatprep.subr.mxu0 0.0
        %2897 = vmatpush1.msra.mxu0 %v2857
        %2898 = vmatprep.subr.mxu0 0.0
        %2899 = vmatpush1.msra.mxu0 %v2858
        %2900 = vmatprep.subr.mxu0 0.0
        %2901 = vmatpush1.msra.mxu0 %v2859
        %2902 = vmatprep.subr.mxu0 0.0
        %2903 = vmatpush1.msra.mxu0 %v2860
        %2904 = vmatprep.subr.mxu0 0.0
        %2905 = vmatpush1.msra.mxu0 %v2861
        %2906 = vmatprep.subr.mxu0 0.0
        %2907 = vmatpush1.msra.mxu0 %v2862
        %2908 = vmatprep.subr.mxu0 0.0
        %2909 = vmatpush1.msra.mxu0 %v2863
        %2910 = vmatprep.subr.mxu0 0.0
        %2911 = vmatpush1.msra.mxu0 %v2864
        %2912 = vmatprep.subr.mxu0 0.0
        %2913 = vmatpush1.msra.mxu0 %v2865
        %2914 = vmatprep.subr.mxu0 0.0
        %2915 = vmatpush1.msra.mxu0 %v2866
        %2916 = vmatprep.subr.mxu0 0.0
        %2917 = vmatpush1.msra.mxu0 %v2867
        %2918 = vmatprep.subr.mxu0 0.0
        %2919 = vmatpush1.msra.mxu0 %v2868
        %2920 = vmatprep.subr.mxu0 0.0
        %2921 = vmatpush1.msra.mxu0 %v2869
        %2922 = vmatprep.subr.mxu0 0.0
        %2923 = vmatpush1.msra.mxu0 %v2870
        %2924 = vmatprep.subr.mxu0 0.0
        %2925 = vmatpush1.msra.mxu0 %v2871
        %2926 = vmatprep.subr.mxu0 0.0
        %2927 = vmatpush1.msra.mxu0 %v2872
        %2928 = vmatprep.subr.mxu0 0.0
        %2929 = vmatpush1.msra.mxu0 %v2873
        %2930 = vmatprep.subr.mxu0 0.0
        %2931 = vmatpush1.msra.mxu0 %v2874
        %2932 = vmatprep.subr.mxu0 0.0
        %2933 = vmatpush1.msra.mxu0 %v2875
        %2934 = vmatprep.subr.mxu0 0.0
        %2935 = vmatpush1.msra.mxu0 %v2876
        %2936 = vmatprep.subr.mxu0 0.0
        %2937 = vmatpush1.msra.mxu0 %v2877
        %2938 = vmatprep.subr.mxu0 0.0
        %2939 = vmatpush1.msra.mxu0 %v2878
        %2940 = vmatprep.subr.mxu0 0.0
        %2941 = vmatpush1.msra.mxu0 %v2879
        %2942 = vmatprep.subr.mxu0 0.0
        %2943 = vmatpush1.msra.mxu0 %v2880
        %2944 = vmatprep.subr.mxu0 0.0
        %2945 = vmatpush1.msra.mxu0 %v2881
        %2946 = vmatprep.mubr.f32.mxu0 1.0
        %2947 = vmatmul.mubr.f32.gmra.mrb[0].mxu0 1.0
        %v2948 = vpop.f32.mrb[0].mxu0
        %v2949 = vadd.f32 0.0, %v2948
        %v2950 = vpop.f32.mrb[0].mxu0
        %2951 = vdwg.mxu0
        %v2952 = vmul.f32 %v2949, 0.00390625
        %v2953 = vld [vmem:[#allocation10] sm:$0xff]
        %v2954 = vld [vmem:[#allocation10 + $0x8] sm:$0xff]
        %v2955 = vld [vmem:[#allocation10 + $0x10] sm:$0xff]
        %v2956 = vld [vmem:[#allocation10 + $0x18] sm:$0xff]
        %v2957 = vld [vmem:[#allocation10 + $0x20] sm:$0xff]
        %v2958 = vld [vmem:[#allocation10 + $0x28] sm:$0xff]
        %v2959 = vld [vmem:[#allocation10 + $0x30] sm:$0xff]
        %v2960 = vld [vmem:[#allocation10 + $0x38] sm:$0xff]
        %v2961 = vld [vmem:[#allocation10 + $0x40] sm:$0xff]
        %v2962 = vld [vmem:[#allocation10 + $0x48] sm:$0xff]
        %v2963 = vld [vmem:[#allocation10 + $0x50] sm:$0xff]
        %v2964 = vld [vmem:[#allocation10 + $0x58] sm:$0xff]
        %v2965 = vld [vmem:[#allocation10 + $0x60] sm:$0xff]
        %v2966 = vld [vmem:[#allocation10 + $0x68] sm:$0xff]
        %v2967 = vld [vmem:[#allocation10 + $0x70] sm:$0xff]
        %v2968 = vld [vmem:[#allocation10 + $0x78] sm:$0xff]
        %s2969 = sld [smem:[#allocation2]]
        %v2970 = vstv %s2969
        %2971 = vmatprep.subr.mxu0 0.0
        %2972 = vmatpush1.msra.mxu0 %v2953
        %2973 = vmatprep.subr.mxu0 0.0
        %2974 = vmatpush1.msra.mxu0 %v2954
        %2975 = vmatprep.subr.mxu0 0.0
        %2976 = vmatpush1.msra.mxu0 %v2955
        %2977 = vmatprep.subr.mxu0 0.0
        %2978 = vmatpush1.msra.mxu0 %v2956
        %2979 = vmatprep.subr.mxu0 0.0
        %2980 = vmatpush1.msra.mxu0 %v2957
        %2981 = vmatprep.subr.mxu0 0.0
        %2982 = vmatpush1.msra.mxu0 %v2958
        %2983 = vmatprep.subr.mxu0 0.0
        %2984 = vmatpush1.msra.mxu0 %v2959
        %2985 = vmatprep.subr.mxu0 0.0
        %2986 = vmatpush1.msra.mxu0 %v2960
        %2987 = vmatprep.subr.mxu0 0.0
        %2988 = vmatpush1.msra.mxu0 %v2961
        %2989 = vmatprep.subr.mxu0 0.0
        %2990 = vmatpush1.msra.mxu0 %v2962
        %2991 = vmatprep.subr.mxu0 0.0
        %2992 = vmatpush1.msra.mxu0 %v2963
        %2993 = vmatprep.subr.mxu0 0.0
        %2994 = vmatpush1.msra.mxu0 %v2964
        %2995 = vmatprep.subr.mxu0 0.0
        %2996 = vmatpush1.msra.mxu0 %v2965
        %2997 = vmatprep.subr.mxu0 0.0
        %2998 = vmatpush1.msra.mxu0 %v2966
        %2999 = vmatprep.subr.mxu0 0.0
        %3000 = vmatpush1.msra.mxu0 %v2967
        %3001 = vmatprep.subr.mxu0 0.0
        %3002 = vmatpush1.msra.mxu0 %v2968
        %3003 = vmatprep.subr.mxu0 0.0
        %3004 = vmatpush1.msra.mxu0 0.0
        %3005 = vmatprep.subr.mxu0 0.0
        %3006 = vmatpush1.msra.mxu0 0.0
        %3007 = vmatprep.subr.mxu0 0.0
        %3008 = vmatpush1.msra.mxu0 0.0
        %3009 = vmatprep.subr.mxu0 0.0
        %3010 = vmatpush1.msra.mxu0 0.0
        %3011 = vmatprep.subr.mxu0 0.0
        %3012 = vmatpush1.msra.mxu0 0.0
        %3013 = vmatprep.subr.mxu0 0.0
        %3014 = vmatpush1.msra.mxu0 0.0
        %3015 = vmatprep.subr.mxu0 0.0
        %3016 = vmatpush1.msra.mxu0 0.0
        %3017 = vmatprep.subr.mxu0 0.0
        %3018 = vmatpush1.msra.mxu0 0.0
        %3019 = vmatprep.subr.mxu0 0.0
        %3020 = vmatpush1.msra.mxu0 0.0
        %3021 = vmatprep.subr.mxu0 0.0
        %3022 = vmatpush1.msra.mxu0 0.0
        %3023 = vmatprep.subr.mxu0 0.0
        %3024 = vmatpush1.msra.mxu0 0.0
        %3025 = vmatprep.subr.mxu0 0.0
        %3026 = vmatpush1.msra.mxu0 0.0
        %3027 = vmatprep.subr.mxu0 0.0
        %3028 = vmatpush1.msra.mxu0 0.0
        %3029 = vmatprep.subr.mxu0 0.0
        %3030 = vmatpush1.msra.mxu0 0.0
        %3031 = vmatprep.subr.mxu0 0.0
        %3032 = vmatpush1.msra.mxu0 0.0
        %3033 = vmatprep.subr.mxu0 0.0
        %3034 = vmatpush1.msra.mxu0 0.0
        %3035 = vmatprep.mubr.f32.mxu0 0.0
        %3036 = vmatmul.mubr.f32.gmra.mrb[0].mxu0 %v2952
        %v3037 = vpop.f32.mrb[0].mxu0
        %v3038 = vadd.f32 %v2970, %v3037
        %v3039 = vpop.f32.mrb[0].mxu0
        %3040 = vdwg.mxu0
        %v3041 = vxor.u32 %v3038, 2147483648
        %v3042 = vmul.f32 %v3041, 1.442695
        %v3043 = vpow.pop %v3042
        %v3044 = vadd.f32 %v3043, 1.0
        %v3045 = vrcp.pop %v3044
        %v3046 = vmul.f32 1.0, %v3045
        %v3047 = vmul.f32 %v3038, %v3046
        %v3048 = vld [vmem:[#allocation12] sm:$0xff]
        %v3049 = vld [vmem:[#allocation12 + $0x8] sm:$0xff]
        %v3050 = vld [vmem:[#allocation12 + $0x10] sm:$0xff]
        %v3051 = vld [vmem:[#allocation12 + $0x18] sm:$0xff]
        %v3052 = vld [vmem:[#allocation12 + $0x20] sm:$0xff]
        %v3053 = vld [vmem:[#allocation12 + $0x28] sm:$0xff]
        %v3054 = vld [vmem:[#allocation12 + $0x30] sm:$0xff]
        %v3055 = vld [vmem:[#allocation12 + $0x38] sm:$0xff]
        %v3056 = vld [vmem:[#allocation12 + $0x40] sm:$0xff]
        %v3057 = vld [vmem:[#allocation12 + $0x48] sm:$0xff]
        %v3058 = vld [vmem:[#allocation12 + $0x50] sm:$0xff]
        %v3059 = vld [vmem:[#allocation12 + $0x58] sm:$0xff]
        %v3060 = vld [vmem:[#allocation12 + $0x60] sm:$0xff]
        %v3061 = vld [vmem:[#allocation12 + $0x68] sm:$0xff]
        %v3062 = vld [vmem:[#allocation12 + $0x70] sm:$0xff]
        %v3063 = vld [vmem:[#allocation12 + $0x78] sm:$0xff]
        %s3064 = sld [smem:[#allocation3]]
        %v3065 = vstv %s3064
        %3066 = vmatprep.subr.mxu0 0.0
        %3067 = vmatpush1.msra.mxu0 %v3048
        %3068 = vmatprep.subr.mxu0 0.0
        %3069 = vmatpush1.msra.mxu0 %v3049
        %3070 = vmatprep.subr.mxu0 0.0
        %3071 = vmatpush1.msra.mxu0 %v3050
        %3072 = vmatprep.subr.mxu0 0.0
        %3073 = vmatpush1.msra.mxu0 %v3051
        %3074 = vmatprep.subr.mxu0 0.0
        %3075 = vmatpush1.msra.mxu0 %v3052
        %3076 = vmatprep.subr.mxu0 0.0
        %3077 = vmatpush1.msra.mxu0 %v3053
        %3078 = vmatprep.subr.mxu0 0.0
        %3079 = vmatpush1.msra.mxu0 %v3054
        %3080 = vmatprep.subr.mxu0 0.0
        %3081 = vmatpush1.msra.mxu0 %v3055
        %3082 = vmatprep.subr.mxu0 0.0
        %3083 = vmatpush1.msra.mxu0 %v3056
        %3084 = vmatprep.subr.mxu0 0.0
        %3085 = vmatpush1.msra.mxu0 %v3057
        %3086 = vmatprep.subr.mxu0 0.0
        %3087 = vmatpush1.msra.mxu0 %v3058
        %3088 = vmatprep.subr.mxu0 0.0
        %3089 = vmatpush1.msra.mxu0 %v3059
        %3090 = vmatprep.subr.mxu0 0.0
        %3091 = vmatpush1.msra.mxu0 %v3060
        %3092 = vmatprep.subr.mxu0 0.0
        %3093 = vmatpush1.msra.mxu0 %v3061
        %3094 = vmatprep.subr.mxu0 0.0
        %3095 = vmatpush1.msra.mxu0 %v3062
        %3096 = vmatprep.subr.mxu0 0.0
        %3097 = vmatpush1.msra.mxu0 %v3063
        %3098 = vmatprep.subr.mxu0 0.0
        %3099 = vmatpush1.msra.mxu0 0.0
        %3100 = vmatprep.subr.mxu0 0.0
        %3101 = vmatpush1.msra.mxu0 0.0
        %3102 = vmatprep.subr.mxu0 0.0
        %3103 = vmatpush1.msra.mxu0 0.0
        %3104 = vmatprep.subr.mxu0 0.0
        %3105 = vmatpush1.msra.mxu0 0.0
        %3106 = vmatprep.subr.mxu0 0.0
        %3107 = vmatpush1.msra.mxu0 0.0
        %3108 = vmatprep.subr.mxu0 0.0
        %3109 = vmatpush1.msra.mxu0 0.0
        %3110 = vmatprep.subr.mxu0 0.0
        %3111 = vmatpush1.msra.mxu0 0.0
        %3112 = vmatprep.subr.mxu0 0.0
        %3113 = vmatpush1.msra.mxu0 0.0
        %3114 = vmatprep.subr.mxu0 0.0
        %3115 = vmatpush1.msra.mxu0 0.0
        %3116 = vmatprep.subr.mxu0 0.0
        %3117 = vmatpush1.msra.mxu0 0.0
        %3118 = vmatprep.subr.mxu0 0.0
        %3119 = vmatpush1.msra.mxu0 0.0
        %3120 = vmatprep.subr.mxu0 0.0
        %3121 = vmatpush1.msra.mxu0 0.0
        %3122 = vmatprep.subr.mxu0 0.0
        %3123 = vmatpush1.msra.mxu0 0.0
        %3124 = vmatprep.subr.mxu0 0.0
        %3125 = vmatpush1.msra.mxu0 0.0
        %3126 = vmatprep.subr.mxu0 0.0
        %3127 = vmatpush1.msra.mxu0 0.0
        %3128 = vmatprep.subr.mxu0 0.0
        %3129 = vmatpush1.msra.mxu0 0.0
        %3130 = vmatprep.mubr.f32.mxu0 0.0
        %3131 = vmatmul.mubr.f32.gmra.mrb[0].mxu0 %v3047
        %v3132 = vpop.f32.mrb[0].mxu0
        %v3133 = vadd.f32 %v3065, %v3132
        %v3134 = vpop.f32.mrb[0].mxu0
        %3135 = vdwg.mxu0
        %v3136 = vlaneseq
        %v3137 = vshrl.u32 %v3136, 7
        %v3138 = vsub.s32 0, %v3137
        %v3139 = vrot.slane %v3133, %v3138
        %v3140 = vadd.f32 %v2532, %v3139
        %v3141 = vadd.f32 %v2535, %v3139
        %v3142 = vadd.f32 %v2540, %v3139
        %v3143 = vadd.f32 %v2543, %v3139
        %v3144 = vadd.f32 %v2548, %v3139
        %v3145 = vadd.f32 %v2551, %v3139
        %v3146 = vadd.f32 %v2556, %v3139
        %v3147 = vadd.f32 %v2559, %v3139
        %v3148 = vadd.f32 %v2564, %v3139
        %v3149 = vadd.f32 %v2567, %v3139
        %v3150 = vadd.f32 %v2572, %v3139
        %v3151 = vadd.f32 %v2575, %v3139
        %v3152 = vadd.f32 %v2580, %v3139
        %v3153 = vadd.f32 %v2583, %v3139
        %v3154 = vadd.f32 %v2588, %v3139
        %v3155 = vadd.f32 %v2591, %v3139
        %v3156 = vadd.f32 %v2596, %v3139
        %v3157 = vadd.f32 %v2599, %v3139
        %v3158 = vadd.f32 %v2604, %v3139
        %v3159 = vadd.f32 %v2607, %v3139
        %v3160 = vadd.f32 %v2612, %v3139
        %v3161 = vadd.f32 %v2615, %v3139
        %v3162 = vadd.f32 %v2620, %v3139
        %v3163 = vadd.f32 %v2623, %v3139
        %v3164 = vadd.f32 %v2628, %v3139
        %v3165 = vadd.f32 %v2631, %v3139
        %v3166 = vadd.f32 %v2636, %v3139
        %v3167 = vadd.f32 %v2639, %v3139
        %v3168 = vadd.f32 %v2644, %v3139
        %v3169 = vadd.f32 %v2647, %v3139
        %v3170 = vadd.f32 %v2652, %v3139
        %v3171 = vadd.f32 %v2655, %v3139
        %3172 = vst [vmem:[%s464] sm:$0xff] %v3140
        %3173 = vst [vmem:[%s464 + $0x8] sm:$0xff] %v3141
        %3174 = vst [vmem:[%s464 + $0x10] sm:$0xff] %v3142
        %3175 = vst [vmem:[%s464 + $0x18] sm:$0xff] %v3143
        %3176 = vst [vmem:[%s464 + $0x20] sm:$0xff] %v3144
        %3177 = vst [vmem:[%s464 + $0x28] sm:$0xff] %v3145
        %3178 = vst [vmem:[%s464 + $0x30] sm:$0xff] %v3146
        %3179 = vst [vmem:[%s464 + $0x38] sm:$0xff] %v3147
        %3180 = vst [vmem:[%s464 + $0x40] sm:$0xff] %v3148
        %3181 = vst [vmem:[%s464 + $0x48] sm:$0xff] %v3149
        %3182 = vst [vmem:[%s464 + $0x50] sm:$0xff] %v3150
        %3183 = vst [vmem:[%s464 + $0x58] sm:$0xff] %v3151
        %3184 = vst [vmem:[%s464 + $0x60] sm:$0xff] %v3152
        %3185 = vst [vmem:[%s464 + $0x68] sm:$0xff] %v3153
        %3186 = vst [vmem:[%s464 + $0x70] sm:$0xff] %v3154
        %3187 = vst [vmem:[%s464 + $0x78] sm:$0xff] %v3155
        %3188 = vst [vmem:[%s464 + $0x80] sm:$0xff] %v3156
        %3189 = vst [vmem:[%s464 + $0x88] sm:$0xff] %v3157
        %3190 = vst [vmem:[%s464 + $0x90] sm:$0xff] %v3158
        %3191 = vst [vmem:[%s464 + $0x98] sm:$0xff] %v3159
        %3192 = vst [vmem:[%s464 + $0xa0] sm:$0xff] %v3160
        %3193 = vst [vmem:[%s464 + $0xa8] sm:$0xff] %v3161
        %3194 = vst [vmem:[%s464 + $0xb0] sm:$0xff] %v3162
        %3195 = vst [vmem:[%s464 + $0xb8] sm:$0xff] %v3163
        %3196 = vst [vmem:[%s464 + $0xc0] sm:$0xff] %v3164
        %3197 = vst [vmem:[%s464 + $0xc8] sm:$0xff] %v3165
        %3198 = vst [vmem:[%s464 + $0xd0] sm:$0xff] %v3166
        %3199 = vst [vmem:[%s464 + $0xd8] sm:$0xff] %v3167
        %3200 = vst [vmem:[%s464 + $0xe0] sm:$0xff] %v3168
        %3201 = vst [vmem:[%s464 + $0xe8] sm:$0xff] %v3169
        %3202 = vst [vmem:[%s464 + $0xf0] sm:$0xff] %v3170
        %3203 = vst [vmem:[%s464 + $0xf8] sm:$0xff] %v3171
        %s3204 = sand.u32 %s276, 1
        %s3205 = scalar_lea.sflag [#allocation6], %s3204
        %s3206 = sand.u32 %s276, 1
        %s3207 = smul.addr %s3206, 256
        %s3208 = scalar_lea.vmem [#allocation13], %s3207
        // Predicated region
        $region85: #{tpu_custom_call.1} parent=63 // pred_check
          %p3209 = pneg %p286
        $region86: #{tpu_custom_call.1} parent=63 // pred_check_branch
          %3211 = sbr.rel (%p3209) target = $region88
        $region87: #{tpu_custom_call.1} parent=63 // pred_region
          %s3213 = ssub.s32 4096, 4096
          %3214 = vsyncadd %s3205, %s3213
          %s3215 = smul.addr %s32, 32
          %s3216 = smul.addr %s3215, 128
          %s3217 = scalar_lea.hbm %s11, %s3216
          %s3218 = sshll.u32 %s3208, 4
          %s3219 = int_to_ptr.vmem [resolvable:$true] %s3218
          %3224 = dma.vmem_to_hbm [thread:$0]  %s3219, 4096, %s3217, %s3205, 128, 128, 8
        $region88: #{tpu_custom_call.1} parent=63 // pred_fallthru
          _
      $region64: #{tpu_custom_call.1} parent=5 // pred_fallthru
        _
      %p3225 = scmp.le.s32.totalorder 2, %s27
      // Predicated region
      $region89: #{tpu_custom_call.1} parent=5 // pred_check
        %p3226 = pneg %p3225
      $region90: #{tpu_custom_call.1} parent=5 // pred_check_branch
        %3228 = sbr.rel (%p3226) target = $region92
      $region91: #{tpu_custom_call.1} parent=5 // pred_region
        %s3229 = ssub.s32 %s27, 2
        // Predicated region
        $region93: #{tpu_custom_call.1} parent=91 // pred_check
          %p3230 = pneg %p292
        $region94: #{tpu_custom_call.1} parent=91 // pred_check_branch
          %3232 = sbr.rel (%p3230) target = $region96
        $region95: #{tpu_custom_call.1} parent=91 // pred_region
          %s3233 = sand.u32 %s277, 1
          %s3234 = scalar_lea.sflag [#allocation6], %s3233
          %s3235 = sand.u32 %s277, 1
          %s3236 = smul.addr %s3235, 256
          %s3237 = scalar_lea.vmem [#allocation13], %s3236
          %3238 = dma.done %s3234, 4096
        $region96: #{tpu_custom_call.1} parent=91 // pred_fallthru
          _
      $region92: #{tpu_custom_call.1} parent=5 // pred_fallthru
        _
    $region6: #{tpu_custom_call.1} parent=1 // loop_footer
      %s31 = sadd.s32 1, %s27
    $region7: #{tpu_custom_call.1} parent=1 // loop_footer_branch
      %26 = sbr.rel target = $region3
    $region8: #{tpu_custom_call.1} parent=1 // loop_exit
      _
    %3239 = vsyncpa [#allocation5], 1
    %s3240 = scalar_lea.sflag [#allocation5], 1
    %3241 = vsyncpa %s3240, 1
    %3242 = vsyncpa [#allocation8], 1
    %3243 = vsyncpa [#allocation11], 1
    %3244 = vsyncpa [#allocation6], 1
    %s3245 = scalar_lea.sflag [#allocation6], 1
    %3246 = vsyncpa %s3245, 1

</llo_original>
